<compile_context>
chip_gen: v7x
topology: tpu7x:2x2x1
jax: 0.10.0
libtpu: 0.0.40
codegen_flags: <defaults>
</compile_context>

<pallas_src>
import math
import jax
import jax.numpy as jnp
from jax import lax
from jax.experimental import pallas as pl
from jax.experimental.pallas import tpu as pltpu


def mlp_kernel(x_ref, w1_ref, b1_ref, w2_ref, b2_ref, o_ref, acc_ref):
    # Grid: (i over M tiles [parallel], j over H tiles [arbitrary/reduction]).
    # x_ref:  (tm, D)  bf16
    # w1_ref: (D, th)  bf16    b1_ref: (1, th) f32
    # w2_ref: (th, D)  bf16    b2_ref: (1, D)  f32
    # o_ref:  (tm, D)  out dtype (resident across j)
    # acc_ref: (tm, D) f32 VMEM accumulator
    j = pl.program_id(1)

    @pl.when(j == 0)
    def _init():
        # Fold the c_proj bias into the accumulator init (saves a (tm, D) add).
        acc_ref[...] = jnp.broadcast_to(b2_ref[...], acc_ref.shape)

    # c_fc slice: (tm, D) @ (D, th) on the MXU, bf16 in / f32 accumulate.
    h = jnp.dot(x_ref[...], w1_ref[...], preferred_element_type=jnp.float32)
    h = h + b1_ref[...]

    # Exact (erf) GELU in f32, matching torch.nn.GELU() default numerics.
    h = 0.5 * h * (1.0 + lax.erf(h * jnp.float32(1.0 / math.sqrt(2.0))))

    # c_proj partial: (tm, th) @ (th, D), accumulate into the f32 scratch.
    acc_ref[...] += jnp.dot(h.astype(w2_ref.dtype), w2_ref[...],
                            preferred_element_type=jnp.float32)

    @pl.when(j == pl.num_programs(1) - 1)
    def _finalize():
        # dropout in inference mode == identity
        o_ref[...] = acc_ref[...].astype(o_ref.dtype)


def _pick_hidden_tile(H, max_th=512):
    """Largest 128-aligned tile <= max_th that divides H, else the full H."""
    for th in range(min(max_th, H), 127, -128):
        if H % th == 0:
            return th
    return H


def mlp_forward(x, w1, b1, w2, b2, *, tm=256):
    """x: (B, T, D) float32; w1: (D, 4D); w2: (4D, D). Returns (B, T, D)."""
    B, T, D = x.shape
    H = w1.shape[1]                       # 4 * D
    M = B * T
    th = _pick_hidden_tile(H)

    # Flatten to (M, D), cast matmul operands to bf16, pad rows to a tile multiple.
    x2 = x.reshape(M, D).astype(jnp.bfloat16)
    Mp = pl.cdiv(M, tm) * tm
    if Mp != M:
        x2 = jnp.pad(x2, ((0, Mp - M), (0, 0)))
    w1b = w1.astype(jnp.bfloat16)
    w2b = w2.astype(jnp.bfloat16)
    b1_2 = b1.reshape(1, H).astype(jnp.float32)
    b2_2 = b2.reshape(1, D).astype(jnp.float32)

    grid = (Mp // tm, H // th)

    cost = pl.CostEstimate(
        flops=4 * Mp * D * H,                       # two (M, D, H) matmuls
        transcendentals=Mp * H,                     # erf per hidden activation
        bytes_accessed=(Mp * D * 2                  # x (bf16)
                        + Mp * D * x.dtype.itemsize  # output
                        + 2 * D * H * 2             # W1 + W2 (bf16)
                        + (H + D) * 4),             # biases (f32)
    )

    out = pl.pallas_call(
        mlp_kernel,
        out_shape=jax.ShapeDtypeStruct((Mp, D), x.dtype),
        grid_spec=pltpu.PrefetchScalarGridSpec(
            num_scalar_prefetch=0,
            grid=grid,
            in_specs=[
                pl.BlockSpec((tm, D), lambda i, j: (i, 0)),   # x tile
                pl.BlockSpec((D, th), lambda i, j: (0, j)),   # W1 H-slice
                pl.BlockSpec((1, th), lambda i, j: (0, j)),   # b1 H-slice
                pl.BlockSpec((th, D), lambda i, j: (j, 0)),   # W2 H-slice
                pl.BlockSpec((1, D), lambda i, j: (0, 0)),    # b2
            ],
            out_specs=pl.BlockSpec((tm, D), lambda i, j: (i, 0)),
            scratch_shapes=[pltpu.VMEM((tm, D), jnp.float32)],
        ),
        compiler_params=pltpu.CompilerParams(
            dimension_semantics=("parallel", "arbitrary"),
            vmem_limit_bytes=64 * 1024 * 1024,
        ),
        cost_estimate=cost,
    )(x2, w1b, b1_2, w2b, b2_2)

    return out[:M].reshape(B, T, D)


def init_params(key, n_embd):
    """Deterministic init mimicking torch.nn.Linear (uniform +/- 1/sqrt(fan_in))."""
    hidden = 4 * n_embd
    k1, k2, k3, k4 = jax.random.split(key, 4)
    bound1 = 1.0 / math.sqrt(n_embd)
    bound2 = 1.0 / math.sqrt(hidden)
    # stored as (in_features, out_features)
    w1 = jax.random.uniform(k1, (n_embd, hidden), jnp.float32, -bound1, bound1)
    b1 = jax.random.uniform(k2, (hidden,), jnp.float32, -bound1, bound1)
    w2 = jax.random.uniform(k3, (hidden, n_embd), jnp.float32, -bound2, bound2)
    b2 = jax.random.uniform(k4, (n_embd,), jnp.float32, -bound2, bound2)
    return w1, b1, w2, b2


if __name__ == "__main__":
    # Config-consistent feature dim (n_embd=384), small batch/seq.
    B, T, D = 2, 8, 384
    key = jax.random.PRNGKey(0)
    kx, kp = jax.random.split(key)
    x = jax.random.normal(kx, (B, T, D), jnp.float32)
    w1, b1, w2, b2 = init_params(kp, D)

    y = jax.block_until_ready(mlp_forward(x, w1, b1, w2, b2))

    # Reference in plain JAX (f32, exact erf GELU). Kernel uses bf16 matmul
    # inputs with f32 accumulation, so tolerance is loosened accordingly.
    h_ref = x @ w1 + b1
    h_ref = 0.5 * h_ref * (1.0 + lax.erf(h_ref / jnp.sqrt(jnp.float32(2.0))))
    y_ref = h_ref @ w2 + b2
    assert y.shape == (B, T, D)
    assert jnp.allclose(y, y_ref, atol=2e-2, rtol=2e-2), \
        float(jnp.max(jnp.abs(y - y_ref)))

    print("KERNEL_OK")
</pallas_src>

<mosaic_0001>
module attributes {stable_mosaic.version = 11 : i64} {
  func.func @mlp_kernel(%arg0: i32, %arg1: i32, %arg2: memref<256x384xbf16, #tpu.memory_space<vmem>>, %arg3: memref<384x512xbf16, #tpu.memory_space<vmem>>, %arg4: memref<1x512xf32, #tpu.memory_space<vmem>>, %arg5: memref<512x384xbf16, #tpu.memory_space<vmem>>, %arg6: memref<1x384xf32, #tpu.memory_space<vmem>>, %arg7: memref<256x384xf32, #tpu.memory_space<vmem>>, %arg8: memref<256x384xf32, #tpu.memory_space<vmem>>) attributes {dimension_semantics = [#tpu.dimension_semantics<parallel>, #tpu.dimension_semantics<arbitrary>], iteration_bounds = array<i64: 1, 3>, scalar_prefetch = 0 : i64, scratch_operands = 1 : i64, tpu.core_type = #tpu.core_type<tc>, window_params = [{transform_indices = @transform_0, window_bounds = array<i64: 256, 384>}, {transform_indices = @transform_1, window_bounds = array<i64: 384, 512>}, {transform_indices = @transform_2, window_bounds = array<i64: 1, 512>}, {transform_indices = @transform_3, window_bounds = array<i64: 512, 384>}, {pipeline_mode = #tpu.pipeline_mode<synchronous>, transform_indices = @transform_4, window_bounds = array<i64: 1, 384>}, {transform_indices = @transform_5, window_bounds = array<i64: 256, 384>}]} {
    %c0_i32 = arith.constant 0 : i32
    %0 = arith.cmpi eq, %arg1, %c0_i32 : i32
    %1 = arith.extui %0 : i1 to i32
    %c0_i32_0 = arith.constant 0 : i32
    %2 = arith.cmpi ne, %1, %c0_i32_0 : i32
    scf.if %2 {
      %c0_17 = arith.constant 0 : index
      %c0_18 = arith.constant 0 : index
      %26 = vector.load %arg6[%c0_17, %c0_18] : memref<1x384xf32, #tpu.memory_space<vmem>>, vector<1x384xf32>
      %27 = vector.shape_cast %26 : vector<1x384xf32> to vector<1x384xf32>
      %28 = vector.broadcast %27 : vector<1x384xf32> to vector<256x384xf32>
      %c0_19 = arith.constant 0 : index
      %c0_20 = arith.constant 0 : index
      %29 = vector.load %arg8[%c0_19, %c0_20] : memref<256x384xf32, #tpu.memory_space<vmem>>, vector<256x384xf32>
      tpu.vector_store %arg8[%c0_19, %c0_20], %28 {strides = array<i32>} : memref<256x384xf32, #tpu.memory_space<vmem>>, vector<256x384xf32>,
    } else {
    }
    %c0 = arith.constant 0 : index
    %c0_1 = arith.constant 0 : index
    %3 = vector.load %arg2[%c0, %c0_1] : memref<256x384xbf16, #tpu.memory_space<vmem>>, vector<256x384xbf16>
    %c0_2 = arith.constant 0 : index
    %c0_3 = arith.constant 0 : index
    %4 = vector.load %arg3[%c0_2, %c0_3] : memref<384x512xbf16, #tpu.memory_space<vmem>>, vector<384x512xbf16>
    %cst = arith.constant dense<0.000000e+00> : vector<256x512xf32>
    %5 = tpu.matmul %3, %4, %cst {dimension_numbers = #tpu.dot_dimension_numbers<[1], [0], [0], [1], [0, 0, 1, 1], [], []>} : vector<256x384xbf16>, vector<384x512xbf16>, vector<256x512xf32> -> vector<256x512xf32>
    %c0_4 = arith.constant 0 : index
    %c0_5 = arith.constant 0 : index
    %6 = vector.load %arg4[%c0_4, %c0_5] : memref<1x512xf32, #tpu.memory_space<vmem>>, vector<1x512xf32>
    %7 = vector.broadcast %6 : vector<1x512xf32> to vector<256x512xf32>
    %8 = arith.addf %5, %7 : vector<256x512xf32>
    %cst_6 = arith.constant 5.000000e-01 : f32
    %9 = vector.broadcast %cst_6 : f32 to vector<256x512xf32>
    %10 = arith.mulf %9, %8 : vector<256x512xf32>
    %cst_7 = arith.constant 0.707106769 : f32
    %11 = vector.broadcast %cst_7 : f32 to vector<256x512xf32>
    %12 = arith.mulf %8, %11 : vector<256x512xf32>
    %13 = math.erf %12 : vector<256x512xf32>
    %cst_8 = arith.constant 1.000000e+00 : f32
    %14 = vector.broadcast %cst_8 : f32 to vector<256x512xf32>
    %15 = arith.addf %14, %13 : vector<256x512xf32>
    %16 = arith.mulf %10, %15 : vector<256x512xf32>
    %c0_9 = arith.constant 0 : index
    %c0_10 = arith.constant 0 : index
    %17 = vector.load %arg8[%c0_9, %c0_10] : memref<256x384xf32, #tpu.memory_space<vmem>>, vector<256x384xf32>
    %18 = arith.truncf %16 : vector<256x512xf32> to vector<256x512xbf16>
    %c0_11 = arith.constant 0 : index
    %c0_12 = arith.constant 0 : index
    %19 = vector.load %arg5[%c0_11, %c0_12] : memref<512x384xbf16, #tpu.memory_space<vmem>>, vector<512x384xbf16>
    %cst_13 = arith.constant dense<0.000000e+00> : vector<256x384xf32>
    %20 = tpu.matmul %18, %19, %cst_13 {dimension_numbers = #tpu.dot_dimension_numbers<[1], [0], [0], [1], [0, 0, 1, 1], [], []>} : vector<256x512xbf16>, vector<512x384xbf16>, vector<256x384xf32> -> vector<256x384xf32>
    %21 = arith.addf %17, %20 : vector<256x384xf32>
    %c0_14 = arith.constant 0 : index
    %c0_15 = arith.constant 0 : index
    %22 = vector.load %arg8[%c0_14, %c0_15] : memref<256x384xf32, #tpu.memory_space<vmem>>, vector<256x384xf32>
    tpu.vector_store %arg8[%c0_14, %c0_15], %21 {strides = array<i32>} : memref<256x384xf32, #tpu.memory_space<vmem>>, vector<256x384xf32>,
    %c2_i32 = arith.constant 2 : i32
    %23 = arith.cmpi eq, %arg1, %c2_i32 : i32
    %24 = arith.extui %23 : i1 to i32
    %c0_i32_16 = arith.constant 0 : i32
    %25 = arith.cmpi ne, %24, %c0_i32_16 : i32
    scf.if %25 {
      %c0_17 = arith.constant 0 : index
      %c0_18 = arith.constant 0 : index
      %26 = vector.load %arg8[%c0_17, %c0_18] : memref<256x384xf32, #tpu.memory_space<vmem>>, vector<256x384xf32>
      %c0_19 = arith.constant 0 : index
      %c0_20 = arith.constant 0 : index
      %27 = vector.load %arg7[%c0_19, %c0_20] : memref<256x384xf32, #tpu.memory_space<vmem>>, vector<256x384xf32>
      tpu.vector_store %arg7[%c0_19, %c0_20], %26 {strides = array<i32>} : memref<256x384xf32, #tpu.memory_space<vmem>>, vector<256x384xf32>,
    } else {
    }
    return
  }
  func.func @transform_0(%arg0: i32, %arg1: i32) -> (i32, i32) {
    %c0_i32 = arith.constant 0 : i32
    %c0_i32_0 = arith.constant 0 : i32
    return %arg0, %c0_i32 : i32, i32
  }
  func.func @transform_1(%arg0: i32, %arg1: i32) -> (i32, i32) {
    %c0_i32 = arith.constant 0 : i32
    %c0_i32_0 = arith.constant 0 : i32
    return %c0_i32, %arg1 : i32, i32
  }
  func.func @transform_2(%arg0: i32, %arg1: i32) -> (i32, i32) {
    %c0_i32 = arith.constant 0 : i32
    %c0_i32_0 = arith.constant 0 : i32
    return %c0_i32, %arg1 : i32, i32
  }
  func.func @transform_3(%arg0: i32, %arg1: i32) -> (i32, i32) {
    %c0_i32 = arith.constant 0 : i32
    %c0_i32_0 = arith.constant 0 : i32
    return %arg1, %c0_i32 : i32, i32
  }
  func.func @transform_4(%arg0: i32, %arg1: i32) -> (i32, i32) {
    %c0_i32 = arith.constant 0 : i32
    %c0_i32_0 = arith.constant 0 : i32
    %c0_i32_1 = arith.constant 0 : i32
    return %c0_i32, %c0_i32_0 : i32, i32
  }
  func.func @transform_5(%arg0: i32, %arg1: i32) -> (i32, i32) {
    %c0_i32 = arith.constant 0 : i32
    %c0_i32_0 = arith.constant 0 : i32
    return %arg0, %c0_i32 : i32, i32
  }
}

</mosaic_0001>

<llo_original>
// kernel: tpu_custom_call.1
$region0: #{tpu_custom_call.1}
  #allocation0 [shape = 'u32[]', space=smem, size = 0x4, offset = 0x4, fixed_abs, tag = 'smem constant byte address 0x4 - core index']
  #allocation1 [shape = 'u32[144,128]{1,0:T(1,128)}', space=vmem, size = 0x12000, scoped, tag = 'internal scratch']
  #allocation2 [shape = 'f32[256,384]{1,0:T(8,128)}', space=vmem, size = 0x60000, scoped, tag = 'scratch operand']
  %s0 = inlined_call_operand.hbm [shape: bf16[256,384], index: 0, kind: input, shape index: {}]
  %s1 = inlined_call_operand.hbm [shape: bf16[384,1536], index: 1, kind: input, shape index: {}]
  %s2 = inlined_call_operand.hbm [shape: f32[1,1536], index: 2, kind: input, shape index: {}]
  %s3 = inlined_call_operand.hbm [shape: bf16[1536,384], index: 3, kind: input, shape index: {}]
  %s4 = inlined_call_operand.hbm [shape: f32[1,384], index: 4, kind: input, shape index: {}]
  %s5 = inlined_call_operand.hbm [shape: f32[256,384], index: 5, kind: output, shape index: {}]
  %s6 = sld [smem:[#allocation0]]
  $region81: #{tpu_custom_call.1} parent=0
    _
  %s8 = ssub.s32 1, %s6
  %s9 = scalar_select 0, %s8, %s6
  $region1: #{tpu_custom_call.1} parent=0
    #allocation3 [shape = 'u8[196608]{0}', space=vmem, size = 0x30000, scoped, tag = 'input window, operand 0, single buffered']
    #allocation4 [shape = 's32[2]{0}', space=sflag, size = 0x8, scoped, tag = 'scoped memory for tpu_custom_call.1']
    #allocation5 [shape = 's32[2]{0}', space=sflag, size = 0x8, scoped, tag = 'scoped memory for tpu_custom_call.1']
    #allocation6 [shape = 'u8[786432]{0}', space=vmem, size = 0xc0000, scoped, tag = 'input window, operand 1']
    #allocation7 [shape = 's32[2]{0}', space=sflag, size = 0x8, scoped, tag = 'scoped memory for tpu_custom_call.1']
    #allocation8 [shape = 'u8[4096]{0}', space=vmem, size = 0x1000, scoped, tag = 'input window, operand 2']
    #allocation9 [shape = 'u8[786432]{0}', space=vmem, size = 0xc0000, scoped, tag = 'input window, operand 3']
    #allocation10 [shape = 's32[2]{0}', space=sflag, size = 0x8, scoped, tag = 'scoped memory for tpu_custom_call.1']
    #allocation11 [shape = 'u8[1536]{0}', space=vmem, size = 0x800, scoped, tag = 'input window, operand 4, single buffered']
    #allocation12 [shape = 'u8[393216]{0}', space=vmem, size = 0x60000, scoped, tag = 'output window, operand 0, single buffered']
    %10 = vsyncpa [#allocation4], 0
    %11 = vsyncpa [#allocation7], 0
    %s12 = scalar_lea.sflag [#allocation7], 1
    %13 = vsyncpa %s12, 0
    %14 = vsyncpa [#allocation10], 0
    %s15 = scalar_lea.sflag [#allocation10], 1
    %16 = vsyncpa %s15, 0
    %17 = vsyncpa [#allocation5], 0
    loop: start=0, step=1, limit=5
    $region2: #{tpu_custom_call.1} parent=1 // loop_pre_header
      _
    $region3: #{tpu_custom_call.1} parent=1 // loop_header
      %s19 = sphi 0, %s23
      %p20 = scmp.ge.s32.totalorder %s19, 5
      %s26 = sphi 0, %s38
      %s27 = sphi 0, %s34
      %s28 = sphi 0, %s26
      %s29 = sphi 0, %s27
      %s30 = sphi 0, %s28
      %s31 = sphi 0, %s29
      %s41 = sphi 0, %s43
      %s44 = sphi 0, %s41
      %s45 = sphi 0, %s44
      %s61 = sphi 0, %s45
      %s67 = sphi 0, %s69
      %s70 = sphi 0, %s67
      %s71 = sphi 0, %s70
      %s87 = sphi 0, %s71
      %s93 = sphi 0, %s95
      %s96 = sphi 0, %s93
      %s97 = sphi 0, %s96
      %s113 = sphi 0, %s97
      %s119 = sphi 0, %s121
      %s122 = sphi 0, %s119
      %s123 = sphi 0, %s122
      %s139 = sphi 0, %s123
      %s143 = sphi 0, %s143
      %s145 = sphi 0, %s143
      %s146 = sphi 0, %s145
      %s160 = sphi 0, %s146
      %s166 = sphi 0, %s168
      %s169 = sphi 0, %s166
      %s170 = sphi 0, %s169
      %s186 = sphi 0, %s170
    $region4: #{tpu_custom_call.1} parent=1 // loop_header_branch
      %22 = sbr.rel (%p20) target = $region8
    $region5: #{tpu_custom_call.1} parent=1 // loop_body
      %s24 = ssub.s32 %s19, 1
      %s25 = ssub.s32 %s19, 2
      %s32 = sadd.s32 1, %s27
      %p33 = scmp.ge.s32.totalorder %s32, 3
      %s34 = scalar_select %p33, 0, %s32
      %s35 = sadd.s32 1, %s26
      %s36 = scalar_select %p33, %s35, %s26
      %p37 = scmp.ge.s32.totalorder %s36, 1
      %s38 = scalar_select %p37, 0, %s36
      %s39 = ssub.s32 %s26, %s38
      %p40 = scmp.eq.s32.totalorder %s39, 0
      %s42 = sadd.s32 %s41, 1
      %s43 = scalar_select %p40, %s41, %s42
      %p46 = pneg %p40
      %p47 = scmp.eq.s32.totalorder %s19, 2
      %p48 = por %p46, %p47
      %p49 = scmp.ne.s32.totalorder %s41, %s44
      %p50 = scmp.eq.s32.totalorder %s19, 0
      %p51 = por %p49, %p50
      %p52 = scmp.ne.s32.totalorder %s41, %s44
      %p53 = scmp.eq.s32.totalorder %s24, 2
      %p54 = por %p52, %p53
      %p55 = scmp.ne.s32.totalorder %s44, %s45
      %p56 = scmp.eq.s32.totalorder %s24, 0
      %p57 = por %p55, %p56
      %p58 = scmp.ne.s32.totalorder %s44, %s45
      %p59 = scmp.eq.s32.totalorder %s25, 2
      %p60 = por %p58, %p59
      %p62 = scmp.ne.s32.totalorder %s45, %s61
      %p63 = scmp.eq.s32.totalorder %s25, 0
      %p64 = por %p62, %p63
      %s65 = ssub.s32 %s27, %s34
      %p66 = scmp.eq.s32.totalorder %s65, 0
      %s68 = sadd.s32 %s67, 1
      %s69 = scalar_select %p66, %s67, %s68
      %p72 = pneg %p66
      %p73 = scmp.eq.s32.totalorder %s19, 2
      %p74 = por %p72, %p73
      %p75 = scmp.ne.s32.totalorder %s67, %s70
      %p76 = scmp.eq.s32.totalorder %s19, 0
      %p77 = por %p75, %p76
      %p78 = scmp.ne.s32.totalorder %s67, %s70
      %p79 = scmp.eq.s32.totalorder %s24, 2
      %p80 = por %p78, %p79
      %p81 = scmp.ne.s32.totalorder %s70, %s71
      %p82 = scmp.eq.s32.totalorder %s24, 0
      %p83 = por %p81, %p82
      %p84 = scmp.ne.s32.totalorder %s70, %s71
      %p85 = scmp.eq.s32.totalorder %s25, 2
      %p86 = por %p84, %p85
      %p88 = scmp.ne.s32.totalorder %s71, %s87
      %p89 = scmp.eq.s32.totalorder %s25, 0
      %p90 = por %p88, %p89
      %s91 = ssub.s32 %s27, %s34
      %p92 = scmp.eq.s32.totalorder %s91, 0
      %s94 = sadd.s32 %s93, 1
      %s95 = scalar_select %p92, %s93, %s94
      %p98 = pneg %p92
      %p99 = scmp.eq.s32.totalorder %s19, 2
      %p100 = por %p98, %p99
      %p101 = scmp.ne.s32.totalorder %s93, %s96
      %p102 = scmp.eq.s32.totalorder %s19, 0
      %p103 = por %p101, %p102
      %p104 = scmp.ne.s32.totalorder %s93, %s96
      %p105 = scmp.eq.s32.totalorder %s24, 2
      %p106 = por %p104, %p105
      %p107 = scmp.ne.s32.totalorder %s96, %s97
      %p108 = scmp.eq.s32.totalorder %s24, 0
      %p109 = por %p107, %p108
      %p110 = scmp.ne.s32.totalorder %s96, %s97
      %p111 = scmp.eq.s32.totalorder %s25, 2
      %p112 = por %p110, %p111
      %p114 = scmp.ne.s32.totalorder %s97, %s113
      %p115 = scmp.eq.s32.totalorder %s25, 0
      %p116 = por %p114, %p115
      %s117 = ssub.s32 %s27, %s34
      %p118 = scmp.eq.s32.totalorder %s117, 0
      %s120 = sadd.s32 %s119, 1
      %s121 = scalar_select %p118, %s119, %s120
      %p124 = pneg %p118
      %p125 = scmp.eq.s32.totalorder %s19, 2
      %p126 = por %p124, %p125
      %p127 = scmp.ne.s32.totalorder %s119, %s122
      %p128 = scmp.eq.s32.totalorder %s19, 0
      %p129 = por %p127, %p128
      %p130 = scmp.ne.s32.totalorder %s119, %s122
      %p131 = scmp.eq.s32.totalorder %s24, 2
      %p132 = por %p130, %p131
      %p133 = scmp.ne.s32.totalorder %s122, %s123
      %p134 = scmp.eq.s32.totalorder %s24, 0
      %p135 = por %p133, %p134
      %p136 = scmp.ne.s32.totalorder %s122, %s123
      %p137 = scmp.eq.s32.totalorder %s25, 2
      %p138 = por %p136, %p137
      %p140 = scmp.ne.s32.totalorder %s123, %s139
      %p141 = scmp.eq.s32.totalorder %s25, 0
      %p142 = por %p140, %p141
      %s144 = sadd.s32 %s143, 1
      %p147 = scmp.eq.s32.totalorder %s19, 2
      %p148 = scmp.ne.s32.totalorder %s143, %s145
      %p149 = scmp.eq.s32.totalorder %s19, 0
      %p150 = por %p148, %p149
      %p151 = scmp.ne.s32.totalorder %s143, %s145
      %p152 = scmp.eq.s32.totalorder %s24, 2
      %p153 = por %p151, %p152
      %p154 = scmp.ne.s32.totalorder %s145, %s146
      %p155 = scmp.eq.s32.totalorder %s24, 0
      %p156 = por %p154, %p155
      %p157 = scmp.ne.s32.totalorder %s145, %s146
      %p158 = scmp.eq.s32.totalorder %s25, 2
      %p159 = por %p157, %p158
      %p161 = scmp.ne.s32.totalorder %s146, %s160
      %p162 = scmp.eq.s32.totalorder %s25, 0
      %p163 = por %p161, %p162
      %s164 = ssub.s32 %s26, %s38
      %p165 = scmp.eq.s32.totalorder %s164, 0
      %s167 = sadd.s32 %s166, 1
      %s168 = scalar_select %p165, %s166, %s167
      %p171 = pneg %p165
      %p172 = scmp.eq.s32.totalorder %s19, 2
      %p173 = por %p171, %p172
      %p174 = scmp.ne.s32.totalorder %s166, %s169
      %p175 = scmp.eq.s32.totalorder %s19, 0
      %p176 = por %p174, %p175
      %p177 = scmp.ne.s32.totalorder %s166, %s169
      %p178 = scmp.eq.s32.totalorder %s24, 2
      %p179 = por %p177, %p178
      %p180 = scmp.ne.s32.totalorder %s169, %s170
      %p181 = scmp.eq.s32.totalorder %s24, 0
      %p182 = por %p180, %p181
      %p183 = scmp.ne.s32.totalorder %s169, %s170
      %p184 = scmp.eq.s32.totalorder %s25, 2
      %p185 = por %p183, %p184
      %p187 = scmp.ne.s32.totalorder %s170, %s186
      %p188 = scmp.eq.s32.totalorder %s25, 0
      %p189 = por %p187, %p188
      %p190 = scmp.le.s32.totalorder 1, %s19
      %p191 = scmp.lt.s32.totalorder %s19, 4
      %p192 = pnand %p190, %p191
      %p193 = pneg %p192
      // Predicated region
      $region9: #{tpu_custom_call.1} parent=5 // pred_check
        _
      $region10: #{tpu_custom_call.1} parent=5 // pred_check_branch
        %195 = sbr.rel (%p192) target = $region12
      $region11: #{tpu_custom_call.1} parent=5 // pred_region
        %s196 = ssub.s32 %s19, 1
        // Predicated region
        $region13: #{tpu_custom_call.1} parent=11 // pred_check
          %p197 = pneg %p57
        $region14: #{tpu_custom_call.1} parent=11 // pred_check_branch
          %199 = sbr.rel (%p197) target = $region16
        $region15: #{tpu_custom_call.1} parent=11 // pred_region
          %s200 = smul.u32 32, %s28
          %s202 = ssub.s32 6144, 6144
          %203 = vsyncadd [#allocation4], %s202
          %s204 = smul.addr %s200, 3
          %s205 = smul.addr %s204, 64
          %s206 = scalar_lea.hbm %s0, %s205
          %s207 = sshll.u32 [#allocation3], 4
          %s208 = int_to_ptr.vmem [resolvable:$true] %s207
          %213 = dma.hbm_to_vmem [thread:$0]  %s206, 6144, %s208, [#allocation4], 192, 192, 12
        $region16: #{tpu_custom_call.1} parent=11 // pred_fallthru
          _
        // Predicated region
        $region17: #{tpu_custom_call.1} parent=11 // pred_check
          %p214 = pneg %p156
        $region18: #{tpu_custom_call.1} parent=11 // pred_check_branch
          %216 = sbr.rel (%p214) target = $region20
        $region19: #{tpu_custom_call.1} parent=11 // pred_region
          %s218 = ssub.s32 48, 48
          %219 = vsyncadd [#allocation10], %s218
          %s221 = sshll.u32 [#allocation11], 4
          %s222 = int_to_ptr.vmem [resolvable:$true] %s221
          %224 = dma.hbm_to_vmem [thread:$0]  %s4, 48, %s222, [#allocation10]
        $region20: #{tpu_custom_call.1} parent=11 // pred_fallthru
          _
      $region12: #{tpu_custom_call.1} parent=5 // pred_fallthru
        _
      %p225 = scmp.lt.s32.totalorder %s19, 3
      // Predicated region
      $region21: #{tpu_custom_call.1} parent=5 // pred_check
        %p226 = pneg %p225
      $region22: #{tpu_custom_call.1} parent=5 // pred_check_branch
        %228 = sbr.rel (%p226) target = $region24
      $region23: #{tpu_custom_call.1} parent=5 // pred_region
        // Predicated region
        $region25: #{tpu_custom_call.1} parent=23 // pred_check
          %p229 = pneg %p77
        $region26: #{tpu_custom_call.1} parent=23 // pred_check_branch
          %231 = sbr.rel (%p229) target = $region28
        $region27: #{tpu_custom_call.1} parent=23 // pred_region
          %s232 = sand.u32 %s19, 1
          %s233 = scalar_lea.sflag [#allocation7], %s232
          %s234 = sand.u32 %s67, 1
          %s235 = smul.addr %s234, 768
          %s236 = scalar_lea.vmem [#allocation6], %s235
          %s237 = smul.u32 4, %s27
          %s239 = ssub.s32 12288, 12288
          %240 = vsyncadd %s233, %s239
          %s241 = smul.addr %s237, 64
          %s242 = scalar_lea.hbm %s1, %s241
          %s243 = sshll.u32 %s236, 4
          %s244 = int_to_ptr.vmem [resolvable:$true] %s243
          %249 = dma.hbm_to_vmem [thread:$0]  %s242, 12288, %s244, %s233, 768, 256, 16
        $region28: #{tpu_custom_call.1} parent=23 // pred_fallthru
          _
        // Predicated region
        $region29: #{tpu_custom_call.1} parent=23 // pred_check
          %p250 = pneg %p103
        $region30: #{tpu_custom_call.1} parent=23 // pred_check_branch
          %252 = sbr.rel (%p250) target = $region32
        $region31: #{tpu_custom_call.1} parent=23 // pred_region
          %s253 = sand.u32 %s19, 1
          %s254 = scalar_lea.sflag [#allocation7], %s253
          %s255 = sand.u32 %s93, 1
          %s256 = smul.addr %s255, 4
          %s257 = scalar_lea.vmem [#allocation8], %s256
          %s258 = smul.u32 4, %s27
          %s260 = ssub.s32 64, 64
          %261 = vsyncadd %s254, %s260
          %s262 = smul.addr %s258, 16
          %s263 = scalar_lea.hbm %s2, %s262
          %s265 = sshll.u32 %s257, 4
          %s266 = int_to_ptr.vmem [resolvable:$true] %s265
          %268 = dma.hbm_to_vmem [thread:$0]  %s263, 64, %s266, %s254
        $region32: #{tpu_custom_call.1} parent=23 // pred_fallthru
          _
        // Predicated region
        $region33: #{tpu_custom_call.1} parent=23 // pred_check
          %p269 = pneg %p129
        $region34: #{tpu_custom_call.1} parent=23 // pred_check_branch
          %271 = sbr.rel (%p269) target = $region36
        $region35: #{tpu_custom_call.1} parent=23 // pred_region
          %s272 = sand.u32 %s19, 1
          %s273 = scalar_lea.sflag [#allocation10], %s272
          %s274 = sand.u32 %s119, 1
          %s275 = smul.addr %s274, 768
          %s276 = scalar_lea.vmem [#allocation9], %s275
          %s277 = smul.u32 64, %s27
          %s279 = ssub.s32 12288, 12288
          %280 = vsyncadd %s273, %s279
          %s281 = smul.addr %s277, 3
          %s282 = smul.addr %s281, 64
          %s283 = scalar_lea.hbm %s3, %s282
          %s284 = sshll.u32 %s276, 4
          %s285 = int_to_ptr.vmem [resolvable:$true] %s284
          %290 = dma.hbm_to_vmem [thread:$0]  %s283, 12288, %s285, %s273, 192, 192, 12
        $region36: #{tpu_custom_call.1} parent=23 // pred_fallthru
          _
      $region24: #{tpu_custom_call.1} parent=5 // pred_fallthru
        _
      %p291 = scmp.le.s32.totalorder 1, %s19
      %p292 = scmp.lt.s32.totalorder %s19, 4
      %p293 = pnand %p291, %p292
      %p294 = pneg %p293
      // Predicated region
      $region37: #{tpu_custom_call.1} parent=5 // pred_check
        _
      $region38: #{tpu_custom_call.1} parent=5 // pred_check_branch
        %296 = sbr.rel (%p293) target = $region40
      $region39: #{tpu_custom_call.1} parent=5 // pred_region
        %s297 = ssub.s32 %s19, 1
        // Predicated region
        $region41: #{tpu_custom_call.1} parent=39 // pred_check
          %p298 = pneg %p57
        $region42: #{tpu_custom_call.1} parent=39 // pred_check_branch
          %300 = sbr.rel (%p298) target = $region44
        $region43: #{tpu_custom_call.1} parent=39 // pred_region
          %301 = dma.done [#allocation4], 6144
        $region44: #{tpu_custom_call.1} parent=39 // pred_fallthru
          _
        %s302 = sand.u32 %s24, 1
        %s303 = scalar_lea.sflag [#allocation7], %s302
        %s304 = sand.u32 %s70, 1
        %s305 = smul.addr %s304, 768
        %s306 = scalar_lea.vmem [#allocation6], %s305
        // Predicated region
        $region45: #{tpu_custom_call.1} parent=39 // pred_check
          %p307 = pneg %p83
        $region46: #{tpu_custom_call.1} parent=39 // pred_check_branch
          %309 = sbr.rel (%p307) target = $region48
        $region47: #{tpu_custom_call.1} parent=39 // pred_region
          %310 = dma.done %s303, 12288
        $region48: #{tpu_custom_call.1} parent=39 // pred_fallthru
          _
        %s311 = sand.u32 %s24, 1
        %s312 = scalar_lea.sflag [#allocation7], %s311
        %s313 = sand.u32 %s96, 1
        %s314 = smul.addr %s313, 4
        %s315 = scalar_lea.vmem [#allocation8], %s314
        // Predicated region
        $region49: #{tpu_custom_call.1} parent=39 // pred_check
          %p316 = pneg %p109
        $region50: #{tpu_custom_call.1} parent=39 // pred_check_branch
          %318 = sbr.rel (%p316) target = $region52
        $region51: #{tpu_custom_call.1} parent=39 // pred_region
          %319 = dma.done %s312, 64
        $region52: #{tpu_custom_call.1} parent=39 // pred_fallthru
          _
        %s320 = sand.u32 %s24, 1
        %s321 = scalar_lea.sflag [#allocation10], %s320
        %s322 = sand.u32 %s122, 1
        %s323 = smul.addr %s322, 768
        %s324 = scalar_lea.vmem [#allocation9], %s323
        // Predicated region
        $region53: #{tpu_custom_call.1} parent=39 // pred_check
          %p325 = pneg %p135
        $region54: #{tpu_custom_call.1} parent=39 // pred_check_branch
          %327 = sbr.rel (%p325) target = $region56
        $region55: #{tpu_custom_call.1} parent=39 // pred_region
          %328 = dma.done %s321, 12288
        $region56: #{tpu_custom_call.1} parent=39 // pred_fallthru
          _
        // Predicated region
        $region57: #{tpu_custom_call.1} parent=39 // pred_check
          %p329 = pneg %p156
        $region58: #{tpu_custom_call.1} parent=39 // pred_check_branch
          %331 = sbr.rel (%p329) target = $region60
        $region59: #{tpu_custom_call.1} parent=39 // pred_region
          %332 = dma.done [#allocation10], 48
        $region60: #{tpu_custom_call.1} parent=39 // pred_fallthru
          _
        %p333 = pneg %p57
        %p334 = pneg %p54
        %s335 = sand.u32 %s24, 1
        %s336 = scalar_lea.sflag [#allocation7], %s335
        %s337 = sand.u32 %s70, 1
        %s338 = smul.addr %s337, 768
        %s339 = scalar_lea.vmem [#allocation6], %s338
        %p340 = pneg %p83
        %p341 = pneg %p80
        %s342 = sand.u32 %s24, 1
        %s343 = scalar_lea.sflag [#allocation7], %s342
        %s344 = sand.u32 %s96, 1
        %s345 = smul.addr %s344, 4
        %s346 = scalar_lea.vmem [#allocation8], %s345
        %p347 = pneg %p109
        %p348 = pneg %p106
        %s349 = sand.u32 %s24, 1
        %s350 = scalar_lea.sflag [#allocation10], %s349
        %s351 = sand.u32 %s122, 1
        %s352 = smul.addr %s351, 768
        %s353 = scalar_lea.vmem [#allocation9], %s352
        %p354 = pneg %p135
        %p355 = pneg %p132
        %p356 = pneg %p156
        %p357 = pneg %p153
        %p358 = pneg %p182
        %p359 = pneg %p179
        %s360 = smul.u32 32, %s28
        %s361 = smul.u32 4, %s29
        %s362 = smul.u32 4, %s29
        %s363 = smul.u32 64, %s29
        %s364 = smul.u32 32, %s28
        %p366 = scmp.eq.s32.totalorder %s29, 0
        // Predicated region
        $region61: #{tpu_custom_call.1} parent=39 // pred_check
          %p367 = pneg %p366
        $region62: #{tpu_custom_call.1} parent=39 // pred_check_branch
          %369 = sbr.rel (%p367) target = $region64
        $region63: #{tpu_custom_call.1} parent=39 // pred_region
          %v370 = vld [vmem:[#allocation11] sm:$0x7]
          %v372 = vlaneseq
          %v373 = vshrl.u32 %v372, 7
          %v374 = vsub.s32 0, %v373
          %v375 = vrot.slane %v370, %v374
          %v376 = vlaneseq
          %v377 = vshrl.u32 %v376, 7
          %v378 = vsub.s32 1, %v377
          %v379 = vrot.slane %v370, %v378
          %v380 = vlaneseq
          %v381 = vshrl.u32 %v380, 7
          %v382 = vsub.s32 2, %v381
          %v383 = vrot.slane %v370, %v382
          %387 = vst [vmem:[#allocation2] sm:$0xff] %v375
          %388 = vst [vmem:[#allocation2 + $0x8] sm:$0xff] %v379
          %389 = vst [vmem:[#allocation2 + $0x10] sm:$0xff] %v383
          %390 = vst [vmem:[#allocation2 + $0x18] sm:$0xff] %v375
          %391 = vst [vmem:[#allocation2 + $0x20] sm:$0xff] %v379
          %392 = vst [vmem:[#allocation2 + $0x28] sm:$0xff] %v383
          %393 = vst [vmem:[#allocation2 + $0x30] sm:$0xff] %v375
          %394 = vst [vmem:[#allocation2 + $0x38] sm:$0xff] %v379
          %395 = vst [vmem:[#allocation2 + $0x40] sm:$0xff] %v383
          %396 = vst [vmem:[#allocation2 + $0x48] sm:$0xff] %v375
          %397 = vst [vmem:[#allocation2 + $0x50] sm:$0xff] %v379
          %398 = vst [vmem:[#allocation2 + $0x58] sm:$0xff] %v383
          %399 = vst [vmem:[#allocation2 + $0x60] sm:$0xff] %v375
          %400 = vst [vmem:[#allocation2 + $0x68] sm:$0xff] %v379
          %401 = vst [vmem:[#allocation2 + $0x70] sm:$0xff] %v383
          %402 = vst [vmem:[#allocation2 + $0x78] sm:$0xff] %v375
          %403 = vst [vmem:[#allocation2 + $0x80] sm:$0xff] %v379
          %404 = vst [vmem:[#allocation2 + $0x88] sm:$0xff] %v383
          %405 = vst [vmem:[#allocation2 + $0x90] sm:$0xff] %v375
          %406 = vst [vmem:[#allocation2 + $0x98] sm:$0xff] %v379
          %407 = vst [vmem:[#allocation2 + $0xa0] sm:$0xff] %v383
          %408 = vst [vmem:[#allocation2 + $0xa8] sm:$0xff] %v375
          %409 = vst [vmem:[#allocation2 + $0xb0] sm:$0xff] %v379
          %410 = vst [vmem:[#allocation2 + $0xb8] sm:$0xff] %v383
          %411 = vst [vmem:[#allocation2 + $0xc0] sm:$0xff] %v375
          %412 = vst [vmem:[#allocation2 + $0xc8] sm:$0xff] %v379
          %413 = vst [vmem:[#allocation2 + $0xd0] sm:$0xff] %v383
          %414 = vst [vmem:[#allocation2 + $0xd8] sm:$0xff] %v375
          %415 = vst [vmem:[#allocation2 + $0xe0] sm:$0xff] %v379
          %416 = vst [vmem:[#allocation2 + $0xe8] sm:$0xff] %v383
          %417 = vst [vmem:[#allocation2 + $0xf0] sm:$0xff] %v375
          %418 = vst [vmem:[#allocation2 + $0xf8] sm:$0xff] %v379
          %419 = vst [vmem:[#allocation2 + $0x100] sm:$0xff] %v383
          %420 = vst [vmem:[#allocation2 + $0x108] sm:$0xff] %v375
          %421 = vst [vmem:[#allocation2 + $0x110] sm:$0xff] %v379
          %422 = vst [vmem:[#allocation2 + $0x118] sm:$0xff] %v383
          %423 = vst [vmem:[#allocation2 + $0x120] sm:$0xff] %v375
          %424 = vst [vmem:[#allocation2 + $0x128] sm:$0xff] %v379
          %425 = vst [vmem:[#allocation2 + $0x130] sm:$0xff] %v383
          %426 = vst [vmem:[#allocation2 + $0x138] sm:$0xff] %v375
          %427 = vst [vmem:[#allocation2 + $0x140] sm:$0xff] %v379
          %428 = vst [vmem:[#allocation2 + $0x148] sm:$0xff] %v383
          %429 = vst [vmem:[#allocation2 + $0x150] sm:$0xff] %v375
          %430 = vst [vmem:[#allocation2 + $0x158] sm:$0xff] %v379
          %431 = vst [vmem:[#allocation2 + $0x160] sm:$0xff] %v383
          %432 = vst [vmem:[#allocation2 + $0x168] sm:$0xff] %v375
          %433 = vst [vmem:[#allocation2 + $0x170] sm:$0xff] %v379
          %434 = vst [vmem:[#allocation2 + $0x178] sm:$0xff] %v383
          %435 = vst [vmem:[#allocation2 + $0x180] sm:$0xff] %v375
          %436 = vst [vmem:[#allocation2 + $0x188] sm:$0xff] %v379
          %437 = vst [vmem:[#allocation2 + $0x190] sm:$0xff] %v383
          %438 = vst [vmem:[#allocation2 + $0x198] sm:$0xff] %v375
          %439 = vst [vmem:[#allocation2 + $0x1a0] sm:$0xff] %v379
          %440 = vst [vmem:[#allocation2 + $0x1a8] sm:$0xff] %v383
          %441 = vst [vmem:[#allocation2 + $0x1b0] sm:$0xff] %v375
          %442 = vst [vmem:[#allocation2 + $0x1b8] sm:$0xff] %v379
          %443 = vst [vmem:[#allocation2 + $0x1c0] sm:$0xff] %v383
          %444 = vst [vmem:[#allocation2 + $0x1c8] sm:$0xff] %v375
          %445 = vst [vmem:[#allocation2 + $0x1d0] sm:$0xff] %v379
          %446 = vst [vmem:[#allocation2 + $0x1d8] sm:$0xff] %v383
          %447 = vst [vmem:[#allocation2 + $0x1e0] sm:$0xff] %v375
          %448 = vst [vmem:[#allocation2 + $0x1e8] sm:$0xff] %v379
          %449 = vst [vmem:[#allocation2 + $0x1f0] sm:$0xff] %v383
          %450 = vst [vmem:[#allocation2 + $0x1f8] sm:$0xff] %v375
          %451 = vst [vmem:[#allocation2 + $0x200] sm:$0xff] %v379
          %452 = vst [vmem:[#allocation2 + $0x208] sm:$0xff] %v383
          %453 = vst [vmem:[#allocation2 + $0x210] sm:$0xff] %v375
          %454 = vst [vmem:[#allocation2 + $0x218] sm:$0xff] %v379
          %455 = vst [vmem:[#allocation2 + $0x220] sm:$0xff] %v383
          %456 = vst [vmem:[#allocation2 + $0x228] sm:$0xff] %v375
          %457 = vst [vmem:[#allocation2 + $0x230] sm:$0xff] %v379
          %458 = vst [vmem:[#allocation2 + $0x238] sm:$0xff] %v383
          %459 = vst [vmem:[#allocation2 + $0x240] sm:$0xff] %v375
          %460 = vst [vmem:[#allocation2 + $0x248] sm:$0xff] %v379
          %461 = vst [vmem:[#allocation2 + $0x250] sm:$0xff] %v383
          %462 = vst [vmem:[#allocation2 + $0x258] sm:$0xff] %v375
          %463 = vst [vmem:[#allocation2 + $0x260] sm:$0xff] %v379
          %464 = vst [vmem:[#allocation2 + $0x268] sm:$0xff] %v383
          %465 = vst [vmem:[#allocation2 + $0x270] sm:$0xff] %v375
          %466 = vst [vmem:[#allocation2 + $0x278] sm:$0xff] %v379
          %467 = vst [vmem:[#allocation2 + $0x280] sm:$0xff] %v383
          %468 = vst [vmem:[#allocation2 + $0x288] sm:$0xff] %v375
          %469 = vst [vmem:[#allocation2 + $0x290] sm:$0xff] %v379
          %470 = vst [vmem:[#allocation2 + $0x298] sm:$0xff] %v383
          %471 = vst [vmem:[#allocation2 + $0x2a0] sm:$0xff] %v375
          %472 = vst [vmem:[#allocation2 + $0x2a8] sm:$0xff] %v379
          %473 = vst [vmem:[#allocation2 + $0x2b0] sm:$0xff] %v383
          %474 = vst [vmem:[#allocation2 + $0x2b8] sm:$0xff] %v375
          %475 = vst [vmem:[#allocation2 + $0x2c0] sm:$0xff] %v379
          %476 = vst [vmem:[#allocation2 + $0x2c8] sm:$0xff] %v383
          %477 = vst [vmem:[#allocation2 + $0x2d0] sm:$0xff] %v375
          %478 = vst [vmem:[#allocation2 + $0x2d8] sm:$0xff] %v379
          %479 = vst [vmem:[#allocation2 + $0x2e0] sm:$0xff] %v383
          %480 = vst [vmem:[#allocation2 + $0x2e8] sm:$0xff] %v375
          %481 = vst [vmem:[#allocation2 + $0x2f0] sm:$0xff] %v379
          %482 = vst [vmem:[#allocation2 + $0x2f8] sm:$0xff] %v383
        $region64: #{tpu_custom_call.1} parent=39 // pred_fallthru
          _
        %v483 = vld [vmem:[#allocation3] sm:$0xff]
        %v484 = vld [vmem:[#allocation3 + $0x8] sm:$0xf]
        %v485 = vld [vmem:[#allocation3 + $0xc] sm:$0xff]
        %v486 = vld [vmem:[#allocation3 + $0x14] sm:$0xf]
        %v487 = vld [vmem:[#allocation3 + $0x18] sm:$0xff]
        %v488 = vld [vmem:[#allocation3 + $0x20] sm:$0xf]
        %v489 = vld [vmem:[#allocation3 + $0x24] sm:$0xff]
        %v490 = vld [vmem:[#allocation3 + $0x2c] sm:$0xf]
        %v491 = vld [vmem:[#allocation3 + $0x30] sm:$0xff]
        %v492 = vld [vmem:[#allocation3 + $0x38] sm:$0xf]
        %v493 = vld [vmem:[#allocation3 + $0x3c] sm:$0xff]
        %v494 = vld [vmem:[#allocation3 + $0x44] sm:$0xf]
        %v495 = vld [vmem:[#allocation3 + $0x48] sm:$0xff]
        %v496 = vld [vmem:[#allocation3 + $0x50] sm:$0xf]
        %v497 = vld [vmem:[#allocation3 + $0x54] sm:$0xff]
        %v498 = vld [vmem:[#allocation3 + $0x5c] sm:$0xf]
        %v499 = vld [vmem:[#allocation3 + $0x60] sm:$0xff]
        %v500 = vld [vmem:[#allocation3 + $0x68] sm:$0xf]
        %v501 = vld [vmem:[#allocation3 + $0x6c] sm:$0xff]
        %v502 = vld [vmem:[#allocation3 + $0x74] sm:$0xf]
        %v503 = vld [vmem:[#allocation3 + $0x78] sm:$0xff]
        %v504 = vld [vmem:[#allocation3 + $0x80] sm:$0xf]
        %v505 = vld [vmem:[#allocation3 + $0x84] sm:$0xff]
        %v506 = vld [vmem:[#allocation3 + $0x8c] sm:$0xf]
        %v507 = vld [vmem:[#allocation3 + $0x90] sm:$0xff]
        %v508 = vld [vmem:[#allocation3 + $0x98] sm:$0xf]
        %v509 = vld [vmem:[#allocation3 + $0x9c] sm:$0xff]
        %v510 = vld [vmem:[#allocation3 + $0xa4] sm:$0xf]
        %v511 = vld [vmem:[#allocation3 + $0xa8] sm:$0xff]
        %v512 = vld [vmem:[#allocation3 + $0xb0] sm:$0xf]
        %v513 = vld [vmem:[#allocation3 + $0xb4] sm:$0xff]
        %v514 = vld [vmem:[#allocation3 + $0xbc] sm:$0xf]
        %v515 = vld [vmem:[#allocation3 + $0xc0] sm:$0xff]
        %v516 = vld [vmem:[#allocation3 + $0xc8] sm:$0xf]
        %v517 = vld [vmem:[#allocation3 + $0xcc] sm:$0xff]
        %v518 = vld [vmem:[#allocation3 + $0xd4] sm:$0xf]
        %v519 = vld [vmem:[#allocation3 + $0xd8] sm:$0xff]
        %v520 = vld [vmem:[#allocation3 + $0xe0] sm:$0xf]
        %v521 = vld [vmem:[#allocation3 + $0xe4] sm:$0xff]
        %v522 = vld [vmem:[#allocation3 + $0xec] sm:$0xf]
        %v523 = vld [vmem:[#allocation3 + $0xf0] sm:$0xff]
        %v524 = vld [vmem:[#allocation3 + $0xf8] sm:$0xf]
        %v525 = vld [vmem:[#allocation3 + $0xfc] sm:$0xff]
        %v526 = vld [vmem:[#allocation3 + $0x104] sm:$0xf]
        %v527 = vld [vmem:[#allocation3 + $0x108] sm:$0xff]
        %v528 = vld [vmem:[#allocation3 + $0x110] sm:$0xf]
        %v529 = vld [vmem:[#allocation3 + $0x114] sm:$0xff]
        %v530 = vld [vmem:[#allocation3 + $0x11c] sm:$0xf]
        %v531 = vld [vmem:[#allocation3 + $0x120] sm:$0xff]
        %v532 = vld [vmem:[#allocation3 + $0x128] sm:$0xf]
        %v533 = vld [vmem:[#allocation3 + $0x12c] sm:$0xff]
        %v534 = vld [vmem:[#allocation3 + $0x134] sm:$0xf]
        %v535 = vld [vmem:[#allocation3 + $0x138] sm:$0xff]
        %v536 = vld [vmem:[#allocation3 + $0x140] sm:$0xf]
        %v537 = vld [vmem:[#allocation3 + $0x144] sm:$0xff]
        %v538 = vld [vmem:[#allocation3 + $0x14c] sm:$0xf]
        %v539 = vld [vmem:[#allocation3 + $0x150] sm:$0xff]
        %v540 = vld [vmem:[#allocation3 + $0x158] sm:$0xf]
        %v541 = vld [vmem:[#allocation3 + $0x15c] sm:$0xff]
        %v542 = vld [vmem:[#allocation3 + $0x164] sm:$0xf]
        %v543 = vld [vmem:[#allocation3 + $0x168] sm:$0xff]
        %v544 = vld [vmem:[#allocation3 + $0x170] sm:$0xf]
        %v545 = vld [vmem:[#allocation3 + $0x174] sm:$0xff]
        %v546 = vld [vmem:[#allocation3 + $0x17c] sm:$0xf]
        %v547 = vld [vmem:[%s306] sm:$0xff]
        %v548 = vld [vmem:[%s306 + $0x8] sm:$0xff]
        %v549 = vld [vmem:[%s306 + $0x10] sm:$0xff]
        %v550 = vld [vmem:[%s306 + $0x18] sm:$0xff]
        %v551 = vld [vmem:[%s306 + $0x20] sm:$0xff]
        %v552 = vld [vmem:[%s306 + $0x28] sm:$0xff]
        %v553 = vld [vmem:[%s306 + $0x30] sm:$0xff]
        %v554 = vld [vmem:[%s306 + $0x38] sm:$0xff]
        %v555 = vld [vmem:[%s306 + $0x40] sm:$0xff]
        %v556 = vld [vmem:[%s306 + $0x48] sm:$0xff]
        %v557 = vld [vmem:[%s306 + $0x50] sm:$0xff]
        %v558 = vld [vmem:[%s306 + $0x58] sm:$0xff]
        %v559 = vld [vmem:[%s306 + $0x60] sm:$0xff]
        %v560 = vld [vmem:[%s306 + $0x68] sm:$0xff]
        %v561 = vld [vmem:[%s306 + $0x70] sm:$0xff]
        %v562 = vld [vmem:[%s306 + $0x78] sm:$0xff]
        %v563 = vld [vmem:[%s306 + $0x80] sm:$0xff]
        %v564 = vld [vmem:[%s306 + $0x88] sm:$0xff]
        %v565 = vld [vmem:[%s306 + $0x90] sm:$0xff]
        %v566 = vld [vmem:[%s306 + $0x98] sm:$0xff]
        %v567 = vld [vmem:[%s306 + $0xa0] sm:$0xff]
        %v568 = vld [vmem:[%s306 + $0xa8] sm:$0xff]
        %v569 = vld [vmem:[%s306 + $0xb0] sm:$0xff]
        %v570 = vld [vmem:[%s306 + $0xb8] sm:$0xff]
        %v571 = vld [vmem:[%s306 + $0xc0] sm:$0xff]
        %v572 = vld [vmem:[%s306 + $0xc8] sm:$0xff]
        %v573 = vld [vmem:[%s306 + $0xd0] sm:$0xff]
        %v574 = vld [vmem:[%s306 + $0xd8] sm:$0xff]
        %v575 = vld [vmem:[%s306 + $0xe0] sm:$0xff]
        %v576 = vld [vmem:[%s306 + $0xe8] sm:$0xff]
        %v577 = vld [vmem:[%s306 + $0xf0] sm:$0xff]
        %v578 = vld [vmem:[%s306 + $0xf8] sm:$0xff]
        %v579 = vld [vmem:[%s306 + $0x100] sm:$0xff]
        %v580 = vld [vmem:[%s306 + $0x108] sm:$0xff]
        %v581 = vld [vmem:[%s306 + $0x110] sm:$0xff]
        %v582 = vld [vmem:[%s306 + $0x118] sm:$0xff]
        %v583 = vld [vmem:[%s306 + $0x120] sm:$0xff]
        %v584 = vld [vmem:[%s306 + $0x128] sm:$0xff]
        %v585 = vld [vmem:[%s306 + $0x130] sm:$0xff]
        %v586 = vld [vmem:[%s306 + $0x138] sm:$0xff]
        %v587 = vld [vmem:[%s306 + $0x140] sm:$0xff]
        %v588 = vld [vmem:[%s306 + $0x148] sm:$0xff]
        %v589 = vld [vmem:[%s306 + $0x150] sm:$0xff]
        %v590 = vld [vmem:[%s306 + $0x158] sm:$0xff]
        %v591 = vld [vmem:[%s306 + $0x160] sm:$0xff]
        %v592 = vld [vmem:[%s306 + $0x168] sm:$0xff]
        %v593 = vld [vmem:[%s306 + $0x170] sm:$0xff]
        %v594 = vld [vmem:[%s306 + $0x178] sm:$0xff]
        %v595 = vld [vmem:[%s306 + $0x180] sm:$0xff]
        %v596 = vld [vmem:[%s306 + $0x188] sm:$0xff]
        %v597 = vld [vmem:[%s306 + $0x190] sm:$0xff]
        %v598 = vld [vmem:[%s306 + $0x198] sm:$0xff]
        %v599 = vld [vmem:[%s306 + $0x1a0] sm:$0xff]
        %v600 = vld [vmem:[%s306 + $0x1a8] sm:$0xff]
        %v601 = vld [vmem:[%s306 + $0x1b0] sm:$0xff]
        %v602 = vld [vmem:[%s306 + $0x1b8] sm:$0xff]
        %v603 = vld [vmem:[%s306 + $0x1c0] sm:$0xff]
        %v604 = vld [vmem:[%s306 + $0x1c8] sm:$0xff]
        %v605 = vld [vmem:[%s306 + $0x1d0] sm:$0xff]
        %v606 = vld [vmem:[%s306 + $0x1d8] sm:$0xff]
        %v607 = vld [vmem:[%s306 + $0x1e0] sm:$0xff]
        %v608 = vld [vmem:[%s306 + $0x1e8] sm:$0xff]
        %v609 = vld [vmem:[%s306 + $0x1f0] sm:$0xff]
        %v610 = vld [vmem:[%s306 + $0x1f8] sm:$0xff]
        %v611 = vld [vmem:[%s306 + $0x200] sm:$0xff]
        %v612 = vld [vmem:[%s306 + $0x208] sm:$0xff]
        %v613 = vld [vmem:[%s306 + $0x210] sm:$0xff]
        %v614 = vld [vmem:[%s306 + $0x218] sm:$0xff]
        %v615 = vld [vmem:[%s306 + $0x220] sm:$0xff]
        %v616 = vld [vmem:[%s306 + $0x228] sm:$0xff]
        %v617 = vld [vmem:[%s306 + $0x230] sm:$0xff]
        %v618 = vld [vmem:[%s306 + $0x238] sm:$0xff]
        %v619 = vld [vmem:[%s306 + $0x240] sm:$0xff]
        %v620 = vld [vmem:[%s306 + $0x248] sm:$0xff]
        %v621 = vld [vmem:[%s306 + $0x250] sm:$0xff]
        %v622 = vld [vmem:[%s306 + $0x258] sm:$0xff]
        %v623 = vld [vmem:[%s306 + $0x260] sm:$0xff]
        %v624 = vld [vmem:[%s306 + $0x268] sm:$0xff]
        %v625 = vld [vmem:[%s306 + $0x270] sm:$0xff]
        %v626 = vld [vmem:[%s306 + $0x278] sm:$0xff]
        %v627 = vld [vmem:[%s306 + $0x280] sm:$0xff]
        %v628 = vld [vmem:[%s306 + $0x288] sm:$0xff]
        %v629 = vld [vmem:[%s306 + $0x290] sm:$0xff]
        %v630 = vld [vmem:[%s306 + $0x298] sm:$0xff]
        %v631 = vld [vmem:[%s306 + $0x2a0] sm:$0xff]
        %v632 = vld [vmem:[%s306 + $0x2a8] sm:$0xff]
        %v633 = vld [vmem:[%s306 + $0x2b0] sm:$0xff]
        %v634 = vld [vmem:[%s306 + $0x2b8] sm:$0xff]
        %v635 = vld [vmem:[%s306 + $0x2c0] sm:$0xff]
        %v636 = vld [vmem:[%s306 + $0x2c8] sm:$0xff]
        %v637 = vld [vmem:[%s306 + $0x2d0] sm:$0xff]
        %v638 = vld [vmem:[%s306 + $0x2d8] sm:$0xff]
        %v639 = vld [vmem:[%s306 + $0x2e0] sm:$0xff]
        %v640 = vld [vmem:[%s306 + $0x2e8] sm:$0xff]
        %v641 = vld [vmem:[%s306 + $0x2f0] sm:$0xff]
        %v642 = vld [vmem:[%s306 + $0x2f8] sm:$0xff]
        %v643 = vld [vmem:[%s315] sm:$0xf]
        %v645 = vlaneseq
        %v646 = vshrl.u32 %v645, 7
        %v647 = vsub.s32 0, %v646
        %v648 = vrot.slane %v643, %v647
        %v649 = vlaneseq
        %v650 = vshrl.u32 %v649, 7
        %v651 = vsub.s32 1, %v650
        %v652 = vrot.slane %v643, %v651
        %v653 = vlaneseq
        %v654 = vshrl.u32 %v653, 7
        %v655 = vsub.s32 2, %v654
        %v656 = vrot.slane %v643, %v655
        %v657 = vlaneseq
        %v658 = vshrl.u32 %v657, 7
        %v659 = vsub.s32 3, %v658
        %v660 = vrot.slane %v643, %v659
        %v729 = vunpack.c.l.b16 %v483
        %v730 = vunpack.c.h.b16 %v483
        %v731 = vunpack.c.l.b16 %v484
        %v732 = vunpack.c.l.b16 %v485
        %v733 = vunpack.c.h.b16 %v485
        %v734 = vunpack.c.l.b16 %v486
        %v735 = vunpack.c.l.b16 %v487
        %v736 = vunpack.c.h.b16 %v487
        %v737 = vunpack.c.l.b16 %v488
        %v738 = vunpack.c.l.b16 %v489
        %v739 = vunpack.c.h.b16 %v489
        %v740 = vunpack.c.l.b16 %v490
        %v741 = vunpack.c.l.b16 %v491
        %v742 = vunpack.c.h.b16 %v491
        %v743 = vunpack.c.l.b16 %v492
        %v744 = vunpack.c.l.b16 %v493
        %v745 = vunpack.c.h.b16 %v493
        %v746 = vunpack.c.l.b16 %v494
        %v747 = vunpack.c.l.b16 %v495
        %v748 = vunpack.c.h.b16 %v495
        %v749 = vunpack.c.l.b16 %v496
        %v750 = vunpack.c.l.b16 %v497
        %v751 = vunpack.c.h.b16 %v497
        %v752 = vunpack.c.l.b16 %v498
        %v753 = vunpack.c.l.b16 %v499
        %v754 = vunpack.c.h.b16 %v499
        %v755 = vunpack.c.l.b16 %v500
        %v756 = vunpack.c.l.b16 %v501
        %v757 = vunpack.c.h.b16 %v501
        %v758 = vunpack.c.l.b16 %v502
        %v759 = vunpack.c.l.b16 %v503
        %v760 = vunpack.c.h.b16 %v503
        %v761 = vunpack.c.l.b16 %v504
        %v762 = vunpack.c.l.b16 %v505
        %v763 = vunpack.c.h.b16 %v505
        %v764 = vunpack.c.l.b16 %v506
        %v765 = vunpack.c.l.b16 %v507
        %v766 = vunpack.c.h.b16 %v507
        %v767 = vunpack.c.l.b16 %v508
        %v768 = vunpack.c.l.b16 %v509
        %v769 = vunpack.c.h.b16 %v509
        %v770 = vunpack.c.l.b16 %v510
        %v771 = vunpack.c.l.b16 %v511
        %v772 = vunpack.c.h.b16 %v511
        %v773 = vunpack.c.l.b16 %v512
        %v774 = vunpack.c.l.b16 %v513
        %v775 = vunpack.c.h.b16 %v513
        %v776 = vunpack.c.l.b16 %v514
        %v777 = vunpack.c.l.b16 %v515
        %v778 = vunpack.c.h.b16 %v515
        %v779 = vunpack.c.l.b16 %v516
        %v780 = vunpack.c.l.b16 %v517
        %v781 = vunpack.c.h.b16 %v517
        %v782 = vunpack.c.l.b16 %v518
        %v783 = vunpack.c.l.b16 %v519
        %v784 = vunpack.c.h.b16 %v519
        %v785 = vunpack.c.l.b16 %v520
        %v786 = vunpack.c.l.b16 %v521
        %v787 = vunpack.c.h.b16 %v521
        %v788 = vunpack.c.l.b16 %v522
        %v789 = vunpack.c.l.b16 %v523
        %v790 = vunpack.c.h.b16 %v523
        %v791 = vunpack.c.l.b16 %v524
        %v792 = vunpack.c.l.b16 %v525
        %v793 = vunpack.c.h.b16 %v525
        %v794 = vunpack.c.l.b16 %v526
        %v795 = vunpack.c.l.b16 %v527
        %v796 = vunpack.c.h.b16 %v527
        %v797 = vunpack.c.l.b16 %v528
        %v798 = vunpack.c.l.b16 %v529
        %v799 = vunpack.c.h.b16 %v529
        %v800 = vunpack.c.l.b16 %v530
        %v801 = vunpack.c.l.b16 %v531
        %v802 = vunpack.c.h.b16 %v531
        %v803 = vunpack.c.l.b16 %v532
        %v804 = vunpack.c.l.b16 %v533
        %v805 = vunpack.c.h.b16 %v533
        %v806 = vunpack.c.l.b16 %v534
        %v807 = vunpack.c.l.b16 %v535
        %v808 = vunpack.c.h.b16 %v535
        %v809 = vunpack.c.l.b16 %v536
        %v810 = vunpack.c.l.b16 %v537
        %v811 = vunpack.c.h.b16 %v537
        %v812 = vunpack.c.l.b16 %v538
        %v813 = vunpack.c.l.b16 %v539
        %v814 = vunpack.c.h.b16 %v539
        %v815 = vunpack.c.l.b16 %v540
        %v816 = vunpack.c.l.b16 %v541
        %v817 = vunpack.c.h.b16 %v541
        %v818 = vunpack.c.l.b16 %v542
        %v819 = vunpack.c.l.b16 %v543
        %v820 = vunpack.c.h.b16 %v543
        %v821 = vunpack.c.l.b16 %v544
        %v822 = vunpack.c.l.b16 %v545
        %v823 = vunpack.c.h.b16 %v545
        %v824 = vunpack.c.l.b16 %v546
        %v825 = vpack.c.b16 %v732, %v729
        %v826 = vpack.c.b16 %v733, %v730
        %v827 = vpack.c.b16 %v734, %v731
        %v828 = vpack.c.b16 %v738, %v735
        %v829 = vpack.c.b16 %v739, %v736
        %v830 = vpack.c.b16 %v740, %v737
        %v831 = vpack.c.b16 %v744, %v741
        %v832 = vpack.c.b16 %v745, %v742
        %v833 = vpack.c.b16 %v746, %v743
        %v834 = vpack.c.b16 %v750, %v747
        %v835 = vpack.c.b16 %v751, %v748
        %v836 = vpack.c.b16 %v752, %v749
        %v837 = vpack.c.b16 %v756, %v753
        %v838 = vpack.c.b16 %v757, %v754
        %v839 = vpack.c.b16 %v758, %v755
        %v840 = vpack.c.b16 %v762, %v759
        %v841 = vpack.c.b16 %v763, %v760
        %v842 = vpack.c.b16 %v764, %v761
        %v843 = vpack.c.b16 %v768, %v765
        %v844 = vpack.c.b16 %v769, %v766
        %v845 = vpack.c.b16 %v770, %v767
        %v846 = vpack.c.b16 %v774, %v771
        %v847 = vpack.c.b16 %v775, %v772
        %v848 = vpack.c.b16 %v776, %v773
        %v849 = vpack.c.b16 %v780, %v777
        %v850 = vpack.c.b16 %v781, %v778
        %v851 = vpack.c.b16 %v782, %v779
        %v852 = vpack.c.b16 %v786, %v783
        %v853 = vpack.c.b16 %v787, %v784
        %v854 = vpack.c.b16 %v788, %v785
        %v855 = vpack.c.b16 %v792, %v789
        %v856 = vpack.c.b16 %v793, %v790
        %v857 = vpack.c.b16 %v794, %v791
        %v858 = vpack.c.b16 %v798, %v795
        %v859 = vpack.c.b16 %v799, %v796
        %v860 = vpack.c.b16 %v800, %v797
        %v861 = vpack.c.b16 %v804, %v801
        %v862 = vpack.c.b16 %v805, %v802
        %v863 = vpack.c.b16 %v806, %v803
        %v864 = vpack.c.b16 %v810, %v807
        %v865 = vpack.c.b16 %v811, %v808
        %v866 = vpack.c.b16 %v812, %v809
        %v867 = vpack.c.b16 %v816, %v813
        %v868 = vpack.c.b16 %v817, %v814
        %v869 = vpack.c.b16 %v818, %v815
        %v870 = vpack.c.b16 %v822, %v819
        %v871 = vpack.c.b16 %v823, %v820
        %v872 = vpack.c.b16 %v824, %v821
        %v1017 = vunpack.c.l.b16 %v547
        %v1018 = vunpack.c.h.b16 %v547
        %v1019 = vunpack.c.l.b16 %v548
        %v1020 = vunpack.c.h.b16 %v548
        %v1021 = vunpack.c.l.b16 %v549
        %v1022 = vunpack.c.h.b16 %v549
        %v1023 = vunpack.c.l.b16 %v550
        %v1024 = vunpack.c.h.b16 %v550
        %v1025 = vunpack.c.l.b16 %v551
        %v1026 = vunpack.c.h.b16 %v551
        %v1027 = vunpack.c.l.b16 %v552
        %v1028 = vunpack.c.h.b16 %v552
        %v1029 = vunpack.c.l.b16 %v553
        %v1030 = vunpack.c.h.b16 %v553
        %v1031 = vunpack.c.l.b16 %v554
        %v1032 = vunpack.c.h.b16 %v554
        %v1033 = vunpack.c.l.b16 %v555
        %v1034 = vunpack.c.h.b16 %v555
        %v1035 = vunpack.c.l.b16 %v556
        %v1036 = vunpack.c.h.b16 %v556
        %v1037 = vunpack.c.l.b16 %v557
        %v1038 = vunpack.c.h.b16 %v557
        %v1039 = vunpack.c.l.b16 %v558
        %v1040 = vunpack.c.h.b16 %v558
        %v1041 = vunpack.c.l.b16 %v559
        %v1042 = vunpack.c.h.b16 %v559
        %v1043 = vunpack.c.l.b16 %v560
        %v1044 = vunpack.c.h.b16 %v560
        %v1045 = vunpack.c.l.b16 %v561
        %v1046 = vunpack.c.h.b16 %v561
        %v1047 = vunpack.c.l.b16 %v562
        %v1048 = vunpack.c.h.b16 %v562
        %v1049 = vunpack.c.l.b16 %v563
        %v1050 = vunpack.c.h.b16 %v563
        %v1051 = vunpack.c.l.b16 %v564
        %v1052 = vunpack.c.h.b16 %v564
        %v1053 = vunpack.c.l.b16 %v565
        %v1054 = vunpack.c.h.b16 %v565
        %v1055 = vunpack.c.l.b16 %v566
        %v1056 = vunpack.c.h.b16 %v566
        %v1057 = vunpack.c.l.b16 %v567
        %v1058 = vunpack.c.h.b16 %v567
        %v1059 = vunpack.c.l.b16 %v568
        %v1060 = vunpack.c.h.b16 %v568
        %v1061 = vunpack.c.l.b16 %v569
        %v1062 = vunpack.c.h.b16 %v569
        %v1063 = vunpack.c.l.b16 %v570
        %v1064 = vunpack.c.h.b16 %v570
        %v1065 = vunpack.c.l.b16 %v571
        %v1066 = vunpack.c.h.b16 %v571
        %v1067 = vunpack.c.l.b16 %v572
        %v1068 = vunpack.c.h.b16 %v572
        %v1069 = vunpack.c.l.b16 %v573
        %v1070 = vunpack.c.h.b16 %v573
        %v1071 = vunpack.c.l.b16 %v574
        %v1072 = vunpack.c.h.b16 %v574
        %v1073 = vunpack.c.l.b16 %v575
        %v1074 = vunpack.c.h.b16 %v575
        %v1075 = vunpack.c.l.b16 %v576
        %v1076 = vunpack.c.h.b16 %v576
        %v1077 = vunpack.c.l.b16 %v577
        %v1078 = vunpack.c.h.b16 %v577
        %v1079 = vunpack.c.l.b16 %v578
        %v1080 = vunpack.c.h.b16 %v578
        %v1081 = vunpack.c.l.b16 %v579
        %v1082 = vunpack.c.h.b16 %v579
        %v1083 = vunpack.c.l.b16 %v580
        %v1084 = vunpack.c.h.b16 %v580
        %v1085 = vunpack.c.l.b16 %v581
        %v1086 = vunpack.c.h.b16 %v581
        %v1087 = vunpack.c.l.b16 %v582
        %v1088 = vunpack.c.h.b16 %v582
        %v1089 = vunpack.c.l.b16 %v583
        %v1090 = vunpack.c.h.b16 %v583
        %v1091 = vunpack.c.l.b16 %v584
        %v1092 = vunpack.c.h.b16 %v584
        %v1093 = vunpack.c.l.b16 %v585
        %v1094 = vunpack.c.h.b16 %v585
        %v1095 = vunpack.c.l.b16 %v586
        %v1096 = vunpack.c.h.b16 %v586
        %v1097 = vunpack.c.l.b16 %v587
        %v1098 = vunpack.c.h.b16 %v587
        %v1099 = vunpack.c.l.b16 %v588
        %v1100 = vunpack.c.h.b16 %v588
        %v1101 = vunpack.c.l.b16 %v589
        %v1102 = vunpack.c.h.b16 %v589
        %v1103 = vunpack.c.l.b16 %v590
        %v1104 = vunpack.c.h.b16 %v590
        %v1105 = vunpack.c.l.b16 %v591
        %v1106 = vunpack.c.h.b16 %v591
        %v1107 = vunpack.c.l.b16 %v592
        %v1108 = vunpack.c.h.b16 %v592
        %v1109 = vunpack.c.l.b16 %v593
        %v1110 = vunpack.c.h.b16 %v593
        %v1111 = vunpack.c.l.b16 %v594
        %v1112 = vunpack.c.h.b16 %v594
        %v1113 = vunpack.c.l.b16 %v595
        %v1114 = vunpack.c.h.b16 %v595
        %v1115 = vunpack.c.l.b16 %v596
        %v1116 = vunpack.c.h.b16 %v596
        %v1117 = vunpack.c.l.b16 %v597
        %v1118 = vunpack.c.h.b16 %v597
        %v1119 = vunpack.c.l.b16 %v598
        %v1120 = vunpack.c.h.b16 %v598
        %v1121 = vunpack.c.l.b16 %v599
        %v1122 = vunpack.c.h.b16 %v599
        %v1123 = vunpack.c.l.b16 %v600
        %v1124 = vunpack.c.h.b16 %v600
        %v1125 = vunpack.c.l.b16 %v601
        %v1126 = vunpack.c.h.b16 %v601
        %v1127 = vunpack.c.l.b16 %v602
        %v1128 = vunpack.c.h.b16 %v602
        %v1129 = vunpack.c.l.b16 %v603
        %v1130 = vunpack.c.h.b16 %v603
        %v1131 = vunpack.c.l.b16 %v604
        %v1132 = vunpack.c.h.b16 %v604
        %v1133 = vunpack.c.l.b16 %v605
        %v1134 = vunpack.c.h.b16 %v605
        %v1135 = vunpack.c.l.b16 %v606
        %v1136 = vunpack.c.h.b16 %v606
        %v1137 = vunpack.c.l.b16 %v607
        %v1138 = vunpack.c.h.b16 %v607
        %v1139 = vunpack.c.l.b16 %v608
        %v1140 = vunpack.c.h.b16 %v608
        %v1141 = vunpack.c.l.b16 %v609
        %v1142 = vunpack.c.h.b16 %v609
        %v1143 = vunpack.c.l.b16 %v610
        %v1144 = vunpack.c.h.b16 %v610
        %v1145 = vunpack.c.l.b16 %v611
        %v1146 = vunpack.c.h.b16 %v611
        %v1147 = vunpack.c.l.b16 %v612
        %v1148 = vunpack.c.h.b16 %v612
        %v1149 = vunpack.c.l.b16 %v613
        %v1150 = vunpack.c.h.b16 %v613
        %v1151 = vunpack.c.l.b16 %v614
        %v1152 = vunpack.c.h.b16 %v614
        %v1153 = vunpack.c.l.b16 %v615
        %v1154 = vunpack.c.h.b16 %v615
        %v1155 = vunpack.c.l.b16 %v616
        %v1156 = vunpack.c.h.b16 %v616
        %v1157 = vunpack.c.l.b16 %v617
        %v1158 = vunpack.c.h.b16 %v617
        %v1159 = vunpack.c.l.b16 %v618
        %v1160 = vunpack.c.h.b16 %v618
        %v1161 = vunpack.c.l.b16 %v619
        %v1162 = vunpack.c.h.b16 %v619
        %v1163 = vunpack.c.l.b16 %v620
        %v1164 = vunpack.c.h.b16 %v620
        %v1165 = vunpack.c.l.b16 %v621
        %v1166 = vunpack.c.h.b16 %v621
        %v1167 = vunpack.c.l.b16 %v622
        %v1168 = vunpack.c.h.b16 %v622
        %v1169 = vunpack.c.l.b16 %v623
        %v1170 = vunpack.c.h.b16 %v623
        %v1171 = vunpack.c.l.b16 %v624
        %v1172 = vunpack.c.h.b16 %v624
        %v1173 = vunpack.c.l.b16 %v625
        %v1174 = vunpack.c.h.b16 %v625
        %v1175 = vunpack.c.l.b16 %v626
        %v1176 = vunpack.c.h.b16 %v626
        %v1177 = vunpack.c.l.b16 %v627
        %v1178 = vunpack.c.h.b16 %v627
        %v1179 = vunpack.c.l.b16 %v628
        %v1180 = vunpack.c.h.b16 %v628
        %v1181 = vunpack.c.l.b16 %v629
        %v1182 = vunpack.c.h.b16 %v629
        %v1183 = vunpack.c.l.b16 %v630
        %v1184 = vunpack.c.h.b16 %v630
        %v1185 = vunpack.c.l.b16 %v631
        %v1186 = vunpack.c.h.b16 %v631
        %v1187 = vunpack.c.l.b16 %v632
        %v1188 = vunpack.c.h.b16 %v632
        %v1189 = vunpack.c.l.b16 %v633
        %v1190 = vunpack.c.h.b16 %v633
        %v1191 = vunpack.c.l.b16 %v634
        %v1192 = vunpack.c.h.b16 %v634
        %v1193 = vunpack.c.l.b16 %v635
        %v1194 = vunpack.c.h.b16 %v635
        %v1195 = vunpack.c.l.b16 %v636
        %v1196 = vunpack.c.h.b16 %v636
        %v1197 = vunpack.c.l.b16 %v637
        %v1198 = vunpack.c.h.b16 %v637
        %v1199 = vunpack.c.l.b16 %v638
        %v1200 = vunpack.c.h.b16 %v638
        %v1201 = vunpack.c.l.b16 %v639
        %v1202 = vunpack.c.h.b16 %v639
        %v1203 = vunpack.c.l.b16 %v640
        %v1204 = vunpack.c.h.b16 %v640
        %v1205 = vunpack.c.l.b16 %v641
        %v1206 = vunpack.c.h.b16 %v641
        %v1207 = vunpack.c.l.b16 %v642
        %v1208 = vunpack.c.h.b16 %v642
        %v1209 = vpack.c.b16 %v1021, %v1017
        %v1210 = vpack.c.b16 %v1022, %v1018
        %v1211 = vpack.c.b16 %v1023, %v1019
        %v1212 = vpack.c.b16 %v1024, %v1020
        %v1213 = vpack.c.b16 %v1029, %v1025
        %v1214 = vpack.c.b16 %v1030, %v1026
        %v1215 = vpack.c.b16 %v1031, %v1027
        %v1216 = vpack.c.b16 %v1032, %v1028
        %v1217 = vpack.c.b16 %v1037, %v1033
        %v1218 = vpack.c.b16 %v1038, %v1034
        %v1219 = vpack.c.b16 %v1039, %v1035
        %v1220 = vpack.c.b16 %v1040, %v1036
        %v1221 = vpack.c.b16 %v1045, %v1041
        %v1222 = vpack.c.b16 %v1046, %v1042
        %v1223 = vpack.c.b16 %v1047, %v1043
        %v1224 = vpack.c.b16 %v1048, %v1044
        %v1225 = vpack.c.b16 %v1053, %v1049
        %v1226 = vpack.c.b16 %v1054, %v1050
        %v1227 = vpack.c.b16 %v1055, %v1051
        %v1228 = vpack.c.b16 %v1056, %v1052
        %v1229 = vpack.c.b16 %v1061, %v1057
        %v1230 = vpack.c.b16 %v1062, %v1058
        %v1231 = vpack.c.b16 %v1063, %v1059
        %v1232 = vpack.c.b16 %v1064, %v1060
        %v1233 = vpack.c.b16 %v1069, %v1065
        %v1234 = vpack.c.b16 %v1070, %v1066
        %v1235 = vpack.c.b16 %v1071, %v1067
        %v1236 = vpack.c.b16 %v1072, %v1068
        %v1237 = vpack.c.b16 %v1077, %v1073
        %v1238 = vpack.c.b16 %v1078, %v1074
        %v1239 = vpack.c.b16 %v1079, %v1075
        %v1240 = vpack.c.b16 %v1080, %v1076
        %v1241 = vpack.c.b16 %v1085, %v1081
        %v1242 = vpack.c.b16 %v1086, %v1082
        %v1243 = vpack.c.b16 %v1087, %v1083
        %v1244 = vpack.c.b16 %v1088, %v1084
        %v1245 = vpack.c.b16 %v1093, %v1089
        %v1246 = vpack.c.b16 %v1094, %v1090
        %v1247 = vpack.c.b16 %v1095, %v1091
        %v1248 = vpack.c.b16 %v1096, %v1092
        %v1249 = vpack.c.b16 %v1101, %v1097
        %v1250 = vpack.c.b16 %v1102, %v1098
        %v1251 = vpack.c.b16 %v1103, %v1099
        %v1252 = vpack.c.b16 %v1104, %v1100
        %v1253 = vpack.c.b16 %v1109, %v1105
        %v1254 = vpack.c.b16 %v1110, %v1106
        %v1255 = vpack.c.b16 %v1111, %v1107
        %v1256 = vpack.c.b16 %v1112, %v1108
        %v1257 = vpack.c.b16 %v1117, %v1113
        %v1258 = vpack.c.b16 %v1118, %v1114
        %v1259 = vpack.c.b16 %v1119, %v1115
        %v1260 = vpack.c.b16 %v1120, %v1116
        %v1261 = vpack.c.b16 %v1125, %v1121
        %v1262 = vpack.c.b16 %v1126, %v1122
        %v1263 = vpack.c.b16 %v1127, %v1123
        %v1264 = vpack.c.b16 %v1128, %v1124
        %v1265 = vpack.c.b16 %v1133, %v1129
        %v1266 = vpack.c.b16 %v1134, %v1130
        %v1267 = vpack.c.b16 %v1135, %v1131
        %v1268 = vpack.c.b16 %v1136, %v1132
        %v1269 = vpack.c.b16 %v1141, %v1137
        %v1270 = vpack.c.b16 %v1142, %v1138
        %v1271 = vpack.c.b16 %v1143, %v1139
        %v1272 = vpack.c.b16 %v1144, %v1140
        %v1273 = vpack.c.b16 %v1149, %v1145
        %v1274 = vpack.c.b16 %v1150, %v1146
        %v1275 = vpack.c.b16 %v1151, %v1147
        %v1276 = vpack.c.b16 %v1152, %v1148
        %v1277 = vpack.c.b16 %v1157, %v1153
        %v1278 = vpack.c.b16 %v1158, %v1154
        %v1279 = vpack.c.b16 %v1159, %v1155
        %v1280 = vpack.c.b16 %v1160, %v1156
        %v1281 = vpack.c.b16 %v1165, %v1161
        %v1282 = vpack.c.b16 %v1166, %v1162
        %v1283 = vpack.c.b16 %v1167, %v1163
        %v1284 = vpack.c.b16 %v1168, %v1164
        %v1285 = vpack.c.b16 %v1173, %v1169
        %v1286 = vpack.c.b16 %v1174, %v1170
        %v1287 = vpack.c.b16 %v1175, %v1171
        %v1288 = vpack.c.b16 %v1176, %v1172
        %v1289 = vpack.c.b16 %v1181, %v1177
        %v1290 = vpack.c.b16 %v1182, %v1178
        %v1291 = vpack.c.b16 %v1183, %v1179
        %v1292 = vpack.c.b16 %v1184, %v1180
        %v1293 = vpack.c.b16 %v1189, %v1185
        %v1294 = vpack.c.b16 %v1190, %v1186
        %v1295 = vpack.c.b16 %v1191, %v1187
        %v1296 = vpack.c.b16 %v1192, %v1188
        %v1297 = vpack.c.b16 %v1197, %v1193
        %v1298 = vpack.c.b16 %v1198, %v1194
        %v1299 = vpack.c.b16 %v1199, %v1195
        %v1300 = vpack.c.b16 %v1200, %v1196
        %v1301 = vpack.c.b16 %v1205, %v1201
        %v1302 = vpack.c.b16 %v1206, %v1202
        %v1303 = vpack.c.b16 %v1207, %v1203
        %v1304 = vpack.c.b16 %v1208, %v1204
        %1401 = vmatprep.subr.bf16.mxu0 %v1210
        %1402 = vmatpush1.bf16.msra.mxu0 %v1209
        %1403 = vmatprep.subr.bf16.mxu0 %v1214
        %1404 = vmatpush1.bf16.msra.mxu0 %v1213
        %1405 = vmatprep.subr.bf16.mxu0 %v1218
        %1406 = vmatpush1.bf16.msra.mxu0 %v1217
        %1407 = vmatprep.subr.bf16.mxu0 %v1222
        %1408 = vmatpush1.bf16.msra.mxu0 %v1221
        %1409 = vmatprep.subr.bf16.mxu0 %v1226
        %1410 = vmatpush1.bf16.msra.mxu0 %v1225
        %1411 = vmatprep.subr.bf16.mxu0 %v1230
        %1412 = vmatpush1.bf16.msra.mxu0 %v1229
        %1413 = vmatprep.subr.bf16.mxu0 %v1234
        %1414 = vmatpush1.bf16.msra.mxu0 %v1233
        %1415 = vmatprep.subr.bf16.mxu0 %v1238
        %1416 = vmatpush1.bf16.msra.mxu0 %v1237
        %1417 = vmatprep.subr.bf16.mxu0 %v1242
        %1418 = vmatpush1.bf16.msra.mxu0 %v1241
        %1419 = vmatprep.subr.bf16.mxu0 %v1246
        %1420 = vmatpush1.bf16.msra.mxu0 %v1245
        %1421 = vmatprep.subr.bf16.mxu0 %v1250
        %1422 = vmatpush1.bf16.msra.mxu0 %v1249
        %1423 = vmatprep.subr.bf16.mxu0 %v1254
        %1424 = vmatpush1.bf16.msra.mxu0 %v1253
        %1425 = vmatprep.subr.bf16.mxu0 %v1258
        %1426 = vmatpush1.bf16.msra.mxu0 %v1257
        %1427 = vmatprep.subr.bf16.mxu0 %v1262
        %1428 = vmatpush1.bf16.msra.mxu0 %v1261
        %1429 = vmatprep.subr.bf16.mxu0 %v1266
        %1430 = vmatpush1.bf16.msra.mxu0 %v1265
        %1431 = vmatprep.subr.bf16.mxu0 %v1270
        %1432 = vmatpush1.bf16.msra.mxu0 %v1269
        %1433 = vmatprep.mubr.bf16.mxu0 %v826
        %1434 = vmatmul.mubr.bf16.gmra.mrb[0].mxu0 %v825
        %v1435 = vpop.f32.mrb[0].mxu0
        %v1436 = vadd.f32 %v648, %v1435
        %v1437 = vpop.f32.mrb[0].mxu0
        %v1438 = vadd.f32 %v652, %v1437
        %v1439 = vpop.f32.mrb[0].mxu0
        %v1440 = vadd.f32 %v648, %v1439
        %v1441 = vpop.f32.mrb[0].mxu0
        %v1442 = vadd.f32 %v652, %v1441
        %1443 = vmatprep.mubr.bf16.mxu0 %v829
        %1444 = vmatmul.mubr.bf16.gmra.mrb[0].mxu0 %v828
        %v1445 = vpop.f32.mrb[0].mxu0
        %v1446 = vadd.f32 %v648, %v1445
        %v1447 = vpop.f32.mrb[0].mxu0
        %v1448 = vadd.f32 %v652, %v1447
        %v1449 = vpop.f32.mrb[0].mxu0
        %v1450 = vadd.f32 %v648, %v1449
        %v1451 = vpop.f32.mrb[0].mxu0
        %v1452 = vadd.f32 %v652, %v1451
        %1453 = vmatprep.mubr.bf16.mxu0 %v832
        %1454 = vmatmul.mubr.bf16.gmra.mrb[0].mxu0 %v831
        %v1455 = vpop.f32.mrb[0].mxu0
        %v1456 = vadd.f32 %v648, %v1455
        %v1457 = vpop.f32.mrb[0].mxu0
        %v1458 = vadd.f32 %v652, %v1457
        %v1459 = vpop.f32.mrb[0].mxu0
        %v1460 = vadd.f32 %v648, %v1459
        %v1461 = vpop.f32.mrb[0].mxu0
        %v1462 = vadd.f32 %v652, %v1461
        %1463 = vmatprep.mubr.bf16.mxu0 %v835
        %1464 = vmatmul.mubr.bf16.gmra.mrb[0].mxu0 %v834
        %v1465 = vpop.f32.mrb[0].mxu0
        %v1466 = vadd.f32 %v648, %v1465
        %v1467 = vpop.f32.mrb[0].mxu0
        %v1468 = vadd.f32 %v652, %v1467
        %v1469 = vpop.f32.mrb[0].mxu0
        %v1470 = vadd.f32 %v648, %v1469
        %v1471 = vpop.f32.mrb[0].mxu0
        %v1472 = vadd.f32 %v652, %v1471
        %1473 = vmatprep.mubr.bf16.mxu0 %v838
        %1474 = vmatmul.mubr.bf16.gmra.mrb[0].mxu0 %v837
        %v1475 = vpop.f32.mrb[0].mxu0
        %v1476 = vadd.f32 %v648, %v1475
        %v1477 = vpop.f32.mrb[0].mxu0
        %v1478 = vadd.f32 %v652, %v1477
        %v1479 = vpop.f32.mrb[0].mxu0
        %v1480 = vadd.f32 %v648, %v1479
        %v1481 = vpop.f32.mrb[0].mxu0
        %v1482 = vadd.f32 %v652, %v1481
        %1483 = vmatprep.mubr.bf16.mxu0 %v841
        %1484 = vmatmul.mubr.bf16.gmra.mrb[0].mxu0 %v840
        %v1485 = vpop.f32.mrb[0].mxu0
        %v1486 = vadd.f32 %v648, %v1485
        %v1487 = vpop.f32.mrb[0].mxu0
        %v1488 = vadd.f32 %v652, %v1487
        %v1489 = vpop.f32.mrb[0].mxu0
        %v1490 = vadd.f32 %v648, %v1489
        %v1491 = vpop.f32.mrb[0].mxu0
        %v1492 = vadd.f32 %v652, %v1491
        %1493 = vmatprep.mubr.bf16.mxu0 %v844
        %1494 = vmatmul.mubr.bf16.gmra.mrb[0].mxu0 %v843
        %v1495 = vpop.f32.mrb[0].mxu0
        %v1496 = vadd.f32 %v648, %v1495
        %v1497 = vpop.f32.mrb[0].mxu0
        %v1498 = vadd.f32 %v652, %v1497
        %v1499 = vpop.f32.mrb[0].mxu0
        %v1500 = vadd.f32 %v648, %v1499
        %v1501 = vpop.f32.mrb[0].mxu0
        %v1502 = vadd.f32 %v652, %v1501
        %1503 = vmatprep.mubr.bf16.mxu0 %v847
        %1504 = vmatmul.mubr.bf16.gmra.mrb[0].mxu0 %v846
        %v1505 = vpop.f32.mrb[0].mxu0
        %v1506 = vadd.f32 %v648, %v1505
        %v1507 = vpop.f32.mrb[0].mxu0
        %v1508 = vadd.f32 %v652, %v1507
        %v1509 = vpop.f32.mrb[0].mxu0
        %v1510 = vadd.f32 %v648, %v1509
        %v1511 = vpop.f32.mrb[0].mxu0
        %v1512 = vadd.f32 %v652, %v1511
        %1513 = vmatprep.mubr.bf16.mxu0 %v850
        %1514 = vmatmul.mubr.bf16.gmra.mrb[0].mxu0 %v849
        %v1515 = vpop.f32.mrb[0].mxu0
        %v1516 = vadd.f32 %v648, %v1515
        %v1517 = vpop.f32.mrb[0].mxu0
        %v1518 = vadd.f32 %v652, %v1517
        %v1519 = vpop.f32.mrb[0].mxu0
        %v1520 = vadd.f32 %v648, %v1519
        %v1521 = vpop.f32.mrb[0].mxu0
        %v1522 = vadd.f32 %v652, %v1521
        %1523 = vmatprep.mubr.bf16.mxu0 %v853
        %1524 = vmatmul.mubr.bf16.gmra.mrb[0].mxu0 %v852
        %v1525 = vpop.f32.mrb[0].mxu0
        %v1526 = vadd.f32 %v648, %v1525
        %v1527 = vpop.f32.mrb[0].mxu0
        %v1528 = vadd.f32 %v652, %v1527
        %v1529 = vpop.f32.mrb[0].mxu0
        %v1530 = vadd.f32 %v648, %v1529
        %v1531 = vpop.f32.mrb[0].mxu0
        %v1532 = vadd.f32 %v652, %v1531
        %1533 = vmatprep.mubr.bf16.mxu0 %v856
        %1534 = vmatmul.mubr.bf16.gmra.mrb[0].mxu0 %v855
        %v1535 = vpop.f32.mrb[0].mxu0
        %v1536 = vadd.f32 %v648, %v1535
        %v1537 = vpop.f32.mrb[0].mxu0
        %v1538 = vadd.f32 %v652, %v1537
        %v1539 = vpop.f32.mrb[0].mxu0
        %v1540 = vadd.f32 %v648, %v1539
        %v1541 = vpop.f32.mrb[0].mxu0
        %v1542 = vadd.f32 %v652, %v1541
        %1543 = vmatprep.mubr.bf16.mxu0 %v859
        %1544 = vmatmul.mubr.bf16.gmra.mrb[0].mxu0 %v858
        %v1545 = vpop.f32.mrb[0].mxu0
        %v1546 = vadd.f32 %v648, %v1545
        %v1547 = vpop.f32.mrb[0].mxu0
        %v1548 = vadd.f32 %v652, %v1547
        %v1549 = vpop.f32.mrb[0].mxu0
        %v1550 = vadd.f32 %v648, %v1549
        %v1551 = vpop.f32.mrb[0].mxu0
        %v1552 = vadd.f32 %v652, %v1551
        %1553 = vmatprep.mubr.bf16.mxu0 %v862
        %1554 = vmatmul.mubr.bf16.gmra.mrb[0].mxu0 %v861
        %v1555 = vpop.f32.mrb[0].mxu0
        %v1556 = vadd.f32 %v648, %v1555
        %v1557 = vpop.f32.mrb[0].mxu0
        %v1558 = vadd.f32 %v652, %v1557
        %v1559 = vpop.f32.mrb[0].mxu0
        %v1560 = vadd.f32 %v648, %v1559
        %v1561 = vpop.f32.mrb[0].mxu0
        %v1562 = vadd.f32 %v652, %v1561
        %1563 = vmatprep.mubr.bf16.mxu0 %v865
        %1564 = vmatmul.mubr.bf16.gmra.mrb[0].mxu0 %v864
        %v1565 = vpop.f32.mrb[0].mxu0
        %v1566 = vadd.f32 %v648, %v1565
        %v1567 = vpop.f32.mrb[0].mxu0
        %v1568 = vadd.f32 %v652, %v1567
        %v1569 = vpop.f32.mrb[0].mxu0
        %v1570 = vadd.f32 %v648, %v1569
        %v1571 = vpop.f32.mrb[0].mxu0
        %v1572 = vadd.f32 %v652, %v1571
        %1573 = vmatprep.mubr.bf16.mxu0 %v868
        %1574 = vmatmul.mubr.bf16.gmra.mrb[0].mxu0 %v867
        %v1575 = vpop.f32.mrb[0].mxu0
        %v1576 = vadd.f32 %v648, %v1575
        %v1577 = vpop.f32.mrb[0].mxu0
        %v1578 = vadd.f32 %v652, %v1577
        %v1579 = vpop.f32.mrb[0].mxu0
        %v1580 = vadd.f32 %v648, %v1579
        %v1581 = vpop.f32.mrb[0].mxu0
        %v1582 = vadd.f32 %v652, %v1581
        %1583 = vmatprep.mubr.bf16.mxu0 %v871
        %1584 = vmatmul.mubr.bf16.gmra.mrb[0].mxu0 %v870
        %v1585 = vpop.f32.mrb[0].mxu0
        %v1586 = vadd.f32 %v648, %v1585
        %v1587 = vpop.f32.mrb[0].mxu0
        %v1588 = vadd.f32 %v652, %v1587
        %v1589 = vpop.f32.mrb[0].mxu0
        %v1590 = vadd.f32 %v648, %v1589
        %v1591 = vpop.f32.mrb[0].mxu0
        %v1592 = vadd.f32 %v652, %v1591
        %1593 = vdwg.mxu0
        %1594 = vmatprep.subr.bf16.mxu0 %v1274
        %1595 = vmatpush1.bf16.msra.mxu0 %v1273
        %1596 = vmatprep.subr.bf16.mxu0 %v1278
        %1597 = vmatpush1.bf16.msra.mxu0 %v1277
        %1598 = vmatprep.subr.bf16.mxu0 %v1282
        %1599 = vmatpush1.bf16.msra.mxu0 %v1281
        %1600 = vmatprep.subr.bf16.mxu0 %v1286
        %1601 = vmatpush1.bf16.msra.mxu0 %v1285
        %1602 = vmatprep.subr.bf16.mxu0 %v1290
        %1603 = vmatpush1.bf16.msra.mxu0 %v1289
        %1604 = vmatprep.subr.bf16.mxu0 %v1294
        %1605 = vmatpush1.bf16.msra.mxu0 %v1293
        %1606 = vmatprep.subr.bf16.mxu0 %v1298
        %1607 = vmatpush1.bf16.msra.mxu0 %v1297
        %1608 = vmatprep.subr.bf16.mxu0 %v1302
        %1609 = vmatpush1.bf16.msra.mxu0 %v1301
        %1610 = vmatprep.subr.bf16.mxu0 0
        %1611 = vmatpush1.bf16.msra.mxu0 0
        %1612 = vmatprep.subr.bf16.mxu0 0
        %1613 = vmatpush1.bf16.msra.mxu0 0
        %1614 = vmatprep.subr.bf16.mxu0 0
        %1615 = vmatpush1.bf16.msra.mxu0 0
        %1616 = vmatprep.subr.bf16.mxu0 0
        %1617 = vmatpush1.bf16.msra.mxu0 0
        %1618 = vmatprep.subr.bf16.mxu0 0
        %1619 = vmatpush1.bf16.msra.mxu0 0
        %1620 = vmatprep.subr.bf16.mxu0 0
        %1621 = vmatpush1.bf16.msra.mxu0 0
        %1622 = vmatprep.subr.bf16.mxu0 0
        %1623 = vmatpush1.bf16.msra.mxu0 0
        %1624 = vmatprep.subr.bf16.mxu0 0
        %1625 = vmatpush1.bf16.msra.mxu0 0
        %1626 = vmatprep.mubr.bf16.mxu0 0
        %1627 = vmatmul.mubr.bf16.gmra.mrb[0].mxu0 %v827
        %v1628 = vpop.f32.mrb[0].mxu0
        %v1629 = vadd.f32 %v1436, %v1628
        %v1630 = vpop.f32.mrb[0].mxu0
        %v1631 = vadd.f32 %v1438, %v1630
        %v1632 = vpop.f32.mrb[0].mxu0
        %v1633 = vadd.f32 %v1440, %v1632
        %v1634 = vpop.f32.mrb[0].mxu0
        %v1635 = vadd.f32 %v1442, %v1634
        %1636 = vmatprep.mubr.bf16.mxu0 0
        %1637 = vmatmul.mubr.bf16.gmra.mrb[0].mxu0 %v830
        %v1638 = vpop.f32.mrb[0].mxu0
        %v1639 = vadd.f32 %v1446, %v1638
        %v1640 = vpop.f32.mrb[0].mxu0
        %v1641 = vadd.f32 %v1448, %v1640
        %v1642 = vpop.f32.mrb[0].mxu0
        %v1643 = vadd.f32 %v1450, %v1642
        %v1644 = vpop.f32.mrb[0].mxu0
        %v1645 = vadd.f32 %v1452, %v1644
        %1646 = vmatprep.mubr.bf16.mxu0 0
        %1647 = vmatmul.mubr.bf16.gmra.mrb[0].mxu0 %v833
        %v1648 = vpop.f32.mrb[0].mxu0
        %v1649 = vadd.f32 %v1456, %v1648
        %v1650 = vpop.f32.mrb[0].mxu0
        %v1651 = vadd.f32 %v1458, %v1650
        %v1652 = vpop.f32.mrb[0].mxu0
        %v1653 = vadd.f32 %v1460, %v1652
        %v1654 = vpop.f32.mrb[0].mxu0
        %v1655 = vadd.f32 %v1462, %v1654
        %1656 = vmatprep.mubr.bf16.mxu0 0
        %1657 = vmatmul.mubr.bf16.gmra.mrb[0].mxu0 %v836
        %v1658 = vpop.f32.mrb[0].mxu0
        %v1659 = vadd.f32 %v1466, %v1658
        %v1660 = vpop.f32.mrb[0].mxu0
        %v1661 = vadd.f32 %v1468, %v1660
        %v1662 = vpop.f32.mrb[0].mxu0
        %v1663 = vadd.f32 %v1470, %v1662
        %v1664 = vpop.f32.mrb[0].mxu0
        %v1665 = vadd.f32 %v1472, %v1664
        %1666 = vmatprep.mubr.bf16.mxu0 0
        %1667 = vmatmul.mubr.bf16.gmra.mrb[0].mxu0 %v839
        %v1668 = vpop.f32.mrb[0].mxu0
        %v1669 = vadd.f32 %v1476, %v1668
        %v1670 = vpop.f32.mrb[0].mxu0
        %v1671 = vadd.f32 %v1478, %v1670
        %v1672 = vpop.f32.mrb[0].mxu0
        %v1673 = vadd.f32 %v1480, %v1672
        %v1674 = vpop.f32.mrb[0].mxu0
        %v1675 = vadd.f32 %v1482, %v1674
        %1676 = vmatprep.mubr.bf16.mxu0 0
        %1677 = vmatmul.mubr.bf16.gmra.mrb[0].mxu0 %v842
        %v1678 = vpop.f32.mrb[0].mxu0
        %v1679 = vadd.f32 %v1486, %v1678
        %v1680 = vpop.f32.mrb[0].mxu0
        %v1681 = vadd.f32 %v1488, %v1680
        %v1682 = vpop.f32.mrb[0].mxu0
        %v1683 = vadd.f32 %v1490, %v1682
        %v1684 = vpop.f32.mrb[0].mxu0
        %v1685 = vadd.f32 %v1492, %v1684
        %1686 = vmatprep.mubr.bf16.mxu0 0
        %1687 = vmatmul.mubr.bf16.gmra.mrb[0].mxu0 %v845
        %v1688 = vpop.f32.mrb[0].mxu0
        %v1689 = vadd.f32 %v1496, %v1688
        %v1690 = vpop.f32.mrb[0].mxu0
        %v1691 = vadd.f32 %v1498, %v1690
        %v1692 = vpop.f32.mrb[0].mxu0
        %v1693 = vadd.f32 %v1500, %v1692
        %v1694 = vpop.f32.mrb[0].mxu0
        %v1695 = vadd.f32 %v1502, %v1694
        %1696 = vmatprep.mubr.bf16.mxu0 0
        %1697 = vmatmul.mubr.bf16.gmra.mrb[0].mxu0 %v848
        %v1698 = vpop.f32.mrb[0].mxu0
        %v1699 = vadd.f32 %v1506, %v1698
        %v1700 = vpop.f32.mrb[0].mxu0
        %v1701 = vadd.f32 %v1508, %v1700
        %v1702 = vpop.f32.mrb[0].mxu0
        %v1703 = vadd.f32 %v1510, %v1702
        %v1704 = vpop.f32.mrb[0].mxu0
        %v1705 = vadd.f32 %v1512, %v1704
        %1706 = vmatprep.mubr.bf16.mxu0 0
        %1707 = vmatmul.mubr.bf16.gmra.mrb[0].mxu0 %v851
        %v1708 = vpop.f32.mrb[0].mxu0
        %v1709 = vadd.f32 %v1516, %v1708
        %v1710 = vpop.f32.mrb[0].mxu0
        %v1711 = vadd.f32 %v1518, %v1710
        %v1712 = vpop.f32.mrb[0].mxu0
        %v1713 = vadd.f32 %v1520, %v1712
        %v1714 = vpop.f32.mrb[0].mxu0
        %v1715 = vadd.f32 %v1522, %v1714
        %1716 = vmatprep.mubr.bf16.mxu0 0
        %1717 = vmatmul.mubr.bf16.gmra.mrb[0].mxu0 %v854
        %v1718 = vpop.f32.mrb[0].mxu0
        %v1719 = vadd.f32 %v1526, %v1718
        %v1720 = vpop.f32.mrb[0].mxu0
        %v1721 = vadd.f32 %v1528, %v1720
        %v1722 = vpop.f32.mrb[0].mxu0
        %v1723 = vadd.f32 %v1530, %v1722
        %v1724 = vpop.f32.mrb[0].mxu0
        %v1725 = vadd.f32 %v1532, %v1724
        %1726 = vmatprep.mubr.bf16.mxu0 0
        %1727 = vmatmul.mubr.bf16.gmra.mrb[0].mxu0 %v857
        %v1728 = vpop.f32.mrb[0].mxu0
        %v1729 = vadd.f32 %v1536, %v1728
        %v1730 = vpop.f32.mrb[0].mxu0
        %v1731 = vadd.f32 %v1538, %v1730
        %v1732 = vpop.f32.mrb[0].mxu0
        %v1733 = vadd.f32 %v1540, %v1732
        %v1734 = vpop.f32.mrb[0].mxu0
        %v1735 = vadd.f32 %v1542, %v1734
        %1736 = vmatprep.mubr.bf16.mxu0 0
        %1737 = vmatmul.mubr.bf16.gmra.mrb[0].mxu0 %v860
        %v1738 = vpop.f32.mrb[0].mxu0
        %v1739 = vadd.f32 %v1546, %v1738
        %v1740 = vpop.f32.mrb[0].mxu0
        %v1741 = vadd.f32 %v1548, %v1740
        %v1742 = vpop.f32.mrb[0].mxu0
        %v1743 = vadd.f32 %v1550, %v1742
        %v1744 = vpop.f32.mrb[0].mxu0
        %v1745 = vadd.f32 %v1552, %v1744
        %1746 = vmatprep.mubr.bf16.mxu0 0
        %1747 = vmatmul.mubr.bf16.gmra.mrb[0].mxu0 %v863
        %v1748 = vpop.f32.mrb[0].mxu0
        %v1749 = vadd.f32 %v1556, %v1748
        %v1750 = vpop.f32.mrb[0].mxu0
        %v1751 = vadd.f32 %v1558, %v1750
        %v1752 = vpop.f32.mrb[0].mxu0
        %v1753 = vadd.f32 %v1560, %v1752
        %v1754 = vpop.f32.mrb[0].mxu0
        %v1755 = vadd.f32 %v1562, %v1754
        %1756 = vmatprep.mubr.bf16.mxu0 0
        %1757 = vmatmul.mubr.bf16.gmra.mrb[0].mxu0 %v866
        %v1758 = vpop.f32.mrb[0].mxu0
        %v1759 = vadd.f32 %v1566, %v1758
        %v1760 = vpop.f32.mrb[0].mxu0
        %v1761 = vadd.f32 %v1568, %v1760
        %v1762 = vpop.f32.mrb[0].mxu0
        %v1763 = vadd.f32 %v1570, %v1762
        %v1764 = vpop.f32.mrb[0].mxu0
        %v1765 = vadd.f32 %v1572, %v1764
        %1766 = vmatprep.mubr.bf16.mxu0 0
        %1767 = vmatmul.mubr.bf16.gmra.mrb[0].mxu0 %v869
        %v1768 = vpop.f32.mrb[0].mxu0
        %v1769 = vadd.f32 %v1576, %v1768
        %v1770 = vpop.f32.mrb[0].mxu0
        %v1771 = vadd.f32 %v1578, %v1770
        %v1772 = vpop.f32.mrb[0].mxu0
        %v1773 = vadd.f32 %v1580, %v1772
        %v1774 = vpop.f32.mrb[0].mxu0
        %v1775 = vadd.f32 %v1582, %v1774
        %1776 = vmatprep.mubr.bf16.mxu0 0
        %1777 = vmatmul.mubr.bf16.gmra.mrb[0].mxu0 %v872
        %v1778 = vpop.f32.mrb[0].mxu0
        %v1779 = vadd.f32 %v1586, %v1778
        %v1780 = vpop.f32.mrb[0].mxu0
        %v1781 = vadd.f32 %v1588, %v1780
        %v1782 = vpop.f32.mrb[0].mxu0
        %v1783 = vadd.f32 %v1590, %v1782
        %v1784 = vpop.f32.mrb[0].mxu0
        %v1785 = vadd.f32 %v1592, %v1784
        %1786 = vdwg.mxu0
        %1787 = vmatprep.subr.bf16.mxu0 %v1212
        %1788 = vmatpush1.bf16.msra.mxu0 %v1211
        %1789 = vmatprep.subr.bf16.mxu0 %v1216
        %1790 = vmatpush1.bf16.msra.mxu0 %v1215
        %1791 = vmatprep.subr.bf16.mxu0 %v1220
        %1792 = vmatpush1.bf16.msra.mxu0 %v1219
        %1793 = vmatprep.subr.bf16.mxu0 %v1224
        %1794 = vmatpush1.bf16.msra.mxu0 %v1223
        %1795 = vmatprep.subr.bf16.mxu0 %v1228
        %1796 = vmatpush1.bf16.msra.mxu0 %v1227
        %1797 = vmatprep.subr.bf16.mxu0 %v1232
        %1798 = vmatpush1.bf16.msra.mxu0 %v1231
        %1799 = vmatprep.subr.bf16.mxu0 %v1236
        %1800 = vmatpush1.bf16.msra.mxu0 %v1235
        %1801 = vmatprep.subr.bf16.mxu0 %v1240
        %1802 = vmatpush1.bf16.msra.mxu0 %v1239
        %1803 = vmatprep.subr.bf16.mxu0 %v1244
        %1804 = vmatpush1.bf16.msra.mxu0 %v1243
        %1805 = vmatprep.subr.bf16.mxu0 %v1248
        %1806 = vmatpush1.bf16.msra.mxu0 %v1247
        %1807 = vmatprep.subr.bf16.mxu0 %v1252
        %1808 = vmatpush1.bf16.msra.mxu0 %v1251
        %1809 = vmatprep.subr.bf16.mxu0 %v1256
        %1810 = vmatpush1.bf16.msra.mxu0 %v1255
        %1811 = vmatprep.subr.bf16.mxu0 %v1260
        %1812 = vmatpush1.bf16.msra.mxu0 %v1259
        %1813 = vmatprep.subr.bf16.mxu0 %v1264
        %1814 = vmatpush1.bf16.msra.mxu0 %v1263
        %1815 = vmatprep.subr.bf16.mxu0 %v1268
        %1816 = vmatpush1.bf16.msra.mxu0 %v1267
        %1817 = vmatprep.subr.bf16.mxu0 %v1272
        %1818 = vmatpush1.bf16.msra.mxu0 %v1271
        %1819 = vmatprep.mubr.bf16.mxu0 %v826
        %1820 = vmatmul.mubr.bf16.gmra.mrb[0].mxu0 %v825
        %v1821 = vpop.f32.mrb[0].mxu0
        %v1822 = vadd.f32 %v656, %v1821
        %v1823 = vpop.f32.mrb[0].mxu0
        %v1824 = vadd.f32 %v660, %v1823
        %v1825 = vpop.f32.mrb[0].mxu0
        %v1826 = vadd.f32 %v656, %v1825
        %v1827 = vpop.f32.mrb[0].mxu0
        %v1828 = vadd.f32 %v660, %v1827
        %1829 = vmatprep.mubr.bf16.mxu0 %v829
        %1830 = vmatmul.mubr.bf16.gmra.mrb[0].mxu0 %v828
        %v1831 = vpop.f32.mrb[0].mxu0
        %v1832 = vadd.f32 %v656, %v1831
        %v1833 = vpop.f32.mrb[0].mxu0
        %v1834 = vadd.f32 %v660, %v1833
        %v1835 = vpop.f32.mrb[0].mxu0
        %v1836 = vadd.f32 %v656, %v1835
        %v1837 = vpop.f32.mrb[0].mxu0
        %v1838 = vadd.f32 %v660, %v1837
        %1839 = vmatprep.mubr.bf16.mxu0 %v832
        %1840 = vmatmul.mubr.bf16.gmra.mrb[0].mxu0 %v831
        %v1841 = vpop.f32.mrb[0].mxu0
        %v1842 = vadd.f32 %v656, %v1841
        %v1843 = vpop.f32.mrb[0].mxu0
        %v1844 = vadd.f32 %v660, %v1843
        %v1845 = vpop.f32.mrb[0].mxu0
        %v1846 = vadd.f32 %v656, %v1845
        %v1847 = vpop.f32.mrb[0].mxu0
        %v1848 = vadd.f32 %v660, %v1847
        %1849 = vmatprep.mubr.bf16.mxu0 %v835
        %1850 = vmatmul.mubr.bf16.gmra.mrb[0].mxu0 %v834
        %v1851 = vpop.f32.mrb[0].mxu0
        %v1852 = vadd.f32 %v656, %v1851
        %v1853 = vpop.f32.mrb[0].mxu0
        %v1854 = vadd.f32 %v660, %v1853
        %v1855 = vpop.f32.mrb[0].mxu0
        %v1856 = vadd.f32 %v656, %v1855
        %v1857 = vpop.f32.mrb[0].mxu0
        %v1858 = vadd.f32 %v660, %v1857
        %1859 = vmatprep.mubr.bf16.mxu0 %v838
        %1860 = vmatmul.mubr.bf16.gmra.mrb[0].mxu0 %v837
        %v1861 = vpop.f32.mrb[0].mxu0
        %v1862 = vadd.f32 %v656, %v1861
        %v1863 = vpop.f32.mrb[0].mxu0
        %v1864 = vadd.f32 %v660, %v1863
        %v1865 = vpop.f32.mrb[0].mxu0
        %v1866 = vadd.f32 %v656, %v1865
        %v1867 = vpop.f32.mrb[0].mxu0
        %v1868 = vadd.f32 %v660, %v1867
        %1869 = vmatprep.mubr.bf16.mxu0 %v841
        %1870 = vmatmul.mubr.bf16.gmra.mrb[0].mxu0 %v840
        %v1871 = vpop.f32.mrb[0].mxu0
        %v1872 = vadd.f32 %v656, %v1871
        %v1873 = vpop.f32.mrb[0].mxu0
        %v1874 = vadd.f32 %v660, %v1873
        %v1875 = vpop.f32.mrb[0].mxu0
        %v1876 = vadd.f32 %v656, %v1875
        %v1877 = vpop.f32.mrb[0].mxu0
        %v1878 = vadd.f32 %v660, %v1877
        %1879 = vmatprep.mubr.bf16.mxu0 %v844
        %1880 = vmatmul.mubr.bf16.gmra.mrb[0].mxu0 %v843
        %v1881 = vpop.f32.mrb[0].mxu0
        %v1882 = vadd.f32 %v656, %v1881
        %v1883 = vpop.f32.mrb[0].mxu0
        %v1884 = vadd.f32 %v660, %v1883
        %v1885 = vpop.f32.mrb[0].mxu0
        %v1886 = vadd.f32 %v656, %v1885
        %v1887 = vpop.f32.mrb[0].mxu0
        %v1888 = vadd.f32 %v660, %v1887
        %1889 = vmatprep.mubr.bf16.mxu0 %v847
        %1890 = vmatmul.mubr.bf16.gmra.mrb[0].mxu0 %v846
        %v1891 = vpop.f32.mrb[0].mxu0
        %v1892 = vadd.f32 %v656, %v1891
        %v1893 = vpop.f32.mrb[0].mxu0
        %v1894 = vadd.f32 %v660, %v1893
        %v1895 = vpop.f32.mrb[0].mxu0
        %v1896 = vadd.f32 %v656, %v1895
        %v1897 = vpop.f32.mrb[0].mxu0
        %v1898 = vadd.f32 %v660, %v1897
        %1899 = vmatprep.mubr.bf16.mxu0 %v850
        %1900 = vmatmul.mubr.bf16.gmra.mrb[0].mxu0 %v849
        %v1901 = vpop.f32.mrb[0].mxu0
        %v1902 = vadd.f32 %v656, %v1901
        %v1903 = vpop.f32.mrb[0].mxu0
        %v1904 = vadd.f32 %v660, %v1903
        %v1905 = vpop.f32.mrb[0].mxu0
        %v1906 = vadd.f32 %v656, %v1905
        %v1907 = vpop.f32.mrb[0].mxu0
        %v1908 = vadd.f32 %v660, %v1907
        %1909 = vmatprep.mubr.bf16.mxu0 %v853
        %1910 = vmatmul.mubr.bf16.gmra.mrb[0].mxu0 %v852
        %v1911 = vpop.f32.mrb[0].mxu0
        %v1912 = vadd.f32 %v656, %v1911
        %v1913 = vpop.f32.mrb[0].mxu0
        %v1914 = vadd.f32 %v660, %v1913
        %v1915 = vpop.f32.mrb[0].mxu0
        %v1916 = vadd.f32 %v656, %v1915
        %v1917 = vpop.f32.mrb[0].mxu0
        %v1918 = vadd.f32 %v660, %v1917
        %1919 = vmatprep.mubr.bf16.mxu0 %v856
        %1920 = vmatmul.mubr.bf16.gmra.mrb[0].mxu0 %v855
        %v1921 = vpop.f32.mrb[0].mxu0
        %v1922 = vadd.f32 %v656, %v1921
        %v1923 = vpop.f32.mrb[0].mxu0
        %v1924 = vadd.f32 %v660, %v1923
        %v1925 = vpop.f32.mrb[0].mxu0
        %v1926 = vadd.f32 %v656, %v1925
        %v1927 = vpop.f32.mrb[0].mxu0
        %v1928 = vadd.f32 %v660, %v1927
        %1929 = vmatprep.mubr.bf16.mxu0 %v859
        %1930 = vmatmul.mubr.bf16.gmra.mrb[0].mxu0 %v858
        %v1931 = vpop.f32.mrb[0].mxu0
        %v1932 = vadd.f32 %v656, %v1931
        %v1933 = vpop.f32.mrb[0].mxu0
        %v1934 = vadd.f32 %v660, %v1933
        %v1935 = vpop.f32.mrb[0].mxu0
        %v1936 = vadd.f32 %v656, %v1935
        %v1937 = vpop.f32.mrb[0].mxu0
        %v1938 = vadd.f32 %v660, %v1937
        %1939 = vmatprep.mubr.bf16.mxu0 %v862
        %1940 = vmatmul.mubr.bf16.gmra.mrb[0].mxu0 %v861
        %v1941 = vpop.f32.mrb[0].mxu0
        %v1942 = vadd.f32 %v656, %v1941
        %v1943 = vpop.f32.mrb[0].mxu0
        %v1944 = vadd.f32 %v660, %v1943
        %v1945 = vpop.f32.mrb[0].mxu0
        %v1946 = vadd.f32 %v656, %v1945
        %v1947 = vpop.f32.mrb[0].mxu0
        %v1948 = vadd.f32 %v660, %v1947
        %1949 = vmatprep.mubr.bf16.mxu0 %v865
        %1950 = vmatmul.mubr.bf16.gmra.mrb[0].mxu0 %v864
        %v1951 = vpop.f32.mrb[0].mxu0
        %v1952 = vadd.f32 %v656, %v1951
        %v1953 = vpop.f32.mrb[0].mxu0
        %v1954 = vadd.f32 %v660, %v1953
        %v1955 = vpop.f32.mrb[0].mxu0
        %v1956 = vadd.f32 %v656, %v1955
        %v1957 = vpop.f32.mrb[0].mxu0
        %v1958 = vadd.f32 %v660, %v1957
        %1959 = vmatprep.mubr.bf16.mxu0 %v868
        %1960 = vmatmul.mubr.bf16.gmra.mrb[0].mxu0 %v867
        %v1961 = vpop.f32.mrb[0].mxu0
        %v1962 = vadd.f32 %v656, %v1961
        %v1963 = vpop.f32.mrb[0].mxu0
        %v1964 = vadd.f32 %v660, %v1963
        %v1965 = vpop.f32.mrb[0].mxu0
        %v1966 = vadd.f32 %v656, %v1965
        %v1967 = vpop.f32.mrb[0].mxu0
        %v1968 = vadd.f32 %v660, %v1967
        %1969 = vmatprep.mubr.bf16.mxu0 %v871
        %1970 = vmatmul.mubr.bf16.gmra.mrb[0].mxu0 %v870
        %v1971 = vpop.f32.mrb[0].mxu0
        %v1972 = vadd.f32 %v656, %v1971
        %v1973 = vpop.f32.mrb[0].mxu0
        %v1974 = vadd.f32 %v660, %v1973
        %v1975 = vpop.f32.mrb[0].mxu0
        %v1976 = vadd.f32 %v656, %v1975
        %v1977 = vpop.f32.mrb[0].mxu0
        %v1978 = vadd.f32 %v660, %v1977
        %1979 = vdwg.mxu0
        %1980 = vmatprep.subr.bf16.mxu0 %v1276
        %1981 = vmatpush1.bf16.msra.mxu0 %v1275
        %1982 = vmatprep.subr.bf16.mxu0 %v1280
        %1983 = vmatpush1.bf16.msra.mxu0 %v1279
        %1984 = vmatprep.subr.bf16.mxu0 %v1284
        %1985 = vmatpush1.bf16.msra.mxu0 %v1283
        %1986 = vmatprep.subr.bf16.mxu0 %v1288
        %1987 = vmatpush1.bf16.msra.mxu0 %v1287
        %1988 = vmatprep.subr.bf16.mxu0 %v1292
        %1989 = vmatpush1.bf16.msra.mxu0 %v1291
        %1990 = vmatprep.subr.bf16.mxu0 %v1296
        %1991 = vmatpush1.bf16.msra.mxu0 %v1295
        %1992 = vmatprep.subr.bf16.mxu0 %v1300
        %1993 = vmatpush1.bf16.msra.mxu0 %v1299
        %1994 = vmatprep.subr.bf16.mxu0 %v1304
        %1995 = vmatpush1.bf16.msra.mxu0 %v1303
        %1996 = vmatprep.subr.bf16.mxu0 0
        %1997 = vmatpush1.bf16.msra.mxu0 0
        %1998 = vmatprep.subr.bf16.mxu0 0
        %1999 = vmatpush1.bf16.msra.mxu0 0
        %2000 = vmatprep.subr.bf16.mxu0 0
        %2001 = vmatpush1.bf16.msra.mxu0 0
        %2002 = vmatprep.subr.bf16.mxu0 0
        %2003 = vmatpush1.bf16.msra.mxu0 0
        %2004 = vmatprep.subr.bf16.mxu0 0
        %2005 = vmatpush1.bf16.msra.mxu0 0
        %2006 = vmatprep.subr.bf16.mxu0 0
        %2007 = vmatpush1.bf16.msra.mxu0 0
        %2008 = vmatprep.subr.bf16.mxu0 0
        %2009 = vmatpush1.bf16.msra.mxu0 0
        %2010 = vmatprep.subr.bf16.mxu0 0
        %2011 = vmatpush1.bf16.msra.mxu0 0
        %2012 = vmatprep.mubr.bf16.mxu0 0
        %2013 = vmatmul.mubr.bf16.gmra.mrb[0].mxu0 %v827
        %v2014 = vpop.f32.mrb[0].mxu0
        %v2015 = vadd.f32 %v1822, %v2014
        %v2016 = vpop.f32.mrb[0].mxu0
        %v2017 = vadd.f32 %v1824, %v2016
        %v2018 = vpop.f32.mrb[0].mxu0
        %v2019 = vadd.f32 %v1826, %v2018
        %v2020 = vpop.f32.mrb[0].mxu0
        %v2021 = vadd.f32 %v1828, %v2020
        %2022 = vmatprep.mubr.bf16.mxu0 0
        %2023 = vmatmul.mubr.bf16.gmra.mrb[0].mxu0 %v830
        %v2024 = vpop.f32.mrb[0].mxu0
        %v2025 = vadd.f32 %v1832, %v2024
        %v2026 = vpop.f32.mrb[0].mxu0
        %v2027 = vadd.f32 %v1834, %v2026
        %v2028 = vpop.f32.mrb[0].mxu0
        %v2029 = vadd.f32 %v1836, %v2028
        %v2030 = vpop.f32.mrb[0].mxu0
        %v2031 = vadd.f32 %v1838, %v2030
        %2032 = vmatprep.mubr.bf16.mxu0 0
        %2033 = vmatmul.mubr.bf16.gmra.mrb[0].mxu0 %v833
        %v2034 = vpop.f32.mrb[0].mxu0
        %v2035 = vadd.f32 %v1842, %v2034
        %v2036 = vpop.f32.mrb[0].mxu0
        %v2037 = vadd.f32 %v1844, %v2036
        %v2038 = vpop.f32.mrb[0].mxu0
        %v2039 = vadd.f32 %v1846, %v2038
        %v2040 = vpop.f32.mrb[0].mxu0
        %v2041 = vadd.f32 %v1848, %v2040
        %2042 = vmatprep.mubr.bf16.mxu0 0
        %2043 = vmatmul.mubr.bf16.gmra.mrb[0].mxu0 %v836
        %v2044 = vpop.f32.mrb[0].mxu0
        %v2045 = vadd.f32 %v1852, %v2044
        %v2046 = vpop.f32.mrb[0].mxu0
        %v2047 = vadd.f32 %v1854, %v2046
        %v2048 = vpop.f32.mrb[0].mxu0
        %v2049 = vadd.f32 %v1856, %v2048
        %v2050 = vpop.f32.mrb[0].mxu0
        %v2051 = vadd.f32 %v1858, %v2050
        %2052 = vmatprep.mubr.bf16.mxu0 0
        %2053 = vmatmul.mubr.bf16.gmra.mrb[0].mxu0 %v839
        %v2054 = vpop.f32.mrb[0].mxu0
        %v2055 = vadd.f32 %v1862, %v2054
        %v2056 = vpop.f32.mrb[0].mxu0
        %v2057 = vadd.f32 %v1864, %v2056
        %v2058 = vpop.f32.mrb[0].mxu0
        %v2059 = vadd.f32 %v1866, %v2058
        %v2060 = vpop.f32.mrb[0].mxu0
        %v2061 = vadd.f32 %v1868, %v2060
        %2062 = vmatprep.mubr.bf16.mxu0 0
        %2063 = vmatmul.mubr.bf16.gmra.mrb[0].mxu0 %v842
        %v2064 = vpop.f32.mrb[0].mxu0
        %v2065 = vadd.f32 %v1872, %v2064
        %v2066 = vpop.f32.mrb[0].mxu0
        %v2067 = vadd.f32 %v1874, %v2066
        %v2068 = vpop.f32.mrb[0].mxu0
        %v2069 = vadd.f32 %v1876, %v2068
        %v2070 = vpop.f32.mrb[0].mxu0
        %v2071 = vadd.f32 %v1878, %v2070
        %2072 = vmatprep.mubr.bf16.mxu0 0
        %2073 = vmatmul.mubr.bf16.gmra.mrb[0].mxu0 %v845
        %v2074 = vpop.f32.mrb[0].mxu0
        %v2075 = vadd.f32 %v1882, %v2074
        %v2076 = vpop.f32.mrb[0].mxu0
        %v2077 = vadd.f32 %v1884, %v2076
        %v2078 = vpop.f32.mrb[0].mxu0
        %v2079 = vadd.f32 %v1886, %v2078
        %v2080 = vpop.f32.mrb[0].mxu0
        %v2081 = vadd.f32 %v1888, %v2080
        %2082 = vmatprep.mubr.bf16.mxu0 0
        %2083 = vmatmul.mubr.bf16.gmra.mrb[0].mxu0 %v848
        %v2084 = vpop.f32.mrb[0].mxu0
        %v2085 = vadd.f32 %v1892, %v2084
        %v2086 = vpop.f32.mrb[0].mxu0
        %v2087 = vadd.f32 %v1894, %v2086
        %v2088 = vpop.f32.mrb[0].mxu0
        %v2089 = vadd.f32 %v1896, %v2088
        %v2090 = vpop.f32.mrb[0].mxu0
        %v2091 = vadd.f32 %v1898, %v2090
        %2092 = vmatprep.mubr.bf16.mxu0 0
        %2093 = vmatmul.mubr.bf16.gmra.mrb[0].mxu0 %v851
        %v2094 = vpop.f32.mrb[0].mxu0
        %v2095 = vadd.f32 %v1902, %v2094
        %v2096 = vpop.f32.mrb[0].mxu0
        %v2097 = vadd.f32 %v1904, %v2096
        %v2098 = vpop.f32.mrb[0].mxu0
        %v2099 = vadd.f32 %v1906, %v2098
        %v2100 = vpop.f32.mrb[0].mxu0
        %v2101 = vadd.f32 %v1908, %v2100
        %2102 = vmatprep.mubr.bf16.mxu0 0
        %2103 = vmatmul.mubr.bf16.gmra.mrb[0].mxu0 %v854
        %v2104 = vpop.f32.mrb[0].mxu0
        %v2105 = vadd.f32 %v1912, %v2104
        %v2106 = vpop.f32.mrb[0].mxu0
        %v2107 = vadd.f32 %v1914, %v2106
        %v2108 = vpop.f32.mrb[0].mxu0
        %v2109 = vadd.f32 %v1916, %v2108
        %v2110 = vpop.f32.mrb[0].mxu0
        %v2111 = vadd.f32 %v1918, %v2110
        %2112 = vmatprep.mubr.bf16.mxu0 0
        %2113 = vmatmul.mubr.bf16.gmra.mrb[0].mxu0 %v857
        %v2114 = vpop.f32.mrb[0].mxu0
        %v2115 = vadd.f32 %v1922, %v2114
        %v2116 = vpop.f32.mrb[0].mxu0
        %v2117 = vadd.f32 %v1924, %v2116
        %v2118 = vpop.f32.mrb[0].mxu0
        %v2119 = vadd.f32 %v1926, %v2118
        %v2120 = vpop.f32.mrb[0].mxu0
        %v2121 = vadd.f32 %v1928, %v2120
        %2122 = vmatprep.mubr.bf16.mxu0 0
        %2123 = vmatmul.mubr.bf16.gmra.mrb[0].mxu0 %v860
        %v2124 = vpop.f32.mrb[0].mxu0
        %v2125 = vadd.f32 %v1932, %v2124
        %v2126 = vpop.f32.mrb[0].mxu0
        %v2127 = vadd.f32 %v1934, %v2126
        %v2128 = vpop.f32.mrb[0].mxu0
        %v2129 = vadd.f32 %v1936, %v2128
        %v2130 = vpop.f32.mrb[0].mxu0
        %v2131 = vadd.f32 %v1938, %v2130
        %2132 = vmatprep.mubr.bf16.mxu0 0
        %2133 = vmatmul.mubr.bf16.gmra.mrb[0].mxu0 %v863
        %v2134 = vpop.f32.mrb[0].mxu0
        %v2135 = vadd.f32 %v1942, %v2134
        %v2136 = vpop.f32.mrb[0].mxu0
        %v2137 = vadd.f32 %v1944, %v2136
        %v2138 = vpop.f32.mrb[0].mxu0
        %v2139 = vadd.f32 %v1946, %v2138
        %v2140 = vpop.f32.mrb[0].mxu0
        %v2141 = vadd.f32 %v1948, %v2140
        %2142 = vmatprep.mubr.bf16.mxu0 0
        %2143 = vmatmul.mubr.bf16.gmra.mrb[0].mxu0 %v866
        %v2144 = vpop.f32.mrb[0].mxu0
        %v2145 = vadd.f32 %v1952, %v2144
        %v2146 = vpop.f32.mrb[0].mxu0
        %v2147 = vadd.f32 %v1954, %v2146
        %v2148 = vpop.f32.mrb[0].mxu0
        %v2149 = vadd.f32 %v1956, %v2148
        %v2150 = vpop.f32.mrb[0].mxu0
        %v2151 = vadd.f32 %v1958, %v2150
        %2152 = vmatprep.mubr.bf16.mxu0 0
        %2153 = vmatmul.mubr.bf16.gmra.mrb[0].mxu0 %v869
        %v2154 = vpop.f32.mrb[0].mxu0
        %v2155 = vadd.f32 %v1962, %v2154
        %v2156 = vpop.f32.mrb[0].mxu0
        %v2157 = vadd.f32 %v1964, %v2156
        %v2158 = vpop.f32.mrb[0].mxu0
        %v2159 = vadd.f32 %v1966, %v2158
        %v2160 = vpop.f32.mrb[0].mxu0
        %v2161 = vadd.f32 %v1968, %v2160
        %2162 = vmatprep.mubr.bf16.mxu0 0
        %2163 = vmatmul.mubr.bf16.gmra.mrb[0].mxu0 %v872
        %v2164 = vpop.f32.mrb[0].mxu0
        %v2165 = vadd.f32 %v1972, %v2164
        %v2166 = vpop.f32.mrb[0].mxu0
        %v2167 = vadd.f32 %v1974, %v2166
        %v2168 = vpop.f32.mrb[0].mxu0
        %v2169 = vadd.f32 %v1976, %v2168
        %v2170 = vpop.f32.mrb[0].mxu0
        %v2171 = vadd.f32 %v1978, %v2170
        %2172 = vdwg.mxu0
        %v2173 = vmul.f32 %v1629, 0.5
        %v2174 = vmul.f32 %v1631, 0.5
        %v2175 = vmul.f32 %v2015, 0.5
        %v2176 = vmul.f32 %v2017, 0.5
        %v2177 = vmul.f32 %v1633, 0.5
        %v2178 = vmul.f32 %v1635, 0.5
        %v2179 = vmul.f32 %v2019, 0.5
        %v2180 = vmul.f32 %v2021, 0.5
        %v2181 = vmul.f32 %v1639, 0.5
        %v2182 = vmul.f32 %v1641, 0.5
        %v2183 = vmul.f32 %v2025, 0.5
        %v2184 = vmul.f32 %v2027, 0.5
        %v2185 = vmul.f32 %v1643, 0.5
        %v2186 = vmul.f32 %v1645, 0.5
        %v2187 = vmul.f32 %v2029, 0.5
        %v2188 = vmul.f32 %v2031, 0.5
        %v2189 = vmul.f32 %v1649, 0.5
        %v2190 = vmul.f32 %v1651, 0.5
        %v2191 = vmul.f32 %v2035, 0.5
        %v2192 = vmul.f32 %v2037, 0.5
        %v2193 = vmul.f32 %v1653, 0.5
        %v2194 = vmul.f32 %v1655, 0.5
        %v2195 = vmul.f32 %v2039, 0.5
        %v2196 = vmul.f32 %v2041, 0.5
        %v2197 = vmul.f32 %v1659, 0.5
        %v2198 = vmul.f32 %v1661, 0.5
        %v2199 = vmul.f32 %v2045, 0.5
        %v2200 = vmul.f32 %v2047, 0.5
        %v2201 = vmul.f32 %v1663, 0.5
        %v2202 = vmul.f32 %v1665, 0.5
        %v2203 = vmul.f32 %v2049, 0.5
        %v2204 = vmul.f32 %v2051, 0.5
        %v2205 = vmul.f32 %v1669, 0.5
        %v2206 = vmul.f32 %v1671, 0.5
        %v2207 = vmul.f32 %v2055, 0.5
        %v2208 = vmul.f32 %v2057, 0.5
        %v2209 = vmul.f32 %v1673, 0.5
        %v2210 = vmul.f32 %v1675, 0.5
        %v2211 = vmul.f32 %v2059, 0.5
        %v2212 = vmul.f32 %v2061, 0.5
        %v2213 = vmul.f32 %v1679, 0.5
        %v2214 = vmul.f32 %v1681, 0.5
        %v2215 = vmul.f32 %v2065, 0.5
        %v2216 = vmul.f32 %v2067, 0.5
        %v2217 = vmul.f32 %v1683, 0.5
        %v2218 = vmul.f32 %v1685, 0.5
        %v2219 = vmul.f32 %v2069, 0.5
        %v2220 = vmul.f32 %v2071, 0.5
        %v2221 = vmul.f32 %v1689, 0.5
        %v2222 = vmul.f32 %v1691, 0.5
        %v2223 = vmul.f32 %v2075, 0.5
        %v2224 = vmul.f32 %v2077, 0.5
        %v2225 = vmul.f32 %v1693, 0.5
        %v2226 = vmul.f32 %v1695, 0.5
        %v2227 = vmul.f32 %v2079, 0.5
        %v2228 = vmul.f32 %v2081, 0.5
        %v2229 = vmul.f32 %v1699, 0.5
        %v2230 = vmul.f32 %v1701, 0.5
        %v2231 = vmul.f32 %v2085, 0.5
        %v2232 = vmul.f32 %v2087, 0.5
        %v2233 = vmul.f32 %v1703, 0.5
        %v2234 = vmul.f32 %v1705, 0.5
        %v2235 = vmul.f32 %v2089, 0.5
        %v2236 = vmul.f32 %v2091, 0.5
        %v2237 = vmul.f32 %v1709, 0.5
        %v2238 = vmul.f32 %v1711, 0.5
        %v2239 = vmul.f32 %v2095, 0.5
        %v2240 = vmul.f32 %v2097, 0.5
        %v2241 = vmul.f32 %v1713, 0.5
        %v2242 = vmul.f32 %v1715, 0.5
        %v2243 = vmul.f32 %v2099, 0.5
        %v2244 = vmul.f32 %v2101, 0.5
        %v2245 = vmul.f32 %v1719, 0.5
        %v2246 = vmul.f32 %v1721, 0.5
        %v2247 = vmul.f32 %v2105, 0.5
        %v2248 = vmul.f32 %v2107, 0.5
        %v2249 = vmul.f32 %v1723, 0.5
        %v2250 = vmul.f32 %v1725, 0.5
        %v2251 = vmul.f32 %v2109, 0.5
        %v2252 = vmul.f32 %v2111, 0.5
        %v2253 = vmul.f32 %v1729, 0.5
        %v2254 = vmul.f32 %v1731, 0.5
        %v2255 = vmul.f32 %v2115, 0.5
        %v2256 = vmul.f32 %v2117, 0.5
        %v2257 = vmul.f32 %v1733, 0.5
        %v2258 = vmul.f32 %v1735, 0.5
        %v2259 = vmul.f32 %v2119, 0.5
        %v2260 = vmul.f32 %v2121, 0.5
        %v2261 = vmul.f32 %v1739, 0.5
        %v2262 = vmul.f32 %v1741, 0.5
        %v2263 = vmul.f32 %v2125, 0.5
        %v2264 = vmul.f32 %v2127, 0.5
        %v2265 = vmul.f32 %v1743, 0.5
        %v2266 = vmul.f32 %v1745, 0.5
        %v2267 = vmul.f32 %v2129, 0.5
        %v2268 = vmul.f32 %v2131, 0.5
        %v2269 = vmul.f32 %v1749, 0.5
        %v2270 = vmul.f32 %v1751, 0.5
        %v2271 = vmul.f32 %v2135, 0.5
        %v2272 = vmul.f32 %v2137, 0.5
        %v2273 = vmul.f32 %v1753, 0.5
        %v2274 = vmul.f32 %v1755, 0.5
        %v2275 = vmul.f32 %v2139, 0.5
        %v2276 = vmul.f32 %v2141, 0.5
        %v2277 = vmul.f32 %v1759, 0.5
        %v2278 = vmul.f32 %v1761, 0.5
        %v2279 = vmul.f32 %v2145, 0.5
        %v2280 = vmul.f32 %v2147, 0.5
        %v2281 = vmul.f32 %v1763, 0.5
        %v2282 = vmul.f32 %v1765, 0.5
        %v2283 = vmul.f32 %v2149, 0.5
        %v2284 = vmul.f32 %v2151, 0.5
        %v2285 = vmul.f32 %v1769, 0.5
        %v2286 = vmul.f32 %v1771, 0.5
        %v2287 = vmul.f32 %v2155, 0.5
        %v2288 = vmul.f32 %v2157, 0.5
        %v2289 = vmul.f32 %v1773, 0.5
        %v2290 = vmul.f32 %v1775, 0.5
        %v2291 = vmul.f32 %v2159, 0.5
        %v2292 = vmul.f32 %v2161, 0.5
        %v2293 = vmul.f32 %v1779, 0.5
        %v2294 = vmul.f32 %v1781, 0.5
        %v2295 = vmul.f32 %v2165, 0.5
        %v2296 = vmul.f32 %v2167, 0.5
        %v2297 = vmul.f32 %v1783, 0.5
        %v2298 = vmul.f32 %v1785, 0.5
        %v2299 = vmul.f32 %v2169, 0.5
        %v2300 = vmul.f32 %v2171, 0.5
        %v2301 = vmul.f32 %v1629, 0.70710677
        %v2302 = vmul.f32 %v1631, 0.70710677
        %v2303 = vmul.f32 %v2015, 0.70710677
        %v2304 = vmul.f32 %v2017, 0.70710677
        %v2305 = vmul.f32 %v1633, 0.70710677
        %v2306 = vmul.f32 %v1635, 0.70710677
        %v2307 = vmul.f32 %v2019, 0.70710677
        %v2308 = vmul.f32 %v2021, 0.70710677
        %v2309 = vmul.f32 %v1639, 0.70710677
        %v2310 = vmul.f32 %v1641, 0.70710677
        %v2311 = vmul.f32 %v2025, 0.70710677
        %v2312 = vmul.f32 %v2027, 0.70710677
        %v2313 = vmul.f32 %v1643, 0.70710677
        %v2314 = vmul.f32 %v1645, 0.70710677
        %v2315 = vmul.f32 %v2029, 0.70710677
        %v2316 = vmul.f32 %v2031, 0.70710677
        %v2317 = vmul.f32 %v1649, 0.70710677
        %v2318 = vmul.f32 %v1651, 0.70710677
        %v2319 = vmul.f32 %v2035, 0.70710677
        %v2320 = vmul.f32 %v2037, 0.70710677
        %v2321 = vmul.f32 %v1653, 0.70710677
        %v2322 = vmul.f32 %v1655, 0.70710677
        %v2323 = vmul.f32 %v2039, 0.70710677
        %v2324 = vmul.f32 %v2041, 0.70710677
        %v2325 = vmul.f32 %v1659, 0.70710677
        %v2326 = vmul.f32 %v1661, 0.70710677
        %v2327 = vmul.f32 %v2045, 0.70710677
        %v2328 = vmul.f32 %v2047, 0.70710677
        %v2329 = vmul.f32 %v1663, 0.70710677
        %v2330 = vmul.f32 %v1665, 0.70710677
        %v2331 = vmul.f32 %v2049, 0.70710677
        %v2332 = vmul.f32 %v2051, 0.70710677
        %v2333 = vmul.f32 %v1669, 0.70710677
        %v2334 = vmul.f32 %v1671, 0.70710677
        %v2335 = vmul.f32 %v2055, 0.70710677
        %v2336 = vmul.f32 %v2057, 0.70710677
        %v2337 = vmul.f32 %v1673, 0.70710677
        %v2338 = vmul.f32 %v1675, 0.70710677
        %v2339 = vmul.f32 %v2059, 0.70710677
        %v2340 = vmul.f32 %v2061, 0.70710677
        %v2341 = vmul.f32 %v1679, 0.70710677
        %v2342 = vmul.f32 %v1681, 0.70710677
        %v2343 = vmul.f32 %v2065, 0.70710677
        %v2344 = vmul.f32 %v2067, 0.70710677
        %v2345 = vmul.f32 %v1683, 0.70710677
        %v2346 = vmul.f32 %v1685, 0.70710677
        %v2347 = vmul.f32 %v2069, 0.70710677
        %v2348 = vmul.f32 %v2071, 0.70710677
        %v2349 = vmul.f32 %v1689, 0.70710677
        %v2350 = vmul.f32 %v1691, 0.70710677
        %v2351 = vmul.f32 %v2075, 0.70710677
        %v2352 = vmul.f32 %v2077, 0.70710677
        %v2353 = vmul.f32 %v1693, 0.70710677
        %v2354 = vmul.f32 %v1695, 0.70710677
        %v2355 = vmul.f32 %v2079, 0.70710677
        %v2356 = vmul.f32 %v2081, 0.70710677
        %v2357 = vmul.f32 %v1699, 0.70710677
        %v2358 = vmul.f32 %v1701, 0.70710677
        %v2359 = vmul.f32 %v2085, 0.70710677
        %v2360 = vmul.f32 %v2087, 0.70710677
        %v2361 = vmul.f32 %v1703, 0.70710677
        %v2362 = vmul.f32 %v1705, 0.70710677
        %v2363 = vmul.f32 %v2089, 0.70710677
        %v2364 = vmul.f32 %v2091, 0.70710677
        %v2365 = vmul.f32 %v1709, 0.70710677
        %v2366 = vmul.f32 %v1711, 0.70710677
        %v2367 = vmul.f32 %v2095, 0.70710677
        %v2368 = vmul.f32 %v2097, 0.70710677
        %v2369 = vmul.f32 %v1713, 0.70710677
        %v2370 = vmul.f32 %v1715, 0.70710677
        %v2371 = vmul.f32 %v2099, 0.70710677
        %v2372 = vmul.f32 %v2101, 0.70710677
        %v2373 = vmul.f32 %v1719, 0.70710677
        %v2374 = vmul.f32 %v1721, 0.70710677
        %v2375 = vmul.f32 %v2105, 0.70710677
        %v2376 = vmul.f32 %v2107, 0.70710677
        %v2377 = vmul.f32 %v1723, 0.70710677
        %v2378 = vmul.f32 %v1725, 0.70710677
        %v2379 = vmul.f32 %v2109, 0.70710677
        %v2380 = vmul.f32 %v2111, 0.70710677
        %v2381 = vmul.f32 %v1729, 0.70710677
        %v2382 = vmul.f32 %v1731, 0.70710677
        %v2383 = vmul.f32 %v2115, 0.70710677
        %v2384 = vmul.f32 %v2117, 0.70710677
        %v2385 = vmul.f32 %v1733, 0.70710677
        %v2386 = vmul.f32 %v1735, 0.70710677
        %v2387 = vmul.f32 %v2119, 0.70710677
        %v2388 = vmul.f32 %v2121, 0.70710677
        %v2389 = vmul.f32 %v1739, 0.70710677
        %v2390 = vmul.f32 %v1741, 0.70710677
        %v2391 = vmul.f32 %v2125, 0.70710677
        %v2392 = vmul.f32 %v2127, 0.70710677
        %v2393 = vmul.f32 %v1743, 0.70710677
        %v2394 = vmul.f32 %v1745, 0.70710677
        %v2395 = vmul.f32 %v2129, 0.70710677
        %v2396 = vmul.f32 %v2131, 0.70710677
        %v2397 = vmul.f32 %v1749, 0.70710677
        %v2398 = vmul.f32 %v1751, 0.70710677
        %v2399 = vmul.f32 %v2135, 0.70710677
        %v2400 = vmul.f32 %v2137, 0.70710677
        %v2401 = vmul.f32 %v1753, 0.70710677
        %v2402 = vmul.f32 %v1755, 0.70710677
        %v2403 = vmul.f32 %v2139, 0.70710677
        %v2404 = vmul.f32 %v2141, 0.70710677
        %v2405 = vmul.f32 %v1759, 0.70710677
        %v2406 = vmul.f32 %v1761, 0.70710677
        %v2407 = vmul.f32 %v2145, 0.70710677
        %v2408 = vmul.f32 %v2147, 0.70710677
        %v2409 = vmul.f32 %v1763, 0.70710677
        %v2410 = vmul.f32 %v1765, 0.70710677
        %v2411 = vmul.f32 %v2149, 0.70710677
        %v2412 = vmul.f32 %v2151, 0.70710677
        %v2413 = vmul.f32 %v1769, 0.70710677
        %v2414 = vmul.f32 %v1771, 0.70710677
        %v2415 = vmul.f32 %v2155, 0.70710677
        %v2416 = vmul.f32 %v2157, 0.70710677
        %v2417 = vmul.f32 %v1773, 0.70710677
        %v2418 = vmul.f32 %v1775, 0.70710677
        %v2419 = vmul.f32 %v2159, 0.70710677
        %v2420 = vmul.f32 %v2161, 0.70710677
        %v2421 = vmul.f32 %v1779, 0.70710677
        %v2422 = vmul.f32 %v1781, 0.70710677
        %v2423 = vmul.f32 %v2165, 0.70710677
        %v2424 = vmul.f32 %v2167, 0.70710677
        %v2425 = vmul.f32 %v1783, 0.70710677
        %v2426 = vmul.f32 %v1785, 0.70710677
        %v2427 = vmul.f32 %v2169, 0.70710677
        %v2428 = vmul.f32 %v2171, 0.70710677
        %v2429 = verf.f32.pop %v2301
        %v2430 = verf.f32.pop %v2302
        %v2431 = verf.f32.pop %v2303
        %v2432 = verf.f32.pop %v2304
        %v2433 = verf.f32.pop %v2305
        %v2434 = verf.f32.pop %v2306
        %v2435 = verf.f32.pop %v2307
        %v2436 = verf.f32.pop %v2308
        %v2437 = verf.f32.pop %v2309
        %v2438 = verf.f32.pop %v2310
        %v2439 = verf.f32.pop %v2311
        %v2440 = verf.f32.pop %v2312
        %v2441 = verf.f32.pop %v2313
        %v2442 = verf.f32.pop %v2314
        %v2443 = verf.f32.pop %v2315
        %v2444 = verf.f32.pop %v2316
        %v2445 = verf.f32.pop %v2317
        %v2446 = verf.f32.pop %v2318
        %v2447 = verf.f32.pop %v2319
        %v2448 = verf.f32.pop %v2320
        %v2449 = verf.f32.pop %v2321
        %v2450 = verf.f32.pop %v2322
        %v2451 = verf.f32.pop %v2323
        %v2452 = verf.f32.pop %v2324
        %v2453 = verf.f32.pop %v2325
        %v2454 = verf.f32.pop %v2326
        %v2455 = verf.f32.pop %v2327
        %v2456 = verf.f32.pop %v2328
        %v2457 = verf.f32.pop %v2329
        %v2458 = verf.f32.pop %v2330
        %v2459 = verf.f32.pop %v2331
        %v2460 = verf.f32.pop %v2332
        %v2461 = verf.f32.pop %v2333
        %v2462 = verf.f32.pop %v2334
        %v2463 = verf.f32.pop %v2335
        %v2464 = verf.f32.pop %v2336
        %v2465 = verf.f32.pop %v2337
        %v2466 = verf.f32.pop %v2338
        %v2467 = verf.f32.pop %v2339
        %v2468 = verf.f32.pop %v2340
        %v2469 = verf.f32.pop %v2341
        %v2470 = verf.f32.pop %v2342
        %v2471 = verf.f32.pop %v2343
        %v2472 = verf.f32.pop %v2344
        %v2473 = verf.f32.pop %v2345
        %v2474 = verf.f32.pop %v2346
        %v2475 = verf.f32.pop %v2347
        %v2476 = verf.f32.pop %v2348
        %v2477 = verf.f32.pop %v2349
        %v2478 = verf.f32.pop %v2350
        %v2479 = verf.f32.pop %v2351
        %v2480 = verf.f32.pop %v2352
        %v2481 = verf.f32.pop %v2353
        %v2482 = verf.f32.pop %v2354
        %v2483 = verf.f32.pop %v2355
        %v2484 = verf.f32.pop %v2356
        %v2485 = verf.f32.pop %v2357
        %v2486 = verf.f32.pop %v2358
        %v2487 = verf.f32.pop %v2359
        %v2488 = verf.f32.pop %v2360
        %v2489 = verf.f32.pop %v2361
        %v2490 = verf.f32.pop %v2362
        %v2491 = verf.f32.pop %v2363
        %v2492 = verf.f32.pop %v2364
        %v2493 = verf.f32.pop %v2365
        %v2494 = verf.f32.pop %v2366
        %v2495 = verf.f32.pop %v2367
        %v2496 = verf.f32.pop %v2368
        %v2497 = verf.f32.pop %v2369
        %v2498 = verf.f32.pop %v2370
        %v2499 = verf.f32.pop %v2371
        %v2500 = verf.f32.pop %v2372
        %v2501 = verf.f32.pop %v2373
        %v2502 = verf.f32.pop %v2374
        %v2503 = verf.f32.pop %v2375
        %v2504 = verf.f32.pop %v2376
        %v2505 = verf.f32.pop %v2377
        %v2506 = verf.f32.pop %v2378
        %v2507 = verf.f32.pop %v2379
        %v2508 = verf.f32.pop %v2380
        %v2509 = verf.f32.pop %v2381
        %v2510 = verf.f32.pop %v2382
        %v2511 = verf.f32.pop %v2383
        %v2512 = verf.f32.pop %v2384
        %v2513 = verf.f32.pop %v2385
        %v2514 = verf.f32.pop %v2386
        %v2515 = verf.f32.pop %v2387
        %v2516 = verf.f32.pop %v2388
        %v2517 = verf.f32.pop %v2389
        %v2518 = verf.f32.pop %v2390
        %v2519 = verf.f32.pop %v2391
        %v2520 = verf.f32.pop %v2392
        %v2521 = verf.f32.pop %v2393
        %v2522 = verf.f32.pop %v2394
        %v2523 = verf.f32.pop %v2395
        %v2524 = verf.f32.pop %v2396
        %v2525 = verf.f32.pop %v2397
        %v2526 = verf.f32.pop %v2398
        %v2527 = verf.f32.pop %v2399
        %v2528 = verf.f32.pop %v2400
        %v2529 = verf.f32.pop %v2401
        %v2530 = verf.f32.pop %v2402
        %v2531 = verf.f32.pop %v2403
        %v2532 = verf.f32.pop %v2404
        %v2533 = verf.f32.pop %v2405
        %v2534 = verf.f32.pop %v2406
        %v2535 = verf.f32.pop %v2407
        %v2536 = verf.f32.pop %v2408
        %v2537 = verf.f32.pop %v2409
        %v2538 = verf.f32.pop %v2410
        %v2539 = verf.f32.pop %v2411
        %v2540 = verf.f32.pop %v2412
        %v2541 = verf.f32.pop %v2413
        %v2542 = verf.f32.pop %v2414
        %v2543 = verf.f32.pop %v2415
        %v2544 = verf.f32.pop %v2416
        %v2545 = verf.f32.pop %v2417
        %v2546 = verf.f32.pop %v2418
        %v2547 = verf.f32.pop %v2419
        %v2548 = verf.f32.pop %v2420
        %v2549 = verf.f32.pop %v2421
        %v2550 = verf.f32.pop %v2422
        %v2551 = verf.f32.pop %v2423
        %v2552 = verf.f32.pop %v2424
        %v2553 = verf.f32.pop %v2425
        %v2554 = verf.f32.pop %v2426
        %v2555 = verf.f32.pop %v2427
        %v2556 = verf.f32.pop %v2428
        %v2557 = vadd.f32 %v2429, 1.0
        %v2558 = vadd.f32 %v2430, 1.0
        %v2559 = vadd.f32 %v2431, 1.0
        %v2560 = vadd.f32 %v2432, 1.0
        %v2561 = vadd.f32 %v2433, 1.0
        %v2562 = vadd.f32 %v2434, 1.0
        %v2563 = vadd.f32 %v2435, 1.0
        %v2564 = vadd.f32 %v2436, 1.0
        %v2565 = vadd.f32 %v2437, 1.0
        %v2566 = vadd.f32 %v2438, 1.0
        %v2567 = vadd.f32 %v2439, 1.0
        %v2568 = vadd.f32 %v2440, 1.0
        %v2569 = vadd.f32 %v2441, 1.0
        %v2570 = vadd.f32 %v2442, 1.0
        %v2571 = vadd.f32 %v2443, 1.0
        %v2572 = vadd.f32 %v2444, 1.0
        %v2573 = vadd.f32 %v2445, 1.0
        %v2574 = vadd.f32 %v2446, 1.0
        %v2575 = vadd.f32 %v2447, 1.0
        %v2576 = vadd.f32 %v2448, 1.0
        %v2577 = vadd.f32 %v2449, 1.0
        %v2578 = vadd.f32 %v2450, 1.0
        %v2579 = vadd.f32 %v2451, 1.0
        %v2580 = vadd.f32 %v2452, 1.0
        %v2581 = vadd.f32 %v2453, 1.0
        %v2582 = vadd.f32 %v2454, 1.0
        %v2583 = vadd.f32 %v2455, 1.0
        %v2584 = vadd.f32 %v2456, 1.0
        %v2585 = vadd.f32 %v2457, 1.0
        %v2586 = vadd.f32 %v2458, 1.0
        %v2587 = vadd.f32 %v2459, 1.0
        %v2588 = vadd.f32 %v2460, 1.0
        %v2589 = vadd.f32 %v2461, 1.0
        %v2590 = vadd.f32 %v2462, 1.0
        %v2591 = vadd.f32 %v2463, 1.0
        %v2592 = vadd.f32 %v2464, 1.0
        %v2593 = vadd.f32 %v2465, 1.0
        %v2594 = vadd.f32 %v2466, 1.0
        %v2595 = vadd.f32 %v2467, 1.0
        %v2596 = vadd.f32 %v2468, 1.0
        %v2597 = vadd.f32 %v2469, 1.0
        %v2598 = vadd.f32 %v2470, 1.0
        %v2599 = vadd.f32 %v2471, 1.0
        %v2600 = vadd.f32 %v2472, 1.0
        %v2601 = vadd.f32 %v2473, 1.0
        %v2602 = vadd.f32 %v2474, 1.0
        %v2603 = vadd.f32 %v2475, 1.0
        %v2604 = vadd.f32 %v2476, 1.0
        %v2605 = vadd.f32 %v2477, 1.0
        %v2606 = vadd.f32 %v2478, 1.0
        %v2607 = vadd.f32 %v2479, 1.0
        %v2608 = vadd.f32 %v2480, 1.0
        %v2609 = vadd.f32 %v2481, 1.0
        %v2610 = vadd.f32 %v2482, 1.0
        %v2611 = vadd.f32 %v2483, 1.0
        %v2612 = vadd.f32 %v2484, 1.0
        %v2613 = vadd.f32 %v2485, 1.0
        %v2614 = vadd.f32 %v2486, 1.0
        %v2615 = vadd.f32 %v2487, 1.0
        %v2616 = vadd.f32 %v2488, 1.0
        %v2617 = vadd.f32 %v2489, 1.0
        %v2618 = vadd.f32 %v2490, 1.0
        %v2619 = vadd.f32 %v2491, 1.0
        %v2620 = vadd.f32 %v2492, 1.0
        %v2621 = vadd.f32 %v2493, 1.0
        %v2622 = vadd.f32 %v2494, 1.0
        %v2623 = vadd.f32 %v2495, 1.0
        %v2624 = vadd.f32 %v2496, 1.0
        %v2625 = vadd.f32 %v2497, 1.0
        %v2626 = vadd.f32 %v2498, 1.0
        %v2627 = vadd.f32 %v2499, 1.0
        %v2628 = vadd.f32 %v2500, 1.0
        %v2629 = vadd.f32 %v2501, 1.0
        %v2630 = vadd.f32 %v2502, 1.0
        %v2631 = vadd.f32 %v2503, 1.0
        %v2632 = vadd.f32 %v2504, 1.0
        %v2633 = vadd.f32 %v2505, 1.0
        %v2634 = vadd.f32 %v2506, 1.0
        %v2635 = vadd.f32 %v2507, 1.0
        %v2636 = vadd.f32 %v2508, 1.0
        %v2637 = vadd.f32 %v2509, 1.0
        %v2638 = vadd.f32 %v2510, 1.0
        %v2639 = vadd.f32 %v2511, 1.0
        %v2640 = vadd.f32 %v2512, 1.0
        %v2641 = vadd.f32 %v2513, 1.0
        %v2642 = vadd.f32 %v2514, 1.0
        %v2643 = vadd.f32 %v2515, 1.0
        %v2644 = vadd.f32 %v2516, 1.0
        %v2645 = vadd.f32 %v2517, 1.0
        %v2646 = vadd.f32 %v2518, 1.0
        %v2647 = vadd.f32 %v2519, 1.0
        %v2648 = vadd.f32 %v2520, 1.0
        %v2649 = vadd.f32 %v2521, 1.0
        %v2650 = vadd.f32 %v2522, 1.0
        %v2651 = vadd.f32 %v2523, 1.0
        %v2652 = vadd.f32 %v2524, 1.0
        %v2653 = vadd.f32 %v2525, 1.0
        %v2654 = vadd.f32 %v2526, 1.0
        %v2655 = vadd.f32 %v2527, 1.0
        %v2656 = vadd.f32 %v2528, 1.0
        %v2657 = vadd.f32 %v2529, 1.0
        %v2658 = vadd.f32 %v2530, 1.0
        %v2659 = vadd.f32 %v2531, 1.0
        %v2660 = vadd.f32 %v2532, 1.0
        %v2661 = vadd.f32 %v2533, 1.0
        %v2662 = vadd.f32 %v2534, 1.0
        %v2663 = vadd.f32 %v2535, 1.0
        %v2664 = vadd.f32 %v2536, 1.0
        %v2665 = vadd.f32 %v2537, 1.0
        %v2666 = vadd.f32 %v2538, 1.0
        %v2667 = vadd.f32 %v2539, 1.0
        %v2668 = vadd.f32 %v2540, 1.0
        %v2669 = vadd.f32 %v2541, 1.0
        %v2670 = vadd.f32 %v2542, 1.0
        %v2671 = vadd.f32 %v2543, 1.0
        %v2672 = vadd.f32 %v2544, 1.0
        %v2673 = vadd.f32 %v2545, 1.0
        %v2674 = vadd.f32 %v2546, 1.0
        %v2675 = vadd.f32 %v2547, 1.0
        %v2676 = vadd.f32 %v2548, 1.0
        %v2677 = vadd.f32 %v2549, 1.0
        %v2678 = vadd.f32 %v2550, 1.0
        %v2679 = vadd.f32 %v2551, 1.0
        %v2680 = vadd.f32 %v2552, 1.0
        %v2681 = vadd.f32 %v2553, 1.0
        %v2682 = vadd.f32 %v2554, 1.0
        %v2683 = vadd.f32 %v2555, 1.0
        %v2684 = vadd.f32 %v2556, 1.0
        %v2685 = vmul.f32 %v2173, %v2557
        %v2686 = vmul.f32 %v2174, %v2558
        %v2687 = vmul.f32 %v2175, %v2559
        %v2688 = vmul.f32 %v2176, %v2560
        %v2689 = vmul.f32 %v2177, %v2561
        %v2690 = vmul.f32 %v2178, %v2562
        %v2691 = vmul.f32 %v2179, %v2563
        %v2692 = vmul.f32 %v2180, %v2564
        %v2693 = vmul.f32 %v2181, %v2565
        %v2694 = vmul.f32 %v2182, %v2566
        %v2695 = vmul.f32 %v2183, %v2567
        %v2696 = vmul.f32 %v2184, %v2568
        %v2697 = vmul.f32 %v2185, %v2569
        %v2698 = vmul.f32 %v2186, %v2570
        %v2699 = vmul.f32 %v2187, %v2571
        %v2700 = vmul.f32 %v2188, %v2572
        %v2701 = vmul.f32 %v2189, %v2573
        %v2702 = vmul.f32 %v2190, %v2574
        %v2703 = vmul.f32 %v2191, %v2575
        %v2704 = vmul.f32 %v2192, %v2576
        %v2705 = vmul.f32 %v2193, %v2577
        %v2706 = vmul.f32 %v2194, %v2578
        %v2707 = vmul.f32 %v2195, %v2579
        %v2708 = vmul.f32 %v2196, %v2580
        %v2709 = vmul.f32 %v2197, %v2581
        %v2710 = vmul.f32 %v2198, %v2582
        %v2711 = vmul.f32 %v2199, %v2583
        %v2712 = vmul.f32 %v2200, %v2584
        %v2713 = vmul.f32 %v2201, %v2585
        %v2714 = vmul.f32 %v2202, %v2586
        %v2715 = vmul.f32 %v2203, %v2587
        %v2716 = vmul.f32 %v2204, %v2588
        %v2717 = vmul.f32 %v2205, %v2589
        %v2718 = vmul.f32 %v2206, %v2590
        %v2719 = vmul.f32 %v2207, %v2591
        %v2720 = vmul.f32 %v2208, %v2592
        %v2721 = vmul.f32 %v2209, %v2593
        %v2722 = vmul.f32 %v2210, %v2594
        %v2723 = vmul.f32 %v2211, %v2595
        %v2724 = vmul.f32 %v2212, %v2596
        %v2725 = vmul.f32 %v2213, %v2597
        %v2726 = vmul.f32 %v2214, %v2598
        %v2727 = vmul.f32 %v2215, %v2599
        %v2728 = vmul.f32 %v2216, %v2600
        %v2729 = vmul.f32 %v2217, %v2601
        %v2730 = vmul.f32 %v2218, %v2602
        %v2731 = vmul.f32 %v2219, %v2603
        %v2732 = vmul.f32 %v2220, %v2604
        %v2733 = vmul.f32 %v2221, %v2605
        %v2734 = vmul.f32 %v2222, %v2606
        %v2735 = vmul.f32 %v2223, %v2607
        %v2736 = vmul.f32 %v2224, %v2608
        %v2737 = vmul.f32 %v2225, %v2609
        %v2738 = vmul.f32 %v2226, %v2610
        %v2739 = vmul.f32 %v2227, %v2611
        %v2740 = vmul.f32 %v2228, %v2612
        %v2741 = vmul.f32 %v2229, %v2613
        %v2742 = vmul.f32 %v2230, %v2614
        %v2743 = vmul.f32 %v2231, %v2615
        %v2744 = vmul.f32 %v2232, %v2616
        %v2745 = vmul.f32 %v2233, %v2617
        %v2746 = vmul.f32 %v2234, %v2618
        %v2747 = vmul.f32 %v2235, %v2619
        %v2748 = vmul.f32 %v2236, %v2620
        %v2749 = vmul.f32 %v2237, %v2621
        %v2750 = vmul.f32 %v2238, %v2622
        %v2751 = vmul.f32 %v2239, %v2623
        %v2752 = vmul.f32 %v2240, %v2624
        %v2753 = vmul.f32 %v2241, %v2625
        %v2754 = vmul.f32 %v2242, %v2626
        %v2755 = vmul.f32 %v2243, %v2627
        %v2756 = vmul.f32 %v2244, %v2628
        %v2757 = vmul.f32 %v2245, %v2629
        %v2758 = vmul.f32 %v2246, %v2630
        %v2759 = vmul.f32 %v2247, %v2631
        %v2760 = vmul.f32 %v2248, %v2632
        %v2761 = vmul.f32 %v2249, %v2633
        %v2762 = vmul.f32 %v2250, %v2634
        %v2763 = vmul.f32 %v2251, %v2635
        %v2764 = vmul.f32 %v2252, %v2636
        %v2765 = vmul.f32 %v2253, %v2637
        %v2766 = vmul.f32 %v2254, %v2638
        %v2767 = vmul.f32 %v2255, %v2639
        %v2768 = vmul.f32 %v2256, %v2640
        %v2769 = vmul.f32 %v2257, %v2641
        %v2770 = vmul.f32 %v2258, %v2642
        %v2771 = vmul.f32 %v2259, %v2643
        %v2772 = vmul.f32 %v2260, %v2644
        %v2773 = vmul.f32 %v2261, %v2645
        %v2774 = vmul.f32 %v2262, %v2646
        %v2775 = vmul.f32 %v2263, %v2647
        %v2776 = vmul.f32 %v2264, %v2648
        %v2777 = vmul.f32 %v2265, %v2649
        %v2778 = vmul.f32 %v2266, %v2650
        %v2779 = vmul.f32 %v2267, %v2651
        %v2780 = vmul.f32 %v2268, %v2652
        %v2781 = vmul.f32 %v2269, %v2653
        %v2782 = vmul.f32 %v2270, %v2654
        %v2783 = vmul.f32 %v2271, %v2655
        %v2784 = vmul.f32 %v2272, %v2656
        %v2785 = vmul.f32 %v2273, %v2657
        %v2786 = vmul.f32 %v2274, %v2658
        %v2787 = vmul.f32 %v2275, %v2659
        %v2788 = vmul.f32 %v2276, %v2660
        %v2789 = vmul.f32 %v2277, %v2661
        %v2790 = vmul.f32 %v2278, %v2662
        %v2791 = vmul.f32 %v2279, %v2663
        %v2792 = vmul.f32 %v2280, %v2664
        %v2793 = vmul.f32 %v2281, %v2665
        %v2794 = vmul.f32 %v2282, %v2666
        %v2795 = vmul.f32 %v2283, %v2667
        %v2796 = vmul.f32 %v2284, %v2668
        %v2797 = vmul.f32 %v2285, %v2669
        %v2798 = vmul.f32 %v2286, %v2670
        %v2799 = vmul.f32 %v2287, %v2671
        %v2800 = vmul.f32 %v2288, %v2672
        %v2801 = vmul.f32 %v2289, %v2673
        %v2802 = vmul.f32 %v2290, %v2674
        %v2803 = vmul.f32 %v2291, %v2675
        %v2804 = vmul.f32 %v2292, %v2676
        %v2805 = vmul.f32 %v2293, %v2677
        %v2806 = vmul.f32 %v2294, %v2678
        %v2807 = vmul.f32 %v2295, %v2679
        %v2808 = vmul.f32 %v2296, %v2680
        %v2809 = vmul.f32 %v2297, %v2681
        %v2810 = vmul.f32 %v2298, %v2682
        %v2811 = vmul.f32 %v2299, %v2683
        %v2812 = vmul.f32 %v2300, %v2684
        %v2813 = vld [vmem:[#allocation2] sm:$0xff]
        %v2814 = vld [vmem:[#allocation2 + $0x8] sm:$0xff]
        %v2815 = vld [vmem:[#allocation2 + $0x10] sm:$0xff]
        %v2816 = vld [vmem:[#allocation2 + $0x18] sm:$0xff]
        %v2817 = vld [vmem:[#allocation2 + $0x20] sm:$0xff]
        %v2818 = vld [vmem:[#allocation2 + $0x28] sm:$0xff]
        %v2819 = vld [vmem:[#allocation2 + $0x30] sm:$0xff]
        %v2820 = vld [vmem:[#allocation2 + $0x38] sm:$0xff]
        %v2821 = vld [vmem:[#allocation2 + $0x40] sm:$0xff]
        %v2822 = vld [vmem:[#allocation2 + $0x48] sm:$0xff]
        %v2823 = vld [vmem:[#allocation2 + $0x50] sm:$0xff]
        %v2824 = vld [vmem:[#allocation2 + $0x58] sm:$0xff]
        %v2825 = vld [vmem:[#allocation2 + $0x60] sm:$0xff]
        %v2826 = vld [vmem:[#allocation2 + $0x68] sm:$0xff]
        %v2827 = vld [vmem:[#allocation2 + $0x70] sm:$0xff]
        %v2828 = vld [vmem:[#allocation2 + $0x78] sm:$0xff]
        %v2829 = vld [vmem:[#allocation2 + $0x80] sm:$0xff]
        %v2830 = vld [vmem:[#allocation2 + $0x88] sm:$0xff]
        %v2831 = vld [vmem:[#allocation2 + $0x90] sm:$0xff]
        %v2832 = vld [vmem:[#allocation2 + $0x98] sm:$0xff]
        %v2833 = vld [vmem:[#allocation2 + $0xa0] sm:$0xff]
        %v2834 = vld [vmem:[#allocation2 + $0xa8] sm:$0xff]
        %v2835 = vld [vmem:[#allocation2 + $0xb0] sm:$0xff]
        %v2836 = vld [vmem:[#allocation2 + $0xb8] sm:$0xff]
        %v2837 = vld [vmem:[#allocation2 + $0xc0] sm:$0xff]
        %v2838 = vld [vmem:[#allocation2 + $0xc8] sm:$0xff]
        %v2839 = vld [vmem:[#allocation2 + $0xd0] sm:$0xff]
        %v2840 = vld [vmem:[#allocation2 + $0xd8] sm:$0xff]
        %v2841 = vld [vmem:[#allocation2 + $0xe0] sm:$0xff]
        %v2842 = vld [vmem:[#allocation2 + $0xe8] sm:$0xff]
        %v2843 = vld [vmem:[#allocation2 + $0xf0] sm:$0xff]
        %v2844 = vld [vmem:[#allocation2 + $0xf8] sm:$0xff]
        %v2845 = vld [vmem:[#allocation2 + $0x100] sm:$0xff]
        %v2846 = vld [vmem:[#allocation2 + $0x108] sm:$0xff]
        %v2847 = vld [vmem:[#allocation2 + $0x110] sm:$0xff]
        %v2848 = vld [vmem:[#allocation2 + $0x118] sm:$0xff]
        %v2849 = vld [vmem:[#allocation2 + $0x120] sm:$0xff]
        %v2850 = vld [vmem:[#allocation2 + $0x128] sm:$0xff]
        %v2851 = vld [vmem:[#allocation2 + $0x130] sm:$0xff]
        %v2852 = vld [vmem:[#allocation2 + $0x138] sm:$0xff]
        %v2853 = vld [vmem:[#allocation2 + $0x140] sm:$0xff]
        %v2854 = vld [vmem:[#allocation2 + $0x148] sm:$0xff]
        %v2855 = vld [vmem:[#allocation2 + $0x150] sm:$0xff]
        %v2856 = vld [vmem:[#allocation2 + $0x158] sm:$0xff]
        %v2857 = vld [vmem:[#allocation2 + $0x160] sm:$0xff]
        %v2858 = vld [vmem:[#allocation2 + $0x168] sm:$0xff]
        %v2859 = vld [vmem:[#allocation2 + $0x170] sm:$0xff]
        %v2860 = vld [vmem:[#allocation2 + $0x178] sm:$0xff]
        %v2861 = vld [vmem:[#allocation2 + $0x180] sm:$0xff]
        %v2862 = vld [vmem:[#allocation2 + $0x188] sm:$0xff]
        %v2863 = vld [vmem:[#allocation2 + $0x190] sm:$0xff]
        %v2864 = vld [vmem:[#allocation2 + $0x198] sm:$0xff]
        %v2865 = vld [vmem:[#allocation2 + $0x1a0] sm:$0xff]
        %v2866 = vld [vmem:[#allocation2 + $0x1a8] sm:$0xff]
        %v2867 = vld [vmem:[#allocation2 + $0x1b0] sm:$0xff]
        %v2868 = vld [vmem:[#allocation2 + $0x1b8] sm:$0xff]
        %v2869 = vld [vmem:[#allocation2 + $0x1c0] sm:$0xff]
        %v2870 = vld [vmem:[#allocation2 + $0x1c8] sm:$0xff]
        %v2871 = vld [vmem:[#allocation2 + $0x1d0] sm:$0xff]
        %v2872 = vld [vmem:[#allocation2 + $0x1d8] sm:$0xff]
        %v2873 = vld [vmem:[#allocation2 + $0x1e0] sm:$0xff]
        %v2874 = vld [vmem:[#allocation2 + $0x1e8] sm:$0xff]
        %v2875 = vld [vmem:[#allocation2 + $0x1f0] sm:$0xff]
        %v2876 = vld [vmem:[#allocation2 + $0x1f8] sm:$0xff]
        %v2877 = vld [vmem:[#allocation2 + $0x200] sm:$0xff]
        %v2878 = vld [vmem:[#allocation2 + $0x208] sm:$0xff]
        %v2879 = vld [vmem:[#allocation2 + $0x210] sm:$0xff]
        %v2880 = vld [vmem:[#allocation2 + $0x218] sm:$0xff]
        %v2881 = vld [vmem:[#allocation2 + $0x220] sm:$0xff]
        %v2882 = vld [vmem:[#allocation2 + $0x228] sm:$0xff]
        %v2883 = vld [vmem:[#allocation2 + $0x230] sm:$0xff]
        %v2884 = vld [vmem:[#allocation2 + $0x238] sm:$0xff]
        %v2885 = vld [vmem:[#allocation2 + $0x240] sm:$0xff]
        %v2886 = vld [vmem:[#allocation2 + $0x248] sm:$0xff]
        %v2887 = vld [vmem:[#allocation2 + $0x250] sm:$0xff]
        %v2888 = vld [vmem:[#allocation2 + $0x258] sm:$0xff]
        %v2889 = vld [vmem:[#allocation2 + $0x260] sm:$0xff]
        %v2890 = vld [vmem:[#allocation2 + $0x268] sm:$0xff]
        %v2891 = vld [vmem:[#allocation2 + $0x270] sm:$0xff]
        %v2892 = vld [vmem:[#allocation2 + $0x278] sm:$0xff]
        %v2893 = vld [vmem:[#allocation2 + $0x280] sm:$0xff]
        %v2894 = vld [vmem:[#allocation2 + $0x288] sm:$0xff]
        %v2895 = vld [vmem:[#allocation2 + $0x290] sm:$0xff]
        %v2896 = vld [vmem:[#allocation2 + $0x298] sm:$0xff]
        %v2897 = vld [vmem:[#allocation2 + $0x2a0] sm:$0xff]
        %v2898 = vld [vmem:[#allocation2 + $0x2a8] sm:$0xff]
        %v2899 = vld [vmem:[#allocation2 + $0x2b0] sm:$0xff]
        %v2900 = vld [vmem:[#allocation2 + $0x2b8] sm:$0xff]
        %v2901 = vld [vmem:[#allocation2 + $0x2c0] sm:$0xff]
        %v2902 = vld [vmem:[#allocation2 + $0x2c8] sm:$0xff]
        %v2903 = vld [vmem:[#allocation2 + $0x2d0] sm:$0xff]
        %v2904 = vld [vmem:[#allocation2 + $0x2d8] sm:$0xff]
        %v2905 = vld [vmem:[#allocation2 + $0x2e0] sm:$0xff]
        %v2906 = vld [vmem:[#allocation2 + $0x2e8] sm:$0xff]
        %v2907 = vld [vmem:[#allocation2 + $0x2f0] sm:$0xff]
        %v2908 = vld [vmem:[#allocation2 + $0x2f8] sm:$0xff]
        %v2909 = vpack.c.bf16 %v2689, %v2685
        %v2910 = vpack.c.bf16 %v2690, %v2686
        %v2911 = vpack.c.bf16 %v2691, %v2687
        %v2912 = vpack.c.bf16 %v2692, %v2688
        %v2913 = vpack.c.bf16 %v2697, %v2693
        %v2914 = vpack.c.bf16 %v2698, %v2694
        %v2915 = vpack.c.bf16 %v2699, %v2695
        %v2916 = vpack.c.bf16 %v2700, %v2696
        %v2917 = vpack.c.bf16 %v2705, %v2701
        %v2918 = vpack.c.bf16 %v2706, %v2702
        %v2919 = vpack.c.bf16 %v2707, %v2703
        %v2920 = vpack.c.bf16 %v2708, %v2704
        %v2921 = vpack.c.bf16 %v2713, %v2709
        %v2922 = vpack.c.bf16 %v2714, %v2710
        %v2923 = vpack.c.bf16 %v2715, %v2711
        %v2924 = vpack.c.bf16 %v2716, %v2712
        %v2925 = vpack.c.bf16 %v2721, %v2717
        %v2926 = vpack.c.bf16 %v2722, %v2718
        %v2927 = vpack.c.bf16 %v2723, %v2719
        %v2928 = vpack.c.bf16 %v2724, %v2720
        %v2929 = vpack.c.bf16 %v2729, %v2725
        %v2930 = vpack.c.bf16 %v2730, %v2726
        %v2931 = vpack.c.bf16 %v2731, %v2727
        %v2932 = vpack.c.bf16 %v2732, %v2728
        %v2933 = vpack.c.bf16 %v2737, %v2733
        %v2934 = vpack.c.bf16 %v2738, %v2734
        %v2935 = vpack.c.bf16 %v2739, %v2735
        %v2936 = vpack.c.bf16 %v2740, %v2736
        %v2937 = vpack.c.bf16 %v2745, %v2741
        %v2938 = vpack.c.bf16 %v2746, %v2742
        %v2939 = vpack.c.bf16 %v2747, %v2743
        %v2940 = vpack.c.bf16 %v2748, %v2744
        %v2941 = vpack.c.bf16 %v2753, %v2749
        %v2942 = vpack.c.bf16 %v2754, %v2750
        %v2943 = vpack.c.bf16 %v2755, %v2751
        %v2944 = vpack.c.bf16 %v2756, %v2752
        %v2945 = vpack.c.bf16 %v2761, %v2757
        %v2946 = vpack.c.bf16 %v2762, %v2758
        %v2947 = vpack.c.bf16 %v2763, %v2759
        %v2948 = vpack.c.bf16 %v2764, %v2760
        %v2949 = vpack.c.bf16 %v2769, %v2765
        %v2950 = vpack.c.bf16 %v2770, %v2766
        %v2951 = vpack.c.bf16 %v2771, %v2767
        %v2952 = vpack.c.bf16 %v2772, %v2768
        %v2953 = vpack.c.bf16 %v2777, %v2773
        %v2954 = vpack.c.bf16 %v2778, %v2774
        %v2955 = vpack.c.bf16 %v2779, %v2775
        %v2956 = vpack.c.bf16 %v2780, %v2776
        %v2957 = vpack.c.bf16 %v2785, %v2781
        %v2958 = vpack.c.bf16 %v2786, %v2782
        %v2959 = vpack.c.bf16 %v2787, %v2783
        %v2960 = vpack.c.bf16 %v2788, %v2784
        %v2961 = vpack.c.bf16 %v2793, %v2789
        %v2962 = vpack.c.bf16 %v2794, %v2790
        %v2963 = vpack.c.bf16 %v2795, %v2791
        %v2964 = vpack.c.bf16 %v2796, %v2792
        %v2965 = vpack.c.bf16 %v2801, %v2797
        %v2966 = vpack.c.bf16 %v2802, %v2798
        %v2967 = vpack.c.bf16 %v2803, %v2799
        %v2968 = vpack.c.bf16 %v2804, %v2800
        %v2969 = vpack.c.bf16 %v2809, %v2805
        %v2970 = vpack.c.bf16 %v2810, %v2806
        %v2971 = vpack.c.bf16 %v2811, %v2807
        %v2972 = vpack.c.bf16 %v2812, %v2808
        %v2973 = vld [vmem:[%s324] sm:$0xff]
        %v2974 = vld [vmem:[%s324 + $0x8] sm:$0xf]
        %v2975 = vld [vmem:[%s324 + $0xc] sm:$0xff]
        %v2976 = vld [vmem:[%s324 + $0x14] sm:$0xf]
        %v2977 = vld [vmem:[%s324 + $0x18] sm:$0xff]
        %v2978 = vld [vmem:[%s324 + $0x20] sm:$0xf]
        %v2979 = vld [vmem:[%s324 + $0x24] sm:$0xff]
        %v2980 = vld [vmem:[%s324 + $0x2c] sm:$0xf]
        %v2981 = vld [vmem:[%s324 + $0x30] sm:$0xff]
        %v2982 = vld [vmem:[%s324 + $0x38] sm:$0xf]
        %v2983 = vld [vmem:[%s324 + $0x3c] sm:$0xff]
        %v2984 = vld [vmem:[%s324 + $0x44] sm:$0xf]
        %v2985 = vld [vmem:[%s324 + $0x48] sm:$0xff]
        %v2986 = vld [vmem:[%s324 + $0x50] sm:$0xf]
        %v2987 = vld [vmem:[%s324 + $0x54] sm:$0xff]
        %v2988 = vld [vmem:[%s324 + $0x5c] sm:$0xf]
        %v2989 = vld [vmem:[%s324 + $0x60] sm:$0xff]
        %v2990 = vld [vmem:[%s324 + $0x68] sm:$0xf]
        %v2991 = vld [vmem:[%s324 + $0x6c] sm:$0xff]
        %v2992 = vld [vmem:[%s324 + $0x74] sm:$0xf]
        %v2993 = vld [vmem:[%s324 + $0x78] sm:$0xff]
        %v2994 = vld [vmem:[%s324 + $0x80] sm:$0xf]
        %v2995 = vld [vmem:[%s324 + $0x84] sm:$0xff]
        %v2996 = vld [vmem:[%s324 + $0x8c] sm:$0xf]
        %v2997 = vld [vmem:[%s324 + $0x90] sm:$0xff]
        %v2998 = vld [vmem:[%s324 + $0x98] sm:$0xf]
        %v2999 = vld [vmem:[%s324 + $0x9c] sm:$0xff]
        %v3000 = vld [vmem:[%s324 + $0xa4] sm:$0xf]
        %v3001 = vld [vmem:[%s324 + $0xa8] sm:$0xff]
        %v3002 = vld [vmem:[%s324 + $0xb0] sm:$0xf]
        %v3003 = vld [vmem:[%s324 + $0xb4] sm:$0xff]
        %v3004 = vld [vmem:[%s324 + $0xbc] sm:$0xf]
        %v3005 = vld [vmem:[%s324 + $0xc0] sm:$0xff]
        %v3006 = vld [vmem:[%s324 + $0xc8] sm:$0xf]
        %v3007 = vld [vmem:[%s324 + $0xcc] sm:$0xff]
        %v3008 = vld [vmem:[%s324 + $0xd4] sm:$0xf]
        %v3009 = vld [vmem:[%s324 + $0xd8] sm:$0xff]
        %v3010 = vld [vmem:[%s324 + $0xe0] sm:$0xf]
        %v3011 = vld [vmem:[%s324 + $0xe4] sm:$0xff]
        %v3012 = vld [vmem:[%s324 + $0xec] sm:$0xf]
        %v3013 = vld [vmem:[%s324 + $0xf0] sm:$0xff]
        %v3014 = vld [vmem:[%s324 + $0xf8] sm:$0xf]
        %v3015 = vld [vmem:[%s324 + $0xfc] sm:$0xff]
        %v3016 = vld [vmem:[%s324 + $0x104] sm:$0xf]
        %v3017 = vld [vmem:[%s324 + $0x108] sm:$0xff]
        %v3018 = vld [vmem:[%s324 + $0x110] sm:$0xf]
        %v3019 = vld [vmem:[%s324 + $0x114] sm:$0xff]
        %v3020 = vld [vmem:[%s324 + $0x11c] sm:$0xf]
        %v3021 = vld [vmem:[%s324 + $0x120] sm:$0xff]
        %v3022 = vld [vmem:[%s324 + $0x128] sm:$0xf]
        %v3023 = vld [vmem:[%s324 + $0x12c] sm:$0xff]
        %v3024 = vld [vmem:[%s324 + $0x134] sm:$0xf]
        %v3025 = vld [vmem:[%s324 + $0x138] sm:$0xff]
        %v3026 = vld [vmem:[%s324 + $0x140] sm:$0xf]
        %v3027 = vld [vmem:[%s324 + $0x144] sm:$0xff]
        %v3028 = vld [vmem:[%s324 + $0x14c] sm:$0xf]
        %v3029 = vld [vmem:[%s324 + $0x150] sm:$0xff]
        %v3030 = vld [vmem:[%s324 + $0x158] sm:$0xf]
        %v3031 = vld [vmem:[%s324 + $0x15c] sm:$0xff]
        %v3032 = vld [vmem:[%s324 + $0x164] sm:$0xf]
        %v3033 = vld [vmem:[%s324 + $0x168] sm:$0xff]
        %v3034 = vld [vmem:[%s324 + $0x170] sm:$0xf]
        %v3035 = vld [vmem:[%s324 + $0x174] sm:$0xff]
        %v3036 = vld [vmem:[%s324 + $0x17c] sm:$0xf]
        %v3037 = vld [vmem:[%s324 + $0x180] sm:$0xff]
        %v3038 = vld [vmem:[%s324 + $0x188] sm:$0xf]
        %v3039 = vld [vmem:[%s324 + $0x18c] sm:$0xff]
        %v3040 = vld [vmem:[%s324 + $0x194] sm:$0xf]
        %v3041 = vld [vmem:[%s324 + $0x198] sm:$0xff]
        %v3042 = vld [vmem:[%s324 + $0x1a0] sm:$0xf]
        %v3043 = vld [vmem:[%s324 + $0x1a4] sm:$0xff]
        %v3044 = vld [vmem:[%s324 + $0x1ac] sm:$0xf]
        %v3045 = vld [vmem:[%s324 + $0x1b0] sm:$0xff]
        %v3046 = vld [vmem:[%s324 + $0x1b8] sm:$0xf]
        %v3047 = vld [vmem:[%s324 + $0x1bc] sm:$0xff]
        %v3048 = vld [vmem:[%s324 + $0x1c4] sm:$0xf]
        %v3049 = vld [vmem:[%s324 + $0x1c8] sm:$0xff]
        %v3050 = vld [vmem:[%s324 + $0x1d0] sm:$0xf]
        %v3051 = vld [vmem:[%s324 + $0x1d4] sm:$0xff]
        %v3052 = vld [vmem:[%s324 + $0x1dc] sm:$0xf]
        %v3053 = vld [vmem:[%s324 + $0x1e0] sm:$0xff]
        %v3054 = vld [vmem:[%s324 + $0x1e8] sm:$0xf]
        %v3055 = vld [vmem:[%s324 + $0x1ec] sm:$0xff]
        %v3056 = vld [vmem:[%s324 + $0x1f4] sm:$0xf]
        %v3057 = vld [vmem:[%s324 + $0x1f8] sm:$0xff]
        %v3058 = vld [vmem:[%s324 + $0x200] sm:$0xf]
        %v3059 = vld [vmem:[%s324 + $0x204] sm:$0xff]
        %v3060 = vld [vmem:[%s324 + $0x20c] sm:$0xf]
        %v3061 = vld [vmem:[%s324 + $0x210] sm:$0xff]
        %v3062 = vld [vmem:[%s324 + $0x218] sm:$0xf]
        %v3063 = vld [vmem:[%s324 + $0x21c] sm:$0xff]
        %v3064 = vld [vmem:[%s324 + $0x224] sm:$0xf]
        %v3065 = vld [vmem:[%s324 + $0x228] sm:$0xff]
        %v3066 = vld [vmem:[%s324 + $0x230] sm:$0xf]
        %v3067 = vld [vmem:[%s324 + $0x234] sm:$0xff]
        %v3068 = vld [vmem:[%s324 + $0x23c] sm:$0xf]
        %v3069 = vld [vmem:[%s324 + $0x240] sm:$0xff]
        %v3070 = vld [vmem:[%s324 + $0x248] sm:$0xf]
        %v3071 = vld [vmem:[%s324 + $0x24c] sm:$0xff]
        %v3072 = vld [vmem:[%s324 + $0x254] sm:$0xf]
        %v3073 = vld [vmem:[%s324 + $0x258] sm:$0xff]
        %v3074 = vld [vmem:[%s324 + $0x260] sm:$0xf]
        %v3075 = vld [vmem:[%s324 + $0x264] sm:$0xff]
        %v3076 = vld [vmem:[%s324 + $0x26c] sm:$0xf]
        %v3077 = vld [vmem:[%s324 + $0x270] sm:$0xff]
        %v3078 = vld [vmem:[%s324 + $0x278] sm:$0xf]
        %v3079 = vld [vmem:[%s324 + $0x27c] sm:$0xff]
        %v3080 = vld [vmem:[%s324 + $0x284] sm:$0xf]
        %v3081 = vld [vmem:[%s324 + $0x288] sm:$0xff]
        %v3082 = vld [vmem:[%s324 + $0x290] sm:$0xf]
        %v3083 = vld [vmem:[%s324 + $0x294] sm:$0xff]
        %v3084 = vld [vmem:[%s324 + $0x29c] sm:$0xf]
        %v3085 = vld [vmem:[%s324 + $0x2a0] sm:$0xff]
        %v3086 = vld [vmem:[%s324 + $0x2a8] sm:$0xf]
        %v3087 = vld [vmem:[%s324 + $0x2ac] sm:$0xff]
        %v3088 = vld [vmem:[%s324 + $0x2b4] sm:$0xf]
        %v3089 = vld [vmem:[%s324 + $0x2b8] sm:$0xff]
        %v3090 = vld [vmem:[%s324 + $0x2c0] sm:$0xf]
        %v3091 = vld [vmem:[%s324 + $0x2c4] sm:$0xff]
        %v3092 = vld [vmem:[%s324 + $0x2cc] sm:$0xf]
        %v3093 = vld [vmem:[%s324 + $0x2d0] sm:$0xff]
        %v3094 = vld [vmem:[%s324 + $0x2d8] sm:$0xf]
        %v3095 = vld [vmem:[%s324 + $0x2dc] sm:$0xff]
        %v3096 = vld [vmem:[%s324 + $0x2e4] sm:$0xf]
        %v3097 = vld [vmem:[%s324 + $0x2e8] sm:$0xff]
        %v3098 = vld [vmem:[%s324 + $0x2f0] sm:$0xf]
        %v3099 = vld [vmem:[%s324 + $0x2f4] sm:$0xff]
        %v3100 = vld [vmem:[%s324 + $0x2fc] sm:$0xf]
        %v3229 = vunpack.c.l.b16 %v2973
        %v3230 = vunpack.c.h.b16 %v2973
        %v3231 = vunpack.c.l.b16 %v2974
        %v3232 = vunpack.c.l.b16 %v2975
        %v3233 = vunpack.c.h.b16 %v2975
        %v3234 = vunpack.c.l.b16 %v2976
        %v3235 = vunpack.c.l.b16 %v2977
        %v3236 = vunpack.c.h.b16 %v2977
        %v3237 = vunpack.c.l.b16 %v2978
        %v3238 = vunpack.c.l.b16 %v2979
        %v3239 = vunpack.c.h.b16 %v2979
        %v3240 = vunpack.c.l.b16 %v2980
        %v3241 = vunpack.c.l.b16 %v2981
        %v3242 = vunpack.c.h.b16 %v2981
        %v3243 = vunpack.c.l.b16 %v2982
        %v3244 = vunpack.c.l.b16 %v2983
        %v3245 = vunpack.c.h.b16 %v2983
        %v3246 = vunpack.c.l.b16 %v2984
        %v3247 = vunpack.c.l.b16 %v2985
        %v3248 = vunpack.c.h.b16 %v2985
        %v3249 = vunpack.c.l.b16 %v2986
        %v3250 = vunpack.c.l.b16 %v2987
        %v3251 = vunpack.c.h.b16 %v2987
        %v3252 = vunpack.c.l.b16 %v2988
        %v3253 = vunpack.c.l.b16 %v2989
        %v3254 = vunpack.c.h.b16 %v2989
        %v3255 = vunpack.c.l.b16 %v2990
        %v3256 = vunpack.c.l.b16 %v2991
        %v3257 = vunpack.c.h.b16 %v2991
        %v3258 = vunpack.c.l.b16 %v2992
        %v3259 = vunpack.c.l.b16 %v2993
        %v3260 = vunpack.c.h.b16 %v2993
        %v3261 = vunpack.c.l.b16 %v2994
        %v3262 = vunpack.c.l.b16 %v2995
        %v3263 = vunpack.c.h.b16 %v2995
        %v3264 = vunpack.c.l.b16 %v2996
        %v3265 = vunpack.c.l.b16 %v2997
        %v3266 = vunpack.c.h.b16 %v2997
        %v3267 = vunpack.c.l.b16 %v2998
        %v3268 = vunpack.c.l.b16 %v2999
        %v3269 = vunpack.c.h.b16 %v2999
        %v3270 = vunpack.c.l.b16 %v3000
        %v3271 = vunpack.c.l.b16 %v3001
        %v3272 = vunpack.c.h.b16 %v3001
        %v3273 = vunpack.c.l.b16 %v3002
        %v3274 = vunpack.c.l.b16 %v3003
        %v3275 = vunpack.c.h.b16 %v3003
        %v3276 = vunpack.c.l.b16 %v3004
        %v3277 = vunpack.c.l.b16 %v3005
        %v3278 = vunpack.c.h.b16 %v3005
        %v3279 = vunpack.c.l.b16 %v3006
        %v3280 = vunpack.c.l.b16 %v3007
        %v3281 = vunpack.c.h.b16 %v3007
        %v3282 = vunpack.c.l.b16 %v3008
        %v3283 = vunpack.c.l.b16 %v3009
        %v3284 = vunpack.c.h.b16 %v3009
        %v3285 = vunpack.c.l.b16 %v3010
        %v3286 = vunpack.c.l.b16 %v3011
        %v3287 = vunpack.c.h.b16 %v3011
        %v3288 = vunpack.c.l.b16 %v3012
        %v3289 = vunpack.c.l.b16 %v3013
        %v3290 = vunpack.c.h.b16 %v3013
        %v3291 = vunpack.c.l.b16 %v3014
        %v3292 = vunpack.c.l.b16 %v3015
        %v3293 = vunpack.c.h.b16 %v3015
        %v3294 = vunpack.c.l.b16 %v3016
        %v3295 = vunpack.c.l.b16 %v3017
        %v3296 = vunpack.c.h.b16 %v3017
        %v3297 = vunpack.c.l.b16 %v3018
        %v3298 = vunpack.c.l.b16 %v3019
        %v3299 = vunpack.c.h.b16 %v3019
        %v3300 = vunpack.c.l.b16 %v3020
        %v3301 = vunpack.c.l.b16 %v3021
        %v3302 = vunpack.c.h.b16 %v3021
        %v3303 = vunpack.c.l.b16 %v3022
        %v3304 = vunpack.c.l.b16 %v3023
        %v3305 = vunpack.c.h.b16 %v3023
        %v3306 = vunpack.c.l.b16 %v3024
        %v3307 = vunpack.c.l.b16 %v3025
        %v3308 = vunpack.c.h.b16 %v3025
        %v3309 = vunpack.c.l.b16 %v3026
        %v3310 = vunpack.c.l.b16 %v3027
        %v3311 = vunpack.c.h.b16 %v3027
        %v3312 = vunpack.c.l.b16 %v3028
        %v3313 = vunpack.c.l.b16 %v3029
        %v3314 = vunpack.c.h.b16 %v3029
        %v3315 = vunpack.c.l.b16 %v3030
        %v3316 = vunpack.c.l.b16 %v3031
        %v3317 = vunpack.c.h.b16 %v3031
        %v3318 = vunpack.c.l.b16 %v3032
        %v3319 = vunpack.c.l.b16 %v3033
        %v3320 = vunpack.c.h.b16 %v3033
        %v3321 = vunpack.c.l.b16 %v3034
        %v3322 = vunpack.c.l.b16 %v3035
        %v3323 = vunpack.c.h.b16 %v3035
        %v3324 = vunpack.c.l.b16 %v3036
        %v3325 = vunpack.c.l.b16 %v3037
        %v3326 = vunpack.c.h.b16 %v3037
        %v3327 = vunpack.c.l.b16 %v3038
        %v3328 = vunpack.c.l.b16 %v3039
        %v3329 = vunpack.c.h.b16 %v3039
        %v3330 = vunpack.c.l.b16 %v3040
        %v3331 = vunpack.c.l.b16 %v3041
        %v3332 = vunpack.c.h.b16 %v3041
        %v3333 = vunpack.c.l.b16 %v3042
        %v3334 = vunpack.c.l.b16 %v3043
        %v3335 = vunpack.c.h.b16 %v3043
        %v3336 = vunpack.c.l.b16 %v3044
        %v3337 = vunpack.c.l.b16 %v3045
        %v3338 = vunpack.c.h.b16 %v3045
        %v3339 = vunpack.c.l.b16 %v3046
        %v3340 = vunpack.c.l.b16 %v3047
        %v3341 = vunpack.c.h.b16 %v3047
        %v3342 = vunpack.c.l.b16 %v3048
        %v3343 = vunpack.c.l.b16 %v3049
        %v3344 = vunpack.c.h.b16 %v3049
        %v3345 = vunpack.c.l.b16 %v3050
        %v3346 = vunpack.c.l.b16 %v3051
        %v3347 = vunpack.c.h.b16 %v3051
        %v3348 = vunpack.c.l.b16 %v3052
        %v3349 = vunpack.c.l.b16 %v3053
        %v3350 = vunpack.c.h.b16 %v3053
        %v3351 = vunpack.c.l.b16 %v3054
        %v3352 = vunpack.c.l.b16 %v3055
        %v3353 = vunpack.c.h.b16 %v3055
        %v3354 = vunpack.c.l.b16 %v3056
        %v3355 = vunpack.c.l.b16 %v3057
        %v3356 = vunpack.c.h.b16 %v3057
        %v3357 = vunpack.c.l.b16 %v3058
        %v3358 = vunpack.c.l.b16 %v3059
        %v3359 = vunpack.c.h.b16 %v3059
        %v3360 = vunpack.c.l.b16 %v3060
        %v3361 = vunpack.c.l.b16 %v3061
        %v3362 = vunpack.c.h.b16 %v3061
        %v3363 = vunpack.c.l.b16 %v3062
        %v3364 = vunpack.c.l.b16 %v3063
        %v3365 = vunpack.c.h.b16 %v3063
        %v3366 = vunpack.c.l.b16 %v3064
        %v3367 = vunpack.c.l.b16 %v3065
        %v3368 = vunpack.c.h.b16 %v3065
        %v3369 = vunpack.c.l.b16 %v3066
        %v3370 = vunpack.c.l.b16 %v3067
        %v3371 = vunpack.c.h.b16 %v3067
        %v3372 = vunpack.c.l.b16 %v3068
        %v3373 = vunpack.c.l.b16 %v3069
        %v3374 = vunpack.c.h.b16 %v3069
        %v3375 = vunpack.c.l.b16 %v3070
        %v3376 = vunpack.c.l.b16 %v3071
        %v3377 = vunpack.c.h.b16 %v3071
        %v3378 = vunpack.c.l.b16 %v3072
        %v3379 = vunpack.c.l.b16 %v3073
        %v3380 = vunpack.c.h.b16 %v3073
        %v3381 = vunpack.c.l.b16 %v3074
        %v3382 = vunpack.c.l.b16 %v3075
        %v3383 = vunpack.c.h.b16 %v3075
        %v3384 = vunpack.c.l.b16 %v3076
        %v3385 = vunpack.c.l.b16 %v3077
        %v3386 = vunpack.c.h.b16 %v3077
        %v3387 = vunpack.c.l.b16 %v3078
        %v3388 = vunpack.c.l.b16 %v3079
        %v3389 = vunpack.c.h.b16 %v3079
        %v3390 = vunpack.c.l.b16 %v3080
        %v3391 = vunpack.c.l.b16 %v3081
        %v3392 = vunpack.c.h.b16 %v3081
        %v3393 = vunpack.c.l.b16 %v3082
        %v3394 = vunpack.c.l.b16 %v3083
        %v3395 = vunpack.c.h.b16 %v3083
        %v3396 = vunpack.c.l.b16 %v3084
        %v3397 = vunpack.c.l.b16 %v3085
        %v3398 = vunpack.c.h.b16 %v3085
        %v3399 = vunpack.c.l.b16 %v3086
        %v3400 = vunpack.c.l.b16 %v3087
        %v3401 = vunpack.c.h.b16 %v3087
        %v3402 = vunpack.c.l.b16 %v3088
        %v3403 = vunpack.c.l.b16 %v3089
        %v3404 = vunpack.c.h.b16 %v3089
        %v3405 = vunpack.c.l.b16 %v3090
        %v3406 = vunpack.c.l.b16 %v3091
        %v3407 = vunpack.c.h.b16 %v3091
        %v3408 = vunpack.c.l.b16 %v3092
        %v3409 = vunpack.c.l.b16 %v3093
        %v3410 = vunpack.c.h.b16 %v3093
        %v3411 = vunpack.c.l.b16 %v3094
        %v3412 = vunpack.c.l.b16 %v3095
        %v3413 = vunpack.c.h.b16 %v3095
        %v3414 = vunpack.c.l.b16 %v3096
        %v3415 = vunpack.c.l.b16 %v3097
        %v3416 = vunpack.c.h.b16 %v3097
        %v3417 = vunpack.c.l.b16 %v3098
        %v3418 = vunpack.c.l.b16 %v3099
        %v3419 = vunpack.c.h.b16 %v3099
        %v3420 = vunpack.c.l.b16 %v3100
        %v3421 = vpack.c.b16 %v3232, %v3229
        %v3422 = vpack.c.b16 %v3233, %v3230
        %v3423 = vpack.c.b16 %v3234, %v3231
        %v3424 = vpack.c.b16 %v3238, %v3235
        %v3425 = vpack.c.b16 %v3239, %v3236
        %v3426 = vpack.c.b16 %v3240, %v3237
        %v3427 = vpack.c.b16 %v3244, %v3241
        %v3428 = vpack.c.b16 %v3245, %v3242
        %v3429 = vpack.c.b16 %v3246, %v3243
        %v3430 = vpack.c.b16 %v3250, %v3247
        %v3431 = vpack.c.b16 %v3251, %v3248
        %v3432 = vpack.c.b16 %v3252, %v3249
        %v3433 = vpack.c.b16 %v3256, %v3253
        %v3434 = vpack.c.b16 %v3257, %v3254
        %v3435 = vpack.c.b16 %v3258, %v3255
        %v3436 = vpack.c.b16 %v3262, %v3259
        %v3437 = vpack.c.b16 %v3263, %v3260
        %v3438 = vpack.c.b16 %v3264, %v3261
        %v3439 = vpack.c.b16 %v3268, %v3265
        %v3440 = vpack.c.b16 %v3269, %v3266
        %v3441 = vpack.c.b16 %v3270, %v3267
        %v3442 = vpack.c.b16 %v3274, %v3271
        %v3443 = vpack.c.b16 %v3275, %v3272
        %v3444 = vpack.c.b16 %v3276, %v3273
        %v3445 = vpack.c.b16 %v3280, %v3277
        %v3446 = vpack.c.b16 %v3281, %v3278
        %v3447 = vpack.c.b16 %v3282, %v3279
        %v3448 = vpack.c.b16 %v3286, %v3283
        %v3449 = vpack.c.b16 %v3287, %v3284
        %v3450 = vpack.c.b16 %v3288, %v3285
        %v3451 = vpack.c.b16 %v3292, %v3289
        %v3452 = vpack.c.b16 %v3293, %v3290
        %v3453 = vpack.c.b16 %v3294, %v3291
        %v3454 = vpack.c.b16 %v3298, %v3295
        %v3455 = vpack.c.b16 %v3299, %v3296
        %v3456 = vpack.c.b16 %v3300, %v3297
        %v3457 = vpack.c.b16 %v3304, %v3301
        %v3458 = vpack.c.b16 %v3305, %v3302
        %v3459 = vpack.c.b16 %v3306, %v3303
        %v3460 = vpack.c.b16 %v3310, %v3307
        %v3461 = vpack.c.b16 %v3311, %v3308
        %v3462 = vpack.c.b16 %v3312, %v3309
        %v3463 = vpack.c.b16 %v3316, %v3313
        %v3464 = vpack.c.b16 %v3317, %v3314
        %v3465 = vpack.c.b16 %v3318, %v3315
        %v3466 = vpack.c.b16 %v3322, %v3319
        %v3467 = vpack.c.b16 %v3323, %v3320
        %v3468 = vpack.c.b16 %v3324, %v3321
        %v3469 = vpack.c.b16 %v3328, %v3325
        %v3470 = vpack.c.b16 %v3329, %v3326
        %v3471 = vpack.c.b16 %v3330, %v3327
        %v3472 = vpack.c.b16 %v3334, %v3331
        %v3473 = vpack.c.b16 %v3335, %v3332
        %v3474 = vpack.c.b16 %v3336, %v3333
        %v3475 = vpack.c.b16 %v3340, %v3337
        %v3476 = vpack.c.b16 %v3341, %v3338
        %v3477 = vpack.c.b16 %v3342, %v3339
        %v3478 = vpack.c.b16 %v3346, %v3343
        %v3479 = vpack.c.b16 %v3347, %v3344
        %v3480 = vpack.c.b16 %v3348, %v3345
        %v3481 = vpack.c.b16 %v3352, %v3349
        %v3482 = vpack.c.b16 %v3353, %v3350
        %v3483 = vpack.c.b16 %v3354, %v3351
        %v3484 = vpack.c.b16 %v3358, %v3355
        %v3485 = vpack.c.b16 %v3359, %v3356
        %v3486 = vpack.c.b16 %v3360, %v3357
        %v3487 = vpack.c.b16 %v3364, %v3361
        %v3488 = vpack.c.b16 %v3365, %v3362
        %v3489 = vpack.c.b16 %v3366, %v3363
        %v3490 = vpack.c.b16 %v3370, %v3367
        %v3491 = vpack.c.b16 %v3371, %v3368
        %v3492 = vpack.c.b16 %v3372, %v3369
        %v3493 = vpack.c.b16 %v3376, %v3373
        %v3494 = vpack.c.b16 %v3377, %v3374
        %v3495 = vpack.c.b16 %v3378, %v3375
        %v3496 = vpack.c.b16 %v3382, %v3379
        %v3497 = vpack.c.b16 %v3383, %v3380
        %v3498 = vpack.c.b16 %v3384, %v3381
        %v3499 = vpack.c.b16 %v3388, %v3385
        %v3500 = vpack.c.b16 %v3389, %v3386
        %v3501 = vpack.c.b16 %v3390, %v3387
        %v3502 = vpack.c.b16 %v3394, %v3391
        %v3503 = vpack.c.b16 %v3395, %v3392
        %v3504 = vpack.c.b16 %v3396, %v3393
        %v3505 = vpack.c.b16 %v3400, %v3397
        %v3506 = vpack.c.b16 %v3401, %v3398
        %v3507 = vpack.c.b16 %v3402, %v3399
        %v3508 = vpack.c.b16 %v3406, %v3403
        %v3509 = vpack.c.b16 %v3407, %v3404
        %v3510 = vpack.c.b16 %v3408, %v3405
        %v3511 = vpack.c.b16 %v3412, %v3409
        %v3512 = vpack.c.b16 %v3413, %v3410
        %v3513 = vpack.c.b16 %v3414, %v3411
        %v3514 = vpack.c.b16 %v3418, %v3415
        %v3515 = vpack.c.b16 %v3419, %v3416
        %v3516 = vpack.c.b16 %v3420, %v3417
        %3613 = vmatprep.subr.bf16.mxu0 %v3422
        %3614 = vmatpush1.bf16.msra.mxu0 %v3421
        %3615 = vmatprep.subr.bf16.mxu0 %v3425
        %3616 = vmatpush1.bf16.msra.mxu0 %v3424
        %3617 = vmatprep.subr.bf16.mxu0 %v3428
        %3618 = vmatpush1.bf16.msra.mxu0 %v3427
        %3619 = vmatprep.subr.bf16.mxu0 %v3431
        %3620 = vmatpush1.bf16.msra.mxu0 %v3430
        %3621 = vmatprep.subr.bf16.mxu0 %v3434
        %3622 = vmatpush1.bf16.msra.mxu0 %v3433
        %3623 = vmatprep.subr.bf16.mxu0 %v3437
        %3624 = vmatpush1.bf16.msra.mxu0 %v3436
        %3625 = vmatprep.subr.bf16.mxu0 %v3440
        %3626 = vmatpush1.bf16.msra.mxu0 %v3439
        %3627 = vmatprep.subr.bf16.mxu0 %v3443
        %3628 = vmatpush1.bf16.msra.mxu0 %v3442
        %3629 = vmatprep.subr.bf16.mxu0 %v3446
        %3630 = vmatpush1.bf16.msra.mxu0 %v3445
        %3631 = vmatprep.subr.bf16.mxu0 %v3449
        %3632 = vmatpush1.bf16.msra.mxu0 %v3448
        %3633 = vmatprep.subr.bf16.mxu0 %v3452
        %3634 = vmatpush1.bf16.msra.mxu0 %v3451
        %3635 = vmatprep.subr.bf16.mxu0 %v3455
        %3636 = vmatpush1.bf16.msra.mxu0 %v3454
        %3637 = vmatprep.subr.bf16.mxu0 %v3458
        %3638 = vmatpush1.bf16.msra.mxu0 %v3457
        %3639 = vmatprep.subr.bf16.mxu0 %v3461
        %3640 = vmatpush1.bf16.msra.mxu0 %v3460
        %3641 = vmatprep.subr.bf16.mxu0 %v3464
        %3642 = vmatpush1.bf16.msra.mxu0 %v3463
        %3643 = vmatprep.subr.bf16.mxu0 %v3467
        %3644 = vmatpush1.bf16.msra.mxu0 %v3466
        %3645 = vmatprep.mubr.bf16.mxu0 %v2910
        %3646 = vmatmul.mubr.bf16.gmra.mrb[0].mxu0 %v2909
        %v3647 = vpop.f32.mrb[0].mxu0
        %v3648 = vadd.f32 0.0, %v3647
        %v3649 = vpop.f32.mrb[0].mxu0
        %v3650 = vadd.f32 0.0, %v3649
        %v3651 = vpop.f32.mrb[0].mxu0
        %v3652 = vadd.f32 0.0, %v3651
        %v3653 = vpop.f32.mrb[0].mxu0
        %v3654 = vadd.f32 0.0, %v3653
        %3655 = vmatprep.mubr.bf16.mxu0 %v2914
        %3656 = vmatmul.mubr.bf16.gmra.mrb[0].mxu0 %v2913
        %v3657 = vpop.f32.mrb[0].mxu0
        %v3658 = vadd.f32 0.0, %v3657
        %v3659 = vpop.f32.mrb[0].mxu0
        %v3660 = vadd.f32 0.0, %v3659
        %v3661 = vpop.f32.mrb[0].mxu0
        %v3662 = vadd.f32 0.0, %v3661
        %v3663 = vpop.f32.mrb[0].mxu0
        %v3664 = vadd.f32 0.0, %v3663
        %3665 = vmatprep.mubr.bf16.mxu0 %v2918
        %3666 = vmatmul.mubr.bf16.gmra.mrb[0].mxu0 %v2917
        %v3667 = vpop.f32.mrb[0].mxu0
        %v3668 = vadd.f32 0.0, %v3667
        %v3669 = vpop.f32.mrb[0].mxu0
        %v3670 = vadd.f32 0.0, %v3669
        %v3671 = vpop.f32.mrb[0].mxu0
        %v3672 = vadd.f32 0.0, %v3671
        %v3673 = vpop.f32.mrb[0].mxu0
        %v3674 = vadd.f32 0.0, %v3673
        %3675 = vmatprep.mubr.bf16.mxu0 %v2922
        %3676 = vmatmul.mubr.bf16.gmra.mrb[0].mxu0 %v2921
        %v3677 = vpop.f32.mrb[0].mxu0
        %v3678 = vadd.f32 0.0, %v3677
        %v3679 = vpop.f32.mrb[0].mxu0
        %v3680 = vadd.f32 0.0, %v3679
        %v3681 = vpop.f32.mrb[0].mxu0
        %v3682 = vadd.f32 0.0, %v3681
        %v3683 = vpop.f32.mrb[0].mxu0
        %v3684 = vadd.f32 0.0, %v3683
        %3685 = vmatprep.mubr.bf16.mxu0 %v2926
        %3686 = vmatmul.mubr.bf16.gmra.mrb[0].mxu0 %v2925
        %v3687 = vpop.f32.mrb[0].mxu0
        %v3688 = vadd.f32 0.0, %v3687
        %v3689 = vpop.f32.mrb[0].mxu0
        %v3690 = vadd.f32 0.0, %v3689
        %v3691 = vpop.f32.mrb[0].mxu0
        %v3692 = vadd.f32 0.0, %v3691
        %v3693 = vpop.f32.mrb[0].mxu0
        %v3694 = vadd.f32 0.0, %v3693
        %3695 = vmatprep.mubr.bf16.mxu0 %v2930
        %3696 = vmatmul.mubr.bf16.gmra.mrb[0].mxu0 %v2929
        %v3697 = vpop.f32.mrb[0].mxu0
        %v3698 = vadd.f32 0.0, %v3697
        %v3699 = vpop.f32.mrb[0].mxu0
        %v3700 = vadd.f32 0.0, %v3699
        %v3701 = vpop.f32.mrb[0].mxu0
        %v3702 = vadd.f32 0.0, %v3701
        %v3703 = vpop.f32.mrb[0].mxu0
        %v3704 = vadd.f32 0.0, %v3703
        %3705 = vmatprep.mubr.bf16.mxu0 %v2934
        %3706 = vmatmul.mubr.bf16.gmra.mrb[0].mxu0 %v2933
        %v3707 = vpop.f32.mrb[0].mxu0
        %v3708 = vadd.f32 0.0, %v3707
        %v3709 = vpop.f32.mrb[0].mxu0
        %v3710 = vadd.f32 0.0, %v3709
        %v3711 = vpop.f32.mrb[0].mxu0
        %v3712 = vadd.f32 0.0, %v3711
        %v3713 = vpop.f32.mrb[0].mxu0
        %v3714 = vadd.f32 0.0, %v3713
        %3715 = vmatprep.mubr.bf16.mxu0 %v2938
        %3716 = vmatmul.mubr.bf16.gmra.mrb[0].mxu0 %v2937
        %v3717 = vpop.f32.mrb[0].mxu0
        %v3718 = vadd.f32 0.0, %v3717
        %v3719 = vpop.f32.mrb[0].mxu0
        %v3720 = vadd.f32 0.0, %v3719
        %v3721 = vpop.f32.mrb[0].mxu0
        %v3722 = vadd.f32 0.0, %v3721
        %v3723 = vpop.f32.mrb[0].mxu0
        %v3724 = vadd.f32 0.0, %v3723
        %3725 = vmatprep.mubr.bf16.mxu0 %v2942
        %3726 = vmatmul.mubr.bf16.gmra.mrb[0].mxu0 %v2941
        %v3727 = vpop.f32.mrb[0].mxu0
        %v3728 = vadd.f32 0.0, %v3727
        %v3729 = vpop.f32.mrb[0].mxu0
        %v3730 = vadd.f32 0.0, %v3729
        %v3731 = vpop.f32.mrb[0].mxu0
        %v3732 = vadd.f32 0.0, %v3731
        %v3733 = vpop.f32.mrb[0].mxu0
        %v3734 = vadd.f32 0.0, %v3733
        %3735 = vmatprep.mubr.bf16.mxu0 %v2946
        %3736 = vmatmul.mubr.bf16.gmra.mrb[0].mxu0 %v2945
        %v3737 = vpop.f32.mrb[0].mxu0
        %v3738 = vadd.f32 0.0, %v3737
        %v3739 = vpop.f32.mrb[0].mxu0
        %v3740 = vadd.f32 0.0, %v3739
        %v3741 = vpop.f32.mrb[0].mxu0
        %v3742 = vadd.f32 0.0, %v3741
        %v3743 = vpop.f32.mrb[0].mxu0
        %v3744 = vadd.f32 0.0, %v3743
        %3745 = vmatprep.mubr.bf16.mxu0 %v2950
        %3746 = vmatmul.mubr.bf16.gmra.mrb[0].mxu0 %v2949
        %v3747 = vpop.f32.mrb[0].mxu0
        %v3748 = vadd.f32 0.0, %v3747
        %v3749 = vpop.f32.mrb[0].mxu0
        %v3750 = vadd.f32 0.0, %v3749
        %v3751 = vpop.f32.mrb[0].mxu0
        %v3752 = vadd.f32 0.0, %v3751
        %v3753 = vpop.f32.mrb[0].mxu0
        %v3754 = vadd.f32 0.0, %v3753
        %3755 = vmatprep.mubr.bf16.mxu0 %v2954
        %3756 = vmatmul.mubr.bf16.gmra.mrb[0].mxu0 %v2953
        %v3757 = vpop.f32.mrb[0].mxu0
        %v3758 = vadd.f32 0.0, %v3757
        %v3759 = vpop.f32.mrb[0].mxu0
        %v3760 = vadd.f32 0.0, %v3759
        %v3761 = vpop.f32.mrb[0].mxu0
        %v3762 = vadd.f32 0.0, %v3761
        %v3763 = vpop.f32.mrb[0].mxu0
        %v3764 = vadd.f32 0.0, %v3763
        %3765 = vmatprep.mubr.bf16.mxu0 %v2958
        %3766 = vmatmul.mubr.bf16.gmra.mrb[0].mxu0 %v2957
        %v3767 = vpop.f32.mrb[0].mxu0
        %v3768 = vadd.f32 0.0, %v3767
        %v3769 = vpop.f32.mrb[0].mxu0
        %v3770 = vadd.f32 0.0, %v3769
        %v3771 = vpop.f32.mrb[0].mxu0
        %v3772 = vadd.f32 0.0, %v3771
        %v3773 = vpop.f32.mrb[0].mxu0
        %v3774 = vadd.f32 0.0, %v3773
        %3775 = vmatprep.mubr.bf16.mxu0 %v2962
        %3776 = vmatmul.mubr.bf16.gmra.mrb[0].mxu0 %v2961
        %v3777 = vpop.f32.mrb[0].mxu0
        %v3778 = vadd.f32 0.0, %v3777
        %v3779 = vpop.f32.mrb[0].mxu0
        %v3780 = vadd.f32 0.0, %v3779
        %v3781 = vpop.f32.mrb[0].mxu0
        %v3782 = vadd.f32 0.0, %v3781
        %v3783 = vpop.f32.mrb[0].mxu0
        %v3784 = vadd.f32 0.0, %v3783
        %3785 = vmatprep.mubr.bf16.mxu0 %v2966
        %3786 = vmatmul.mubr.bf16.gmra.mrb[0].mxu0 %v2965
        %v3787 = vpop.f32.mrb[0].mxu0
        %v3788 = vadd.f32 0.0, %v3787
        %v3789 = vpop.f32.mrb[0].mxu0
        %v3790 = vadd.f32 0.0, %v3789
        %v3791 = vpop.f32.mrb[0].mxu0
        %v3792 = vadd.f32 0.0, %v3791
        %v3793 = vpop.f32.mrb[0].mxu0
        %v3794 = vadd.f32 0.0, %v3793
        %3795 = vmatprep.mubr.bf16.mxu0 %v2970
        %3796 = vmatmul.mubr.bf16.gmra.mrb[0].mxu0 %v2969
        %v3797 = vpop.f32.mrb[0].mxu0
        %v3798 = vadd.f32 0.0, %v3797
        %v3799 = vpop.f32.mrb[0].mxu0
        %v3800 = vadd.f32 0.0, %v3799
        %v3801 = vpop.f32.mrb[0].mxu0
        %v3802 = vadd.f32 0.0, %v3801
        %v3803 = vpop.f32.mrb[0].mxu0
        %v3804 = vadd.f32 0.0, %v3803
        %3805 = vdwg.mxu0
        %3806 = vmatprep.subr.bf16.mxu0 %v3470
        %3807 = vmatpush1.bf16.msra.mxu0 %v3469
        %3808 = vmatprep.subr.bf16.mxu0 %v3473
        %3809 = vmatpush1.bf16.msra.mxu0 %v3472
        %3810 = vmatprep.subr.bf16.mxu0 %v3476
        %3811 = vmatpush1.bf16.msra.mxu0 %v3475
        %3812 = vmatprep.subr.bf16.mxu0 %v3479
        %3813 = vmatpush1.bf16.msra.mxu0 %v3478
        %3814 = vmatprep.subr.bf16.mxu0 %v3482
        %3815 = vmatpush1.bf16.msra.mxu0 %v3481
        %3816 = vmatprep.subr.bf16.mxu0 %v3485
        %3817 = vmatpush1.bf16.msra.mxu0 %v3484
        %3818 = vmatprep.subr.bf16.mxu0 %v3488
        %3819 = vmatpush1.bf16.msra.mxu0 %v3487
        %3820 = vmatprep.subr.bf16.mxu0 %v3491
        %3821 = vmatpush1.bf16.msra.mxu0 %v3490
        %3822 = vmatprep.subr.bf16.mxu0 %v3494
        %3823 = vmatpush1.bf16.msra.mxu0 %v3493
        %3824 = vmatprep.subr.bf16.mxu0 %v3497
        %3825 = vmatpush1.bf16.msra.mxu0 %v3496
        %3826 = vmatprep.subr.bf16.mxu0 %v3500
        %3827 = vmatpush1.bf16.msra.mxu0 %v3499
        %3828 = vmatprep.subr.bf16.mxu0 %v3503
        %3829 = vmatpush1.bf16.msra.mxu0 %v3502
        %3830 = vmatprep.subr.bf16.mxu0 %v3506
        %3831 = vmatpush1.bf16.msra.mxu0 %v3505
        %3832 = vmatprep.subr.bf16.mxu0 %v3509
        %3833 = vmatpush1.bf16.msra.mxu0 %v3508
        %3834 = vmatprep.subr.bf16.mxu0 %v3512
        %3835 = vmatpush1.bf16.msra.mxu0 %v3511
        %3836 = vmatprep.subr.bf16.mxu0 %v3515
        %3837 = vmatpush1.bf16.msra.mxu0 %v3514
        %3838 = vmatprep.mubr.bf16.mxu0 %v2912
        %3839 = vmatmul.mubr.bf16.gmra.mrb[0].mxu0 %v2911
        %v3840 = vpop.f32.mrb[0].mxu0
        %v3841 = vadd.f32 %v3648, %v3840
        %v3842 = vpop.f32.mrb[0].mxu0
        %v3843 = vadd.f32 %v3650, %v3842
        %v3844 = vpop.f32.mrb[0].mxu0
        %v3845 = vadd.f32 %v3652, %v3844
        %v3846 = vpop.f32.mrb[0].mxu0
        %v3847 = vadd.f32 %v3654, %v3846
        %3848 = vmatprep.mubr.bf16.mxu0 %v2916
        %3849 = vmatmul.mubr.bf16.gmra.mrb[0].mxu0 %v2915
        %v3850 = vpop.f32.mrb[0].mxu0
        %v3851 = vadd.f32 %v3658, %v3850
        %v3852 = vpop.f32.mrb[0].mxu0
        %v3853 = vadd.f32 %v3660, %v3852
        %v3854 = vpop.f32.mrb[0].mxu0
        %v3855 = vadd.f32 %v3662, %v3854
        %v3856 = vpop.f32.mrb[0].mxu0
        %v3857 = vadd.f32 %v3664, %v3856
        %3858 = vmatprep.mubr.bf16.mxu0 %v2920
        %3859 = vmatmul.mubr.bf16.gmra.mrb[0].mxu0 %v2919
        %v3860 = vpop.f32.mrb[0].mxu0
        %v3861 = vadd.f32 %v3668, %v3860
        %v3862 = vpop.f32.mrb[0].mxu0
        %v3863 = vadd.f32 %v3670, %v3862
        %v3864 = vpop.f32.mrb[0].mxu0
        %v3865 = vadd.f32 %v3672, %v3864
        %v3866 = vpop.f32.mrb[0].mxu0
        %v3867 = vadd.f32 %v3674, %v3866
        %3868 = vmatprep.mubr.bf16.mxu0 %v2924
        %3869 = vmatmul.mubr.bf16.gmra.mrb[0].mxu0 %v2923
        %v3870 = vpop.f32.mrb[0].mxu0
        %v3871 = vadd.f32 %v3678, %v3870
        %v3872 = vpop.f32.mrb[0].mxu0
        %v3873 = vadd.f32 %v3680, %v3872
        %v3874 = vpop.f32.mrb[0].mxu0
        %v3875 = vadd.f32 %v3682, %v3874
        %v3876 = vpop.f32.mrb[0].mxu0
        %v3877 = vadd.f32 %v3684, %v3876
        %3878 = vmatprep.mubr.bf16.mxu0 %v2928
        %3879 = vmatmul.mubr.bf16.gmra.mrb[0].mxu0 %v2927
        %v3880 = vpop.f32.mrb[0].mxu0
        %v3881 = vadd.f32 %v3688, %v3880
        %v3882 = vpop.f32.mrb[0].mxu0
        %v3883 = vadd.f32 %v3690, %v3882
        %v3884 = vpop.f32.mrb[0].mxu0
        %v3885 = vadd.f32 %v3692, %v3884
        %v3886 = vpop.f32.mrb[0].mxu0
        %v3887 = vadd.f32 %v3694, %v3886
        %3888 = vmatprep.mubr.bf16.mxu0 %v2932
        %3889 = vmatmul.mubr.bf16.gmra.mrb[0].mxu0 %v2931
        %v3890 = vpop.f32.mrb[0].mxu0
        %v3891 = vadd.f32 %v3698, %v3890
        %v3892 = vpop.f32.mrb[0].mxu0
        %v3893 = vadd.f32 %v3700, %v3892
        %v3894 = vpop.f32.mrb[0].mxu0
        %v3895 = vadd.f32 %v3702, %v3894
        %v3896 = vpop.f32.mrb[0].mxu0
        %v3897 = vadd.f32 %v3704, %v3896
        %3898 = vmatprep.mubr.bf16.mxu0 %v2936
        %3899 = vmatmul.mubr.bf16.gmra.mrb[0].mxu0 %v2935
        %v3900 = vpop.f32.mrb[0].mxu0
        %v3901 = vadd.f32 %v3708, %v3900
        %v3902 = vpop.f32.mrb[0].mxu0
        %v3903 = vadd.f32 %v3710, %v3902
        %v3904 = vpop.f32.mrb[0].mxu0
        %v3905 = vadd.f32 %v3712, %v3904
        %v3906 = vpop.f32.mrb[0].mxu0
        %v3907 = vadd.f32 %v3714, %v3906
        %3908 = vmatprep.mubr.bf16.mxu0 %v2940
        %3909 = vmatmul.mubr.bf16.gmra.mrb[0].mxu0 %v2939
        %v3910 = vpop.f32.mrb[0].mxu0
        %v3911 = vadd.f32 %v3718, %v3910
        %v3912 = vpop.f32.mrb[0].mxu0
        %v3913 = vadd.f32 %v3720, %v3912
        %v3914 = vpop.f32.mrb[0].mxu0
        %v3915 = vadd.f32 %v3722, %v3914
        %v3916 = vpop.f32.mrb[0].mxu0
        %v3917 = vadd.f32 %v3724, %v3916
        %3918 = vmatprep.mubr.bf16.mxu0 %v2944
        %3919 = vmatmul.mubr.bf16.gmra.mrb[0].mxu0 %v2943
        %v3920 = vpop.f32.mrb[0].mxu0
        %v3921 = vadd.f32 %v3728, %v3920
        %v3922 = vpop.f32.mrb[0].mxu0
        %v3923 = vadd.f32 %v3730, %v3922
        %v3924 = vpop.f32.mrb[0].mxu0
        %v3925 = vadd.f32 %v3732, %v3924
        %v3926 = vpop.f32.mrb[0].mxu0
        %v3927 = vadd.f32 %v3734, %v3926
        %3928 = vmatprep.mubr.bf16.mxu0 %v2948
        %3929 = vmatmul.mubr.bf16.gmra.mrb[0].mxu0 %v2947
        %v3930 = vpop.f32.mrb[0].mxu0
        %v3931 = vadd.f32 %v3738, %v3930
        %v3932 = vpop.f32.mrb[0].mxu0
        %v3933 = vadd.f32 %v3740, %v3932
        %v3934 = vpop.f32.mrb[0].mxu0
        %v3935 = vadd.f32 %v3742, %v3934
        %v3936 = vpop.f32.mrb[0].mxu0
        %v3937 = vadd.f32 %v3744, %v3936
        %3938 = vmatprep.mubr.bf16.mxu0 %v2952
        %3939 = vmatmul.mubr.bf16.gmra.mrb[0].mxu0 %v2951
        %v3940 = vpop.f32.mrb[0].mxu0
        %v3941 = vadd.f32 %v3748, %v3940
        %v3942 = vpop.f32.mrb[0].mxu0
        %v3943 = vadd.f32 %v3750, %v3942
        %v3944 = vpop.f32.mrb[0].mxu0
        %v3945 = vadd.f32 %v3752, %v3944
        %v3946 = vpop.f32.mrb[0].mxu0
        %v3947 = vadd.f32 %v3754, %v3946
        %3948 = vmatprep.mubr.bf16.mxu0 %v2956
        %3949 = vmatmul.mubr.bf16.gmra.mrb[0].mxu0 %v2955
        %v3950 = vpop.f32.mrb[0].mxu0
        %v3951 = vadd.f32 %v3758, %v3950
        %v3952 = vpop.f32.mrb[0].mxu0
        %v3953 = vadd.f32 %v3760, %v3952
        %v3954 = vpop.f32.mrb[0].mxu0
        %v3955 = vadd.f32 %v3762, %v3954
        %v3956 = vpop.f32.mrb[0].mxu0
        %v3957 = vadd.f32 %v3764, %v3956
        %3958 = vmatprep.mubr.bf16.mxu0 %v2960
        %3959 = vmatmul.mubr.bf16.gmra.mrb[0].mxu0 %v2959
        %v3960 = vpop.f32.mrb[0].mxu0
        %v3961 = vadd.f32 %v3768, %v3960
        %v3962 = vpop.f32.mrb[0].mxu0
        %v3963 = vadd.f32 %v3770, %v3962
        %v3964 = vpop.f32.mrb[0].mxu0
        %v3965 = vadd.f32 %v3772, %v3964
        %v3966 = vpop.f32.mrb[0].mxu0
        %v3967 = vadd.f32 %v3774, %v3966
        %3968 = vmatprep.mubr.bf16.mxu0 %v2964
        %3969 = vmatmul.mubr.bf16.gmra.mrb[0].mxu0 %v2963
        %v3970 = vpop.f32.mrb[0].mxu0
        %v3971 = vadd.f32 %v3778, %v3970
        %v3972 = vpop.f32.mrb[0].mxu0
        %v3973 = vadd.f32 %v3780, %v3972
        %v3974 = vpop.f32.mrb[0].mxu0
        %v3975 = vadd.f32 %v3782, %v3974
        %v3976 = vpop.f32.mrb[0].mxu0
        %v3977 = vadd.f32 %v3784, %v3976
        %3978 = vmatprep.mubr.bf16.mxu0 %v2968
        %3979 = vmatmul.mubr.bf16.gmra.mrb[0].mxu0 %v2967
        %v3980 = vpop.f32.mrb[0].mxu0
        %v3981 = vadd.f32 %v3788, %v3980
        %v3982 = vpop.f32.mrb[0].mxu0
        %v3983 = vadd.f32 %v3790, %v3982
        %v3984 = vpop.f32.mrb[0].mxu0
        %v3985 = vadd.f32 %v3792, %v3984
        %v3986 = vpop.f32.mrb[0].mxu0
        %v3987 = vadd.f32 %v3794, %v3986
        %3988 = vmatprep.mubr.bf16.mxu0 %v2972
        %3989 = vmatmul.mubr.bf16.gmra.mrb[0].mxu0 %v2971
        %v3990 = vpop.f32.mrb[0].mxu0
        %v3991 = vadd.f32 %v3798, %v3990
        %v3992 = vpop.f32.mrb[0].mxu0
        %v3993 = vadd.f32 %v3800, %v3992
        %v3994 = vpop.f32.mrb[0].mxu0
        %v3995 = vadd.f32 %v3802, %v3994
        %v3996 = vpop.f32.mrb[0].mxu0
        %v3997 = vadd.f32 %v3804, %v3996
        %3998 = vdwg.mxu0
        %3999 = vmatprep.subr.bf16.mxu0 0
        %4000 = vmatpush1.bf16.msra.mxu0 %v3423
        %4001 = vmatprep.subr.bf16.mxu0 0
        %4002 = vmatpush1.bf16.msra.mxu0 %v3426
        %4003 = vmatprep.subr.bf16.mxu0 0
        %4004 = vmatpush1.bf16.msra.mxu0 %v3429
        %4005 = vmatprep.subr.bf16.mxu0 0
        %4006 = vmatpush1.bf16.msra.mxu0 %v3432
        %4007 = vmatprep.subr.bf16.mxu0 0
        %4008 = vmatpush1.bf16.msra.mxu0 %v3435
        %4009 = vmatprep.subr.bf16.mxu0 0
        %4010 = vmatpush1.bf16.msra.mxu0 %v3438
        %4011 = vmatprep.subr.bf16.mxu0 0
        %4012 = vmatpush1.bf16.msra.mxu0 %v3441
        %4013 = vmatprep.subr.bf16.mxu0 0
        %4014 = vmatpush1.bf16.msra.mxu0 %v3444
        %4015 = vmatprep.subr.bf16.mxu0 0
        %4016 = vmatpush1.bf16.msra.mxu0 %v3447
        %4017 = vmatprep.subr.bf16.mxu0 0
        %4018 = vmatpush1.bf16.msra.mxu0 %v3450
        %4019 = vmatprep.subr.bf16.mxu0 0
        %4020 = vmatpush1.bf16.msra.mxu0 %v3453
        %4021 = vmatprep.subr.bf16.mxu0 0
        %4022 = vmatpush1.bf16.msra.mxu0 %v3456
        %4023 = vmatprep.subr.bf16.mxu0 0
        %4024 = vmatpush1.bf16.msra.mxu0 %v3459
        %4025 = vmatprep.subr.bf16.mxu0 0
        %4026 = vmatpush1.bf16.msra.mxu0 %v3462
        %4027 = vmatprep.subr.bf16.mxu0 0
        %4028 = vmatpush1.bf16.msra.mxu0 %v3465
        %4029 = vmatprep.subr.bf16.mxu0 0
        %4030 = vmatpush1.bf16.msra.mxu0 %v3468
        %4031 = vmatprep.mubr.bf16.mxu0 %v2910
        %4032 = vmatmul.mubr.bf16.gmra.mrb[0].mxu0 %v2909
        %v4033 = vpop.f32.mrb[0].mxu0
        %v4034 = vadd.f32 0.0, %v4033
        %v4035 = vpop.f32.mrb[0].mxu0
        %v4036 = vpop.f32.mrb[0].mxu0
        %v4037 = vadd.f32 0.0, %v4036
        %v4038 = vpop.f32.mrb[0].mxu0
        %4039 = vmatprep.mubr.bf16.mxu0 %v2914
        %4040 = vmatmul.mubr.bf16.gmra.mrb[0].mxu0 %v2913
        %v4041 = vpop.f32.mrb[0].mxu0
        %v4042 = vadd.f32 0.0, %v4041
        %v4043 = vpop.f32.mrb[0].mxu0
        %v4044 = vpop.f32.mrb[0].mxu0
        %v4045 = vadd.f32 0.0, %v4044
        %v4046 = vpop.f32.mrb[0].mxu0
        %4047 = vmatprep.mubr.bf16.mxu0 %v2918
        %4048 = vmatmul.mubr.bf16.gmra.mrb[0].mxu0 %v2917
        %v4049 = vpop.f32.mrb[0].mxu0
        %v4050 = vadd.f32 0.0, %v4049
        %v4051 = vpop.f32.mrb[0].mxu0
        %v4052 = vpop.f32.mrb[0].mxu0
        %v4053 = vadd.f32 0.0, %v4052
        %v4054 = vpop.f32.mrb[0].mxu0
        %4055 = vmatprep.mubr.bf16.mxu0 %v2922
        %4056 = vmatmul.mubr.bf16.gmra.mrb[0].mxu0 %v2921
        %v4057 = vpop.f32.mrb[0].mxu0
        %v4058 = vadd.f32 0.0, %v4057
        %v4059 = vpop.f32.mrb[0].mxu0
        %v4060 = vpop.f32.mrb[0].mxu0
        %v4061 = vadd.f32 0.0, %v4060
        %v4062 = vpop.f32.mrb[0].mxu0
        %4063 = vmatprep.mubr.bf16.mxu0 %v2926
        %4064 = vmatmul.mubr.bf16.gmra.mrb[0].mxu0 %v2925
        %v4065 = vpop.f32.mrb[0].mxu0
        %v4066 = vadd.f32 0.0, %v4065
        %v4067 = vpop.f32.mrb[0].mxu0
        %v4068 = vpop.f32.mrb[0].mxu0
        %v4069 = vadd.f32 0.0, %v4068
        %v4070 = vpop.f32.mrb[0].mxu0
        %4071 = vmatprep.mubr.bf16.mxu0 %v2930
        %4072 = vmatmul.mubr.bf16.gmra.mrb[0].mxu0 %v2929
        %v4073 = vpop.f32.mrb[0].mxu0
        %v4074 = vadd.f32 0.0, %v4073
        %v4075 = vpop.f32.mrb[0].mxu0
        %v4076 = vpop.f32.mrb[0].mxu0
        %v4077 = vadd.f32 0.0, %v4076
        %v4078 = vpop.f32.mrb[0].mxu0
        %4079 = vmatprep.mubr.bf16.mxu0 %v2934
        %4080 = vmatmul.mubr.bf16.gmra.mrb[0].mxu0 %v2933
        %v4081 = vpop.f32.mrb[0].mxu0
        %v4082 = vadd.f32 0.0, %v4081
        %v4083 = vpop.f32.mrb[0].mxu0
        %v4084 = vpop.f32.mrb[0].mxu0
        %v4085 = vadd.f32 0.0, %v4084
        %v4086 = vpop.f32.mrb[0].mxu0
        %4087 = vmatprep.mubr.bf16.mxu0 %v2938
        %4088 = vmatmul.mubr.bf16.gmra.mrb[0].mxu0 %v2937
        %v4089 = vpop.f32.mrb[0].mxu0
        %v4090 = vadd.f32 0.0, %v4089
        %v4091 = vpop.f32.mrb[0].mxu0
        %v4092 = vpop.f32.mrb[0].mxu0
        %v4093 = vadd.f32 0.0, %v4092
        %v4094 = vpop.f32.mrb[0].mxu0
        %4095 = vmatprep.mubr.bf16.mxu0 %v2942
        %4096 = vmatmul.mubr.bf16.gmra.mrb[0].mxu0 %v2941
        %v4097 = vpop.f32.mrb[0].mxu0
        %v4098 = vadd.f32 0.0, %v4097
        %v4099 = vpop.f32.mrb[0].mxu0
        %v4100 = vpop.f32.mrb[0].mxu0
        %v4101 = vadd.f32 0.0, %v4100
        %v4102 = vpop.f32.mrb[0].mxu0
        %4103 = vmatprep.mubr.bf16.mxu0 %v2946
        %4104 = vmatmul.mubr.bf16.gmra.mrb[0].mxu0 %v2945
        %v4105 = vpop.f32.mrb[0].mxu0
        %v4106 = vadd.f32 0.0, %v4105
        %v4107 = vpop.f32.mrb[0].mxu0
        %v4108 = vpop.f32.mrb[0].mxu0
        %v4109 = vadd.f32 0.0, %v4108
        %v4110 = vpop.f32.mrb[0].mxu0
        %4111 = vmatprep.mubr.bf16.mxu0 %v2950
        %4112 = vmatmul.mubr.bf16.gmra.mrb[0].mxu0 %v2949
        %v4113 = vpop.f32.mrb[0].mxu0
        %v4114 = vadd.f32 0.0, %v4113
        %v4115 = vpop.f32.mrb[0].mxu0
        %v4116 = vpop.f32.mrb[0].mxu0
        %v4117 = vadd.f32 0.0, %v4116
        %v4118 = vpop.f32.mrb[0].mxu0
        %4119 = vmatprep.mubr.bf16.mxu0 %v2954
        %4120 = vmatmul.mubr.bf16.gmra.mrb[0].mxu0 %v2953
        %v4121 = vpop.f32.mrb[0].mxu0
        %v4122 = vadd.f32 0.0, %v4121
        %v4123 = vpop.f32.mrb[0].mxu0
        %v4124 = vpop.f32.mrb[0].mxu0
        %v4125 = vadd.f32 0.0, %v4124
        %v4126 = vpop.f32.mrb[0].mxu0
        %4127 = vmatprep.mubr.bf16.mxu0 %v2958
        %4128 = vmatmul.mubr.bf16.gmra.mrb[0].mxu0 %v2957
        %v4129 = vpop.f32.mrb[0].mxu0
        %v4130 = vadd.f32 0.0, %v4129
        %v4131 = vpop.f32.mrb[0].mxu0
        %v4132 = vpop.f32.mrb[0].mxu0
        %v4133 = vadd.f32 0.0, %v4132
        %v4134 = vpop.f32.mrb[0].mxu0
        %4135 = vmatprep.mubr.bf16.mxu0 %v2962
        %4136 = vmatmul.mubr.bf16.gmra.mrb[0].mxu0 %v2961
        %v4137 = vpop.f32.mrb[0].mxu0
        %v4138 = vadd.f32 0.0, %v4137
        %v4139 = vpop.f32.mrb[0].mxu0
        %v4140 = vpop.f32.mrb[0].mxu0
        %v4141 = vadd.f32 0.0, %v4140
        %v4142 = vpop.f32.mrb[0].mxu0
        %4143 = vmatprep.mubr.bf16.mxu0 %v2966
        %4144 = vmatmul.mubr.bf16.gmra.mrb[0].mxu0 %v2965
        %v4145 = vpop.f32.mrb[0].mxu0
        %v4146 = vadd.f32 0.0, %v4145
        %v4147 = vpop.f32.mrb[0].mxu0
        %v4148 = vpop.f32.mrb[0].mxu0
        %v4149 = vadd.f32 0.0, %v4148
        %v4150 = vpop.f32.mrb[0].mxu0
        %4151 = vmatprep.mubr.bf16.mxu0 %v2970
        %4152 = vmatmul.mubr.bf16.gmra.mrb[0].mxu0 %v2969
        %v4153 = vpop.f32.mrb[0].mxu0
        %v4154 = vadd.f32 0.0, %v4153
        %v4155 = vpop.f32.mrb[0].mxu0
        %v4156 = vpop.f32.mrb[0].mxu0
        %v4157 = vadd.f32 0.0, %v4156
        %v4158 = vpop.f32.mrb[0].mxu0
        %4159 = vdwg.mxu0
        %4160 = vmatprep.subr.bf16.mxu0 0
        %4161 = vmatpush1.bf16.msra.mxu0 %v3471
        %4162 = vmatprep.subr.bf16.mxu0 0
        %4163 = vmatpush1.bf16.msra.mxu0 %v3474
        %4164 = vmatprep.subr.bf16.mxu0 0
        %4165 = vmatpush1.bf16.msra.mxu0 %v3477
        %4166 = vmatprep.subr.bf16.mxu0 0
        %4167 = vmatpush1.bf16.msra.mxu0 %v3480
        %4168 = vmatprep.subr.bf16.mxu0 0
        %4169 = vmatpush1.bf16.msra.mxu0 %v3483
        %4170 = vmatprep.subr.bf16.mxu0 0
        %4171 = vmatpush1.bf16.msra.mxu0 %v3486
        %4172 = vmatprep.subr.bf16.mxu0 0
        %4173 = vmatpush1.bf16.msra.mxu0 %v3489
        %4174 = vmatprep.subr.bf16.mxu0 0
        %4175 = vmatpush1.bf16.msra.mxu0 %v3492
        %4176 = vmatprep.subr.bf16.mxu0 0
        %4177 = vmatpush1.bf16.msra.mxu0 %v3495
        %4178 = vmatprep.subr.bf16.mxu0 0
        %4179 = vmatpush1.bf16.msra.mxu0 %v3498
        %4180 = vmatprep.subr.bf16.mxu0 0
        %4181 = vmatpush1.bf16.msra.mxu0 %v3501
        %4182 = vmatprep.subr.bf16.mxu0 0
        %4183 = vmatpush1.bf16.msra.mxu0 %v3504
        %4184 = vmatprep.subr.bf16.mxu0 0
        %4185 = vmatpush1.bf16.msra.mxu0 %v3507
        %4186 = vmatprep.subr.bf16.mxu0 0
        %4187 = vmatpush1.bf16.msra.mxu0 %v3510
        %4188 = vmatprep.subr.bf16.mxu0 0
        %4189 = vmatpush1.bf16.msra.mxu0 %v3513
        %4190 = vmatprep.subr.bf16.mxu0 0
        %4191 = vmatpush1.bf16.msra.mxu0 %v3516
        %4192 = vmatprep.mubr.bf16.mxu0 %v2912
        %4193 = vmatmul.mubr.bf16.gmra.mrb[0].mxu0 %v2911
        %v4194 = vpop.f32.mrb[0].mxu0
        %v4195 = vadd.f32 %v4034, %v4194
        %v4196 = vpop.f32.mrb[0].mxu0
        %v4197 = vpop.f32.mrb[0].mxu0
        %v4198 = vadd.f32 %v4037, %v4197
        %v4199 = vpop.f32.mrb[0].mxu0
        %4200 = vmatprep.mubr.bf16.mxu0 %v2916
        %4201 = vmatmul.mubr.bf16.gmra.mrb[0].mxu0 %v2915
        %v4202 = vpop.f32.mrb[0].mxu0
        %v4203 = vadd.f32 %v4042, %v4202
        %v4204 = vpop.f32.mrb[0].mxu0
        %v4205 = vpop.f32.mrb[0].mxu0
        %v4206 = vadd.f32 %v4045, %v4205
        %v4207 = vpop.f32.mrb[0].mxu0
        %4208 = vmatprep.mubr.bf16.mxu0 %v2920
        %4209 = vmatmul.mubr.bf16.gmra.mrb[0].mxu0 %v2919
        %v4210 = vpop.f32.mrb[0].mxu0
        %v4211 = vadd.f32 %v4050, %v4210
        %v4212 = vpop.f32.mrb[0].mxu0
        %v4213 = vpop.f32.mrb[0].mxu0
        %v4214 = vadd.f32 %v4053, %v4213
        %v4215 = vpop.f32.mrb[0].mxu0
        %4216 = vmatprep.mubr.bf16.mxu0 %v2924
        %4217 = vmatmul.mubr.bf16.gmra.mrb[0].mxu0 %v2923
        %v4218 = vpop.f32.mrb[0].mxu0
        %v4219 = vadd.f32 %v4058, %v4218
        %v4220 = vpop.f32.mrb[0].mxu0
        %v4221 = vpop.f32.mrb[0].mxu0
        %v4222 = vadd.f32 %v4061, %v4221
        %v4223 = vpop.f32.mrb[0].mxu0
        %4224 = vmatprep.mubr.bf16.mxu0 %v2928
        %4225 = vmatmul.mubr.bf16.gmra.mrb[0].mxu0 %v2927
        %v4226 = vpop.f32.mrb[0].mxu0
        %v4227 = vadd.f32 %v4066, %v4226
        %v4228 = vpop.f32.mrb[0].mxu0
        %v4229 = vpop.f32.mrb[0].mxu0
        %v4230 = vadd.f32 %v4069, %v4229
        %v4231 = vpop.f32.mrb[0].mxu0
        %4232 = vmatprep.mubr.bf16.mxu0 %v2932
        %4233 = vmatmul.mubr.bf16.gmra.mrb[0].mxu0 %v2931
        %v4234 = vpop.f32.mrb[0].mxu0
        %v4235 = vadd.f32 %v4074, %v4234
        %v4236 = vpop.f32.mrb[0].mxu0
        %v4237 = vpop.f32.mrb[0].mxu0
        %v4238 = vadd.f32 %v4077, %v4237
        %v4239 = vpop.f32.mrb[0].mxu0
        %4240 = vmatprep.mubr.bf16.mxu0 %v2936
        %4241 = vmatmul.mubr.bf16.gmra.mrb[0].mxu0 %v2935
        %v4242 = vpop.f32.mrb[0].mxu0
        %v4243 = vadd.f32 %v4082, %v4242
        %v4244 = vpop.f32.mrb[0].mxu0
        %v4245 = vpop.f32.mrb[0].mxu0
        %v4246 = vadd.f32 %v4085, %v4245
        %v4247 = vpop.f32.mrb[0].mxu0
        %4248 = vmatprep.mubr.bf16.mxu0 %v2940
        %4249 = vmatmul.mubr.bf16.gmra.mrb[0].mxu0 %v2939
        %v4250 = vpop.f32.mrb[0].mxu0
        %v4251 = vadd.f32 %v4090, %v4250
        %v4252 = vpop.f32.mrb[0].mxu0
        %v4253 = vpop.f32.mrb[0].mxu0
        %v4254 = vadd.f32 %v4093, %v4253
        %v4255 = vpop.f32.mrb[0].mxu0
        %4256 = vmatprep.mubr.bf16.mxu0 %v2944
        %4257 = vmatmul.mubr.bf16.gmra.mrb[0].mxu0 %v2943
        %v4258 = vpop.f32.mrb[0].mxu0
        %v4259 = vadd.f32 %v4098, %v4258
        %v4260 = vpop.f32.mrb[0].mxu0
        %v4261 = vpop.f32.mrb[0].mxu0
        %v4262 = vadd.f32 %v4101, %v4261
        %v4263 = vpop.f32.mrb[0].mxu0
        %4264 = vmatprep.mubr.bf16.mxu0 %v2948
        %4265 = vmatmul.mubr.bf16.gmra.mrb[0].mxu0 %v2947
        %v4266 = vpop.f32.mrb[0].mxu0
        %v4267 = vadd.f32 %v4106, %v4266
        %v4268 = vpop.f32.mrb[0].mxu0
        %v4269 = vpop.f32.mrb[0].mxu0
        %v4270 = vadd.f32 %v4109, %v4269
        %v4271 = vpop.f32.mrb[0].mxu0
        %4272 = vmatprep.mubr.bf16.mxu0 %v2952
        %4273 = vmatmul.mubr.bf16.gmra.mrb[0].mxu0 %v2951
        %v4274 = vpop.f32.mrb[0].mxu0
        %v4275 = vadd.f32 %v4114, %v4274
        %v4276 = vpop.f32.mrb[0].mxu0
        %v4277 = vpop.f32.mrb[0].mxu0
        %v4278 = vadd.f32 %v4117, %v4277
        %v4279 = vpop.f32.mrb[0].mxu0
        %4280 = vmatprep.mubr.bf16.mxu0 %v2956
        %4281 = vmatmul.mubr.bf16.gmra.mrb[0].mxu0 %v2955
        %v4282 = vpop.f32.mrb[0].mxu0
        %v4283 = vadd.f32 %v4122, %v4282
        %v4284 = vpop.f32.mrb[0].mxu0
        %v4285 = vpop.f32.mrb[0].mxu0
        %v4286 = vadd.f32 %v4125, %v4285
        %v4287 = vpop.f32.mrb[0].mxu0
        %4288 = vmatprep.mubr.bf16.mxu0 %v2960
        %4289 = vmatmul.mubr.bf16.gmra.mrb[0].mxu0 %v2959
        %v4290 = vpop.f32.mrb[0].mxu0
        %v4291 = vadd.f32 %v4130, %v4290
        %v4292 = vpop.f32.mrb[0].mxu0
        %v4293 = vpop.f32.mrb[0].mxu0
        %v4294 = vadd.f32 %v4133, %v4293
        %v4295 = vpop.f32.mrb[0].mxu0
        %4296 = vmatprep.mubr.bf16.mxu0 %v2964
        %4297 = vmatmul.mubr.bf16.gmra.mrb[0].mxu0 %v2963
        %v4298 = vpop.f32.mrb[0].mxu0
        %v4299 = vadd.f32 %v4138, %v4298
        %v4300 = vpop.f32.mrb[0].mxu0
        %v4301 = vpop.f32.mrb[0].mxu0
        %v4302 = vadd.f32 %v4141, %v4301
        %v4303 = vpop.f32.mrb[0].mxu0
        %4304 = vmatprep.mubr.bf16.mxu0 %v2968
        %4305 = vmatmul.mubr.bf16.gmra.mrb[0].mxu0 %v2967
        %v4306 = vpop.f32.mrb[0].mxu0
        %v4307 = vadd.f32 %v4146, %v4306
        %v4308 = vpop.f32.mrb[0].mxu0
        %v4309 = vpop.f32.mrb[0].mxu0
        %v4310 = vadd.f32 %v4149, %v4309
        %v4311 = vpop.f32.mrb[0].mxu0
        %4312 = vmatprep.mubr.bf16.mxu0 %v2972
        %4313 = vmatmul.mubr.bf16.gmra.mrb[0].mxu0 %v2971
        %v4314 = vpop.f32.mrb[0].mxu0
        %v4315 = vadd.f32 %v4154, %v4314
        %v4316 = vpop.f32.mrb[0].mxu0
        %v4317 = vpop.f32.mrb[0].mxu0
        %v4318 = vadd.f32 %v4157, %v4317
        %v4319 = vpop.f32.mrb[0].mxu0
        %4320 = vdwg.mxu0
        %v4321 = vadd.f32 %v2813, %v3841
        %v4322 = vadd.f32 %v2814, %v3843
        %v4323 = vadd.f32 %v2815, %v4195
        %v4324 = vadd.f32 %v2816, %v3845
        %v4325 = vadd.f32 %v2817, %v3847
        %v4326 = vadd.f32 %v2818, %v4198
        %v4327 = vadd.f32 %v2819, %v3851
        %v4328 = vadd.f32 %v2820, %v3853
        %v4329 = vadd.f32 %v2821, %v4203
        %v4330 = vadd.f32 %v2822, %v3855
        %v4331 = vadd.f32 %v2823, %v3857
        %v4332 = vadd.f32 %v2824, %v4206
        %v4333 = vadd.f32 %v2825, %v3861
        %v4334 = vadd.f32 %v2826, %v3863
        %v4335 = vadd.f32 %v2827, %v4211
        %v4336 = vadd.f32 %v2828, %v3865
        %v4337 = vadd.f32 %v2829, %v3867
        %v4338 = vadd.f32 %v2830, %v4214
        %v4339 = vadd.f32 %v2831, %v3871
        %v4340 = vadd.f32 %v2832, %v3873
        %v4341 = vadd.f32 %v2833, %v4219
        %v4342 = vadd.f32 %v2834, %v3875
        %v4343 = vadd.f32 %v2835, %v3877
        %v4344 = vadd.f32 %v2836, %v4222
        %v4345 = vadd.f32 %v2837, %v3881
        %v4346 = vadd.f32 %v2838, %v3883
        %v4347 = vadd.f32 %v2839, %v4227
        %v4348 = vadd.f32 %v2840, %v3885
        %v4349 = vadd.f32 %v2841, %v3887
        %v4350 = vadd.f32 %v2842, %v4230
        %v4351 = vadd.f32 %v2843, %v3891
        %v4352 = vadd.f32 %v2844, %v3893
        %v4353 = vadd.f32 %v2845, %v4235
        %v4354 = vadd.f32 %v2846, %v3895
        %v4355 = vadd.f32 %v2847, %v3897
        %v4356 = vadd.f32 %v2848, %v4238
        %v4357 = vadd.f32 %v2849, %v3901
        %v4358 = vadd.f32 %v2850, %v3903
        %v4359 = vadd.f32 %v2851, %v4243
        %v4360 = vadd.f32 %v2852, %v3905
        %v4361 = vadd.f32 %v2853, %v3907
        %v4362 = vadd.f32 %v2854, %v4246
        %v4363 = vadd.f32 %v2855, %v3911
        %v4364 = vadd.f32 %v2856, %v3913
        %v4365 = vadd.f32 %v2857, %v4251
        %v4366 = vadd.f32 %v2858, %v3915
        %v4367 = vadd.f32 %v2859, %v3917
        %v4368 = vadd.f32 %v2860, %v4254
        %v4369 = vadd.f32 %v2861, %v3921
        %v4370 = vadd.f32 %v2862, %v3923
        %v4371 = vadd.f32 %v2863, %v4259
        %v4372 = vadd.f32 %v2864, %v3925
        %v4373 = vadd.f32 %v2865, %v3927
        %v4374 = vadd.f32 %v2866, %v4262
        %v4375 = vadd.f32 %v2867, %v3931
        %v4376 = vadd.f32 %v2868, %v3933
        %v4377 = vadd.f32 %v2869, %v4267
        %v4378 = vadd.f32 %v2870, %v3935
        %v4379 = vadd.f32 %v2871, %v3937
        %v4380 = vadd.f32 %v2872, %v4270
        %v4381 = vadd.f32 %v2873, %v3941
        %v4382 = vadd.f32 %v2874, %v3943
        %v4383 = vadd.f32 %v2875, %v4275
        %v4384 = vadd.f32 %v2876, %v3945
        %v4385 = vadd.f32 %v2877, %v3947
        %v4386 = vadd.f32 %v2878, %v4278
        %v4387 = vadd.f32 %v2879, %v3951
        %v4388 = vadd.f32 %v2880, %v3953
        %v4389 = vadd.f32 %v2881, %v4283
        %v4390 = vadd.f32 %v2882, %v3955
        %v4391 = vadd.f32 %v2883, %v3957
        %v4392 = vadd.f32 %v2884, %v4286
        %v4393 = vadd.f32 %v2885, %v3961
        %v4394 = vadd.f32 %v2886, %v3963
        %v4395 = vadd.f32 %v2887, %v4291
        %v4396 = vadd.f32 %v2888, %v3965
        %v4397 = vadd.f32 %v2889, %v3967
        %v4398 = vadd.f32 %v2890, %v4294
        %v4399 = vadd.f32 %v2891, %v3971
        %v4400 = vadd.f32 %v2892, %v3973
        %v4401 = vadd.f32 %v2893, %v4299
        %v4402 = vadd.f32 %v2894, %v3975
        %v4403 = vadd.f32 %v2895, %v3977
        %v4404 = vadd.f32 %v2896, %v4302
        %v4405 = vadd.f32 %v2897, %v3981
        %v4406 = vadd.f32 %v2898, %v3983
        %v4407 = vadd.f32 %v2899, %v4307
        %v4408 = vadd.f32 %v2900, %v3985
        %v4409 = vadd.f32 %v2901, %v3987
        %v4410 = vadd.f32 %v2902, %v4310
        %v4411 = vadd.f32 %v2903, %v3991
        %v4412 = vadd.f32 %v2904, %v3993
        %v4413 = vadd.f32 %v2905, %v4315
        %v4414 = vadd.f32 %v2906, %v3995
        %v4415 = vadd.f32 %v2907, %v3997
        %v4416 = vadd.f32 %v2908, %v4318
        %4417 = vst [vmem:[#allocation2] sm:$0xff] %v4321
        %4418 = vst [vmem:[#allocation2 + $0x8] sm:$0xff] %v4322
        %4419 = vst [vmem:[#allocation2 + $0x10] sm:$0xff] %v4323
        %4420 = vst [vmem:[#allocation2 + $0x18] sm:$0xff] %v4324
        %4421 = vst [vmem:[#allocation2 + $0x20] sm:$0xff] %v4325
        %4422 = vst [vmem:[#allocation2 + $0x28] sm:$0xff] %v4326
        %4423 = vst [vmem:[#allocation2 + $0x30] sm:$0xff] %v4327
        %4424 = vst [vmem:[#allocation2 + $0x38] sm:$0xff] %v4328
        %4425 = vst [vmem:[#allocation2 + $0x40] sm:$0xff] %v4329
        %4426 = vst [vmem:[#allocation2 + $0x48] sm:$0xff] %v4330
        %4427 = vst [vmem:[#allocation2 + $0x50] sm:$0xff] %v4331
        %4428 = vst [vmem:[#allocation2 + $0x58] sm:$0xff] %v4332
        %4429 = vst [vmem:[#allocation2 + $0x60] sm:$0xff] %v4333
        %4430 = vst [vmem:[#allocation2 + $0x68] sm:$0xff] %v4334
        %4431 = vst [vmem:[#allocation2 + $0x70] sm:$0xff] %v4335
        %4432 = vst [vmem:[#allocation2 + $0x78] sm:$0xff] %v4336
        %4433 = vst [vmem:[#allocation2 + $0x80] sm:$0xff] %v4337
        %4434 = vst [vmem:[#allocation2 + $0x88] sm:$0xff] %v4338
        %4435 = vst [vmem:[#allocation2 + $0x90] sm:$0xff] %v4339
        %4436 = vst [vmem:[#allocation2 + $0x98] sm:$0xff] %v4340
        %4437 = vst [vmem:[#allocation2 + $0xa0] sm:$0xff] %v4341
        %4438 = vst [vmem:[#allocation2 + $0xa8] sm:$0xff] %v4342
        %4439 = vst [vmem:[#allocation2 + $0xb0] sm:$0xff] %v4343
        %4440 = vst [vmem:[#allocation2 + $0xb8] sm:$0xff] %v4344
        %4441 = vst [vmem:[#allocation2 + $0xc0] sm:$0xff] %v4345
        %4442 = vst [vmem:[#allocation2 + $0xc8] sm:$0xff] %v4346
        %4443 = vst [vmem:[#allocation2 + $0xd0] sm:$0xff] %v4347
        %4444 = vst [vmem:[#allocation2 + $0xd8] sm:$0xff] %v4348
        %4445 = vst [vmem:[#allocation2 + $0xe0] sm:$0xff] %v4349
        %4446 = vst [vmem:[#allocation2 + $0xe8] sm:$0xff] %v4350
        %4447 = vst [vmem:[#allocation2 + $0xf0] sm:$0xff] %v4351
        %4448 = vst [vmem:[#allocation2 + $0xf8] sm:$0xff] %v4352
        %4449 = vst [vmem:[#allocation2 + $0x100] sm:$0xff] %v4353
        %4450 = vst [vmem:[#allocation2 + $0x108] sm:$0xff] %v4354
        %4451 = vst [vmem:[#allocation2 + $0x110] sm:$0xff] %v4355
        %4452 = vst [vmem:[#allocation2 + $0x118] sm:$0xff] %v4356
        %4453 = vst [vmem:[#allocation2 + $0x120] sm:$0xff] %v4357
        %4454 = vst [vmem:[#allocation2 + $0x128] sm:$0xff] %v4358
        %4455 = vst [vmem:[#allocation2 + $0x130] sm:$0xff] %v4359
        %4456 = vst [vmem:[#allocation2 + $0x138] sm:$0xff] %v4360
        %4457 = vst [vmem:[#allocation2 + $0x140] sm:$0xff] %v4361
        %4458 = vst [vmem:[#allocation2 + $0x148] sm:$0xff] %v4362
        %4459 = vst [vmem:[#allocation2 + $0x150] sm:$0xff] %v4363
        %4460 = vst [vmem:[#allocation2 + $0x158] sm:$0xff] %v4364
        %4461 = vst [vmem:[#allocation2 + $0x160] sm:$0xff] %v4365
        %4462 = vst [vmem:[#allocation2 + $0x168] sm:$0xff] %v4366
        %4463 = vst [vmem:[#allocation2 + $0x170] sm:$0xff] %v4367
        %4464 = vst [vmem:[#allocation2 + $0x178] sm:$0xff] %v4368
        %4465 = vst [vmem:[#allocation2 + $0x180] sm:$0xff] %v4369
        %4466 = vst [vmem:[#allocation2 + $0x188] sm:$0xff] %v4370
        %4467 = vst [vmem:[#allocation2 + $0x190] sm:$0xff] %v4371
        %4468 = vst [vmem:[#allocation2 + $0x198] sm:$0xff] %v4372
        %4469 = vst [vmem:[#allocation2 + $0x1a0] sm:$0xff] %v4373
        %4470 = vst [vmem:[#allocation2 + $0x1a8] sm:$0xff] %v4374
        %4471 = vst [vmem:[#allocation2 + $0x1b0] sm:$0xff] %v4375
        %4472 = vst [vmem:[#allocation2 + $0x1b8] sm:$0xff] %v4376
        %4473 = vst [vmem:[#allocation2 + $0x1c0] sm:$0xff] %v4377
        %4474 = vst [vmem:[#allocation2 + $0x1c8] sm:$0xff] %v4378
        %4475 = vst [vmem:[#allocation2 + $0x1d0] sm:$0xff] %v4379
        %4476 = vst [vmem:[#allocation2 + $0x1d8] sm:$0xff] %v4380
        %4477 = vst [vmem:[#allocation2 + $0x1e0] sm:$0xff] %v4381
        %4478 = vst [vmem:[#allocation2 + $0x1e8] sm:$0xff] %v4382
        %4479 = vst [vmem:[#allocation2 + $0x1f0] sm:$0xff] %v4383
        %4480 = vst [vmem:[#allocation2 + $0x1f8] sm:$0xff] %v4384
        %4481 = vst [vmem:[#allocation2 + $0x200] sm:$0xff] %v4385
        %4482 = vst [vmem:[#allocation2 + $0x208] sm:$0xff] %v4386
        %4483 = vst [vmem:[#allocation2 + $0x210] sm:$0xff] %v4387
        %4484 = vst [vmem:[#allocation2 + $0x218] sm:$0xff] %v4388
        %4485 = vst [vmem:[#allocation2 + $0x220] sm:$0xff] %v4389
        %4486 = vst [vmem:[#allocation2 + $0x228] sm:$0xff] %v4390
        %4487 = vst [vmem:[#allocation2 + $0x230] sm:$0xff] %v4391
        %4488 = vst [vmem:[#allocation2 + $0x238] sm:$0xff] %v4392
        %4489 = vst [vmem:[#allocation2 + $0x240] sm:$0xff] %v4393
        %4490 = vst [vmem:[#allocation2 + $0x248] sm:$0xff] %v4394
        %4491 = vst [vmem:[#allocation2 + $0x250] sm:$0xff] %v4395
        %4492 = vst [vmem:[#allocation2 + $0x258] sm:$0xff] %v4396
        %4493 = vst [vmem:[#allocation2 + $0x260] sm:$0xff] %v4397
        %4494 = vst [vmem:[#allocation2 + $0x268] sm:$0xff] %v4398
        %4495 = vst [vmem:[#allocation2 + $0x270] sm:$0xff] %v4399
        %4496 = vst [vmem:[#allocation2 + $0x278] sm:$0xff] %v4400
        %4497 = vst [vmem:[#allocation2 + $0x280] sm:$0xff] %v4401
        %4498 = vst [vmem:[#allocation2 + $0x288] sm:$0xff] %v4402
        %4499 = vst [vmem:[#allocation2 + $0x290] sm:$0xff] %v4403
        %4500 = vst [vmem:[#allocation2 + $0x298] sm:$0xff] %v4404
        %4501 = vst [vmem:[#allocation2 + $0x2a0] sm:$0xff] %v4405
        %4502 = vst [vmem:[#allocation2 + $0x2a8] sm:$0xff] %v4406
        %4503 = vst [vmem:[#allocation2 + $0x2b0] sm:$0xff] %v4407
        %4504 = vst [vmem:[#allocation2 + $0x2b8] sm:$0xff] %v4408
        %4505 = vst [vmem:[#allocation2 + $0x2c0] sm:$0xff] %v4409
        %4506 = vst [vmem:[#allocation2 + $0x2c8] sm:$0xff] %v4410
        %4507 = vst [vmem:[#allocation2 + $0x2d0] sm:$0xff] %v4411
        %4508 = vst [vmem:[#allocation2 + $0x2d8] sm:$0xff] %v4412
        %4509 = vst [vmem:[#allocation2 + $0x2e0] sm:$0xff] %v4413
        %4510 = vst [vmem:[#allocation2 + $0x2e8] sm:$0xff] %v4414
        %4511 = vst [vmem:[#allocation2 + $0x2f0] sm:$0xff] %v4415
        %4512 = vst [vmem:[#allocation2 + $0x2f8] sm:$0xff] %v4416
        %p4513 = scmp.eq.s32.totalorder %s29, 2
        // Predicated region
        $region65: #{tpu_custom_call.1} parent=39 // pred_check
          %p4514 = pneg %p4513
        $region66: #{tpu_custom_call.1} parent=39 // pred_check_branch
          %4516 = sbr.rel (%p4514) target = $region68
        $region67: #{tpu_custom_call.1} parent=39 // pred_region
          %v4517 = vld [vmem:[#allocation2] sm:$0xff]
          %v4518 = vld [vmem:[#allocation2 + $0x8] sm:$0xff]
          %v4519 = vld [vmem:[#allocation2 + $0x10] sm:$0xff]
          %v4520 = vld [vmem:[#allocation2 + $0x18] sm:$0xff]
          %v4521 = vld [vmem:[#allocation2 + $0x20] sm:$0xff]
          %v4522 = vld [vmem:[#allocation2 + $0x28] sm:$0xff]
          %v4523 = vld [vmem:[#allocation2 + $0x30] sm:$0xff]
          %v4524 = vld [vmem:[#allocation2 + $0x38] sm:$0xff]
          %v4525 = vld [vmem:[#allocation2 + $0x40] sm:$0xff]
          %v4526 = vld [vmem:[#allocation2 + $0x48] sm:$0xff]
          %v4527 = vld [vmem:[#allocation2 + $0x50] sm:$0xff]
          %v4528 = vld [vmem:[#allocation2 + $0x58] sm:$0xff]
          %v4529 = vld [vmem:[#allocation2 + $0x60] sm:$0xff]
          %v4530 = vld [vmem:[#allocation2 + $0x68] sm:$0xff]
          %v4531 = vld [vmem:[#allocation2 + $0x70] sm:$0xff]
          %v4532 = vld [vmem:[#allocation2 + $0x78] sm:$0xff]
          %v4533 = vld [vmem:[#allocation2 + $0x80] sm:$0xff]
          %v4534 = vld [vmem:[#allocation2 + $0x88] sm:$0xff]
          %v4535 = vld [vmem:[#allocation2 + $0x90] sm:$0xff]
          %v4536 = vld [vmem:[#allocation2 + $0x98] sm:$0xff]
          %v4537 = vld [vmem:[#allocation2 + $0xa0] sm:$0xff]
          %v4538 = vld [vmem:[#allocation2 + $0xa8] sm:$0xff]
          %v4539 = vld [vmem:[#allocation2 + $0xb0] sm:$0xff]
          %v4540 = vld [vmem:[#allocation2 + $0xb8] sm:$0xff]
          %v4541 = vld [vmem:[#allocation2 + $0xc0] sm:$0xff]
          %v4542 = vld [vmem:[#allocation2 + $0xc8] sm:$0xff]
          %v4543 = vld [vmem:[#allocation2 + $0xd0] sm:$0xff]
          %v4544 = vld [vmem:[#allocation2 + $0xd8] sm:$0xff]
          %v4545 = vld [vmem:[#allocation2 + $0xe0] sm:$0xff]
          %v4546 = vld [vmem:[#allocation2 + $0xe8] sm:$0xff]
          %v4547 = vld [vmem:[#allocation2 + $0xf0] sm:$0xff]
          %v4548 = vld [vmem:[#allocation2 + $0xf8] sm:$0xff]
          %v4549 = vld [vmem:[#allocation2 + $0x100] sm:$0xff]
          %v4550 = vld [vmem:[#allocation2 + $0x108] sm:$0xff]
          %v4551 = vld [vmem:[#allocation2 + $0x110] sm:$0xff]
          %v4552 = vld [vmem:[#allocation2 + $0x118] sm:$0xff]
          %v4553 = vld [vmem:[#allocation2 + $0x120] sm:$0xff]
          %v4554 = vld [vmem:[#allocation2 + $0x128] sm:$0xff]
          %v4555 = vld [vmem:[#allocation2 + $0x130] sm:$0xff]
          %v4556 = vld [vmem:[#allocation2 + $0x138] sm:$0xff]
          %v4557 = vld [vmem:[#allocation2 + $0x140] sm:$0xff]
          %v4558 = vld [vmem:[#allocation2 + $0x148] sm:$0xff]
          %v4559 = vld [vmem:[#allocation2 + $0x150] sm:$0xff]
          %v4560 = vld [vmem:[#allocation2 + $0x158] sm:$0xff]
          %v4561 = vld [vmem:[#allocation2 + $0x160] sm:$0xff]
          %v4562 = vld [vmem:[#allocation2 + $0x168] sm:$0xff]
          %v4563 = vld [vmem:[#allocation2 + $0x170] sm:$0xff]
          %v4564 = vld [vmem:[#allocation2 + $0x178] sm:$0xff]
          %v4565 = vld [vmem:[#allocation2 + $0x180] sm:$0xff]
          %v4566 = vld [vmem:[#allocation2 + $0x188] sm:$0xff]
          %v4567 = vld [vmem:[#allocation2 + $0x190] sm:$0xff]
          %v4568 = vld [vmem:[#allocation2 + $0x198] sm:$0xff]
          %v4569 = vld [vmem:[#allocation2 + $0x1a0] sm:$0xff]
          %v4570 = vld [vmem:[#allocation2 + $0x1a8] sm:$0xff]
          %v4571 = vld [vmem:[#allocation2 + $0x1b0] sm:$0xff]
          %v4572 = vld [vmem:[#allocation2 + $0x1b8] sm:$0xff]
          %v4573 = vld [vmem:[#allocation2 + $0x1c0] sm:$0xff]
          %v4574 = vld [vmem:[#allocation2 + $0x1c8] sm:$0xff]
          %v4575 = vld [vmem:[#allocation2 + $0x1d0] sm:$0xff]
          %v4576 = vld [vmem:[#allocation2 + $0x1d8] sm:$0xff]
          %v4577 = vld [vmem:[#allocation2 + $0x1e0] sm:$0xff]
          %v4578 = vld [vmem:[#allocation2 + $0x1e8] sm:$0xff]
          %v4579 = vld [vmem:[#allocation2 + $0x1f0] sm:$0xff]
          %v4580 = vld [vmem:[#allocation2 + $0x1f8] sm:$0xff]
          %v4581 = vld [vmem:[#allocation2 + $0x200] sm:$0xff]
          %v4582 = vld [vmem:[#allocation2 + $0x208] sm:$0xff]
          %v4583 = vld [vmem:[#allocation2 + $0x210] sm:$0xff]
          %v4584 = vld [vmem:[#allocation2 + $0x218] sm:$0xff]
          %v4585 = vld [vmem:[#allocation2 + $0x220] sm:$0xff]
          %v4586 = vld [vmem:[#allocation2 + $0x228] sm:$0xff]
          %v4587 = vld [vmem:[#allocation2 + $0x230] sm:$0xff]
          %v4588 = vld [vmem:[#allocation2 + $0x238] sm:$0xff]
          %v4589 = vld [vmem:[#allocation2 + $0x240] sm:$0xff]
          %v4590 = vld [vmem:[#allocation2 + $0x248] sm:$0xff]
          %v4591 = vld [vmem:[#allocation2 + $0x250] sm:$0xff]
          %v4592 = vld [vmem:[#allocation2 + $0x258] sm:$0xff]
          %v4593 = vld [vmem:[#allocation2 + $0x260] sm:$0xff]
          %v4594 = vld [vmem:[#allocation2 + $0x268] sm:$0xff]
          %v4595 = vld [vmem:[#allocation2 + $0x270] sm:$0xff]
          %v4596 = vld [vmem:[#allocation2 + $0x278] sm:$0xff]
          %v4597 = vld [vmem:[#allocation2 + $0x280] sm:$0xff]
          %v4598 = vld [vmem:[#allocation2 + $0x288] sm:$0xff]
          %v4599 = vld [vmem:[#allocation2 + $0x290] sm:$0xff]
          %v4600 = vld [vmem:[#allocation2 + $0x298] sm:$0xff]
          %v4601 = vld [vmem:[#allocation2 + $0x2a0] sm:$0xff]
          %v4602 = vld [vmem:[#allocation2 + $0x2a8] sm:$0xff]
          %v4603 = vld [vmem:[#allocation2 + $0x2b0] sm:$0xff]
          %v4604 = vld [vmem:[#allocation2 + $0x2b8] sm:$0xff]
          %v4605 = vld [vmem:[#allocation2 + $0x2c0] sm:$0xff]
          %v4606 = vld [vmem:[#allocation2 + $0x2c8] sm:$0xff]
          %v4607 = vld [vmem:[#allocation2 + $0x2d0] sm:$0xff]
          %v4608 = vld [vmem:[#allocation2 + $0x2d8] sm:$0xff]
          %v4609 = vld [vmem:[#allocation2 + $0x2e0] sm:$0xff]
          %v4610 = vld [vmem:[#allocation2 + $0x2e8] sm:$0xff]
          %v4611 = vld [vmem:[#allocation2 + $0x2f0] sm:$0xff]
          %v4612 = vld [vmem:[#allocation2 + $0x2f8] sm:$0xff]
          %4613 = vst [vmem:[#allocation12] sm:$0xff] %v4517
          %4614 = vst [vmem:[#allocation12 + $0x8] sm:$0xff] %v4518
          %4615 = vst [vmem:[#allocation12 + $0x10] sm:$0xff] %v4519
          %4616 = vst [vmem:[#allocation12 + $0x18] sm:$0xff] %v4520
          %4617 = vst [vmem:[#allocation12 + $0x20] sm:$0xff] %v4521
          %4618 = vst [vmem:[#allocation12 + $0x28] sm:$0xff] %v4522
          %4619 = vst [vmem:[#allocation12 + $0x30] sm:$0xff] %v4523
          %4620 = vst [vmem:[#allocation12 + $0x38] sm:$0xff] %v4524
          %4621 = vst [vmem:[#allocation12 + $0x40] sm:$0xff] %v4525
          %4622 = vst [vmem:[#allocation12 + $0x48] sm:$0xff] %v4526
          %4623 = vst [vmem:[#allocation12 + $0x50] sm:$0xff] %v4527
          %4624 = vst [vmem:[#allocation12 + $0x58] sm:$0xff] %v4528
          %4625 = vst [vmem:[#allocation12 + $0x60] sm:$0xff] %v4529
          %4626 = vst [vmem:[#allocation12 + $0x68] sm:$0xff] %v4530
          %4627 = vst [vmem:[#allocation12 + $0x70] sm:$0xff] %v4531
          %4628 = vst [vmem:[#allocation12 + $0x78] sm:$0xff] %v4532
          %4629 = vst [vmem:[#allocation12 + $0x80] sm:$0xff] %v4533
          %4630 = vst [vmem:[#allocation12 + $0x88] sm:$0xff] %v4534
          %4631 = vst [vmem:[#allocation12 + $0x90] sm:$0xff] %v4535
          %4632 = vst [vmem:[#allocation12 + $0x98] sm:$0xff] %v4536
          %4633 = vst [vmem:[#allocation12 + $0xa0] sm:$0xff] %v4537
          %4634 = vst [vmem:[#allocation12 + $0xa8] sm:$0xff] %v4538
          %4635 = vst [vmem:[#allocation12 + $0xb0] sm:$0xff] %v4539
          %4636 = vst [vmem:[#allocation12 + $0xb8] sm:$0xff] %v4540
          %4637 = vst [vmem:[#allocation12 + $0xc0] sm:$0xff] %v4541
          %4638 = vst [vmem:[#allocation12 + $0xc8] sm:$0xff] %v4542
          %4639 = vst [vmem:[#allocation12 + $0xd0] sm:$0xff] %v4543
          %4640 = vst [vmem:[#allocation12 + $0xd8] sm:$0xff] %v4544
          %4641 = vst [vmem:[#allocation12 + $0xe0] sm:$0xff] %v4545
          %4642 = vst [vmem:[#allocation12 + $0xe8] sm:$0xff] %v4546
          %4643 = vst [vmem:[#allocation12 + $0xf0] sm:$0xff] %v4547
          %4644 = vst [vmem:[#allocation12 + $0xf8] sm:$0xff] %v4548
          %4645 = vst [vmem:[#allocation12 + $0x100] sm:$0xff] %v4549
          %4646 = vst [vmem:[#allocation12 + $0x108] sm:$0xff] %v4550
          %4647 = vst [vmem:[#allocation12 + $0x110] sm:$0xff] %v4551
          %4648 = vst [vmem:[#allocation12 + $0x118] sm:$0xff] %v4552
          %4649 = vst [vmem:[#allocation12 + $0x120] sm:$0xff] %v4553
          %4650 = vst [vmem:[#allocation12 + $0x128] sm:$0xff] %v4554
          %4651 = vst [vmem:[#allocation12 + $0x130] sm:$0xff] %v4555
          %4652 = vst [vmem:[#allocation12 + $0x138] sm:$0xff] %v4556
          %4653 = vst [vmem:[#allocation12 + $0x140] sm:$0xff] %v4557
          %4654 = vst [vmem:[#allocation12 + $0x148] sm:$0xff] %v4558
          %4655 = vst [vmem:[#allocation12 + $0x150] sm:$0xff] %v4559
          %4656 = vst [vmem:[#allocation12 + $0x158] sm:$0xff] %v4560
          %4657 = vst [vmem:[#allocation12 + $0x160] sm:$0xff] %v4561
          %4658 = vst [vmem:[#allocation12 + $0x168] sm:$0xff] %v4562
          %4659 = vst [vmem:[#allocation12 + $0x170] sm:$0xff] %v4563
          %4660 = vst [vmem:[#allocation12 + $0x178] sm:$0xff] %v4564
          %4661 = vst [vmem:[#allocation12 + $0x180] sm:$0xff] %v4565
          %4662 = vst [vmem:[#allocation12 + $0x188] sm:$0xff] %v4566
          %4663 = vst [vmem:[#allocation12 + $0x190] sm:$0xff] %v4567
          %4664 = vst [vmem:[#allocation12 + $0x198] sm:$0xff] %v4568
          %4665 = vst [vmem:[#allocation12 + $0x1a0] sm:$0xff] %v4569
          %4666 = vst [vmem:[#allocation12 + $0x1a8] sm:$0xff] %v4570
          %4667 = vst [vmem:[#allocation12 + $0x1b0] sm:$0xff] %v4571
          %4668 = vst [vmem:[#allocation12 + $0x1b8] sm:$0xff] %v4572
          %4669 = vst [vmem:[#allocation12 + $0x1c0] sm:$0xff] %v4573
          %4670 = vst [vmem:[#allocation12 + $0x1c8] sm:$0xff] %v4574
          %4671 = vst [vmem:[#allocation12 + $0x1d0] sm:$0xff] %v4575
          %4672 = vst [vmem:[#allocation12 + $0x1d8] sm:$0xff] %v4576
          %4673 = vst [vmem:[#allocation12 + $0x1e0] sm:$0xff] %v4577
          %4674 = vst [vmem:[#allocation12 + $0x1e8] sm:$0xff] %v4578
          %4675 = vst [vmem:[#allocation12 + $0x1f0] sm:$0xff] %v4579
          %4676 = vst [vmem:[#allocation12 + $0x1f8] sm:$0xff] %v4580
          %4677 = vst [vmem:[#allocation12 + $0x200] sm:$0xff] %v4581
          %4678 = vst [vmem:[#allocation12 + $0x208] sm:$0xff] %v4582
          %4679 = vst [vmem:[#allocation12 + $0x210] sm:$0xff] %v4583
          %4680 = vst [vmem:[#allocation12 + $0x218] sm:$0xff] %v4584
          %4681 = vst [vmem:[#allocation12 + $0x220] sm:$0xff] %v4585
          %4682 = vst [vmem:[#allocation12 + $0x228] sm:$0xff] %v4586
          %4683 = vst [vmem:[#allocation12 + $0x230] sm:$0xff] %v4587
          %4684 = vst [vmem:[#allocation12 + $0x238] sm:$0xff] %v4588
          %4685 = vst [vmem:[#allocation12 + $0x240] sm:$0xff] %v4589
          %4686 = vst [vmem:[#allocation12 + $0x248] sm:$0xff] %v4590
          %4687 = vst [vmem:[#allocation12 + $0x250] sm:$0xff] %v4591
          %4688 = vst [vmem:[#allocation12 + $0x258] sm:$0xff] %v4592
          %4689 = vst [vmem:[#allocation12 + $0x260] sm:$0xff] %v4593
          %4690 = vst [vmem:[#allocation12 + $0x268] sm:$0xff] %v4594
          %4691 = vst [vmem:[#allocation12 + $0x270] sm:$0xff] %v4595
          %4692 = vst [vmem:[#allocation12 + $0x278] sm:$0xff] %v4596
          %4693 = vst [vmem:[#allocation12 + $0x280] sm:$0xff] %v4597
          %4694 = vst [vmem:[#allocation12 + $0x288] sm:$0xff] %v4598
          %4695 = vst [vmem:[#allocation12 + $0x290] sm:$0xff] %v4599
          %4696 = vst [vmem:[#allocation12 + $0x298] sm:$0xff] %v4600
          %4697 = vst [vmem:[#allocation12 + $0x2a0] sm:$0xff] %v4601
          %4698 = vst [vmem:[#allocation12 + $0x2a8] sm:$0xff] %v4602
          %4699 = vst [vmem:[#allocation12 + $0x2b0] sm:$0xff] %v4603
          %4700 = vst [vmem:[#allocation12 + $0x2b8] sm:$0xff] %v4604
          %4701 = vst [vmem:[#allocation12 + $0x2c0] sm:$0xff] %v4605
          %4702 = vst [vmem:[#allocation12 + $0x2c8] sm:$0xff] %v4606
          %4703 = vst [vmem:[#allocation12 + $0x2d0] sm:$0xff] %v4607
          %4704 = vst [vmem:[#allocation12 + $0x2d8] sm:$0xff] %v4608
          %4705 = vst [vmem:[#allocation12 + $0x2e0] sm:$0xff] %v4609
          %4706 = vst [vmem:[#allocation12 + $0x2e8] sm:$0xff] %v4610
          %4707 = vst [vmem:[#allocation12 + $0x2f0] sm:$0xff] %v4611
          %4708 = vst [vmem:[#allocation12 + $0x2f8] sm:$0xff] %v4612
        $region68: #{tpu_custom_call.1} parent=39 // pred_fallthru
          _
        // Predicated region
        $region69: #{tpu_custom_call.1} parent=39 // pred_check
          %p4709 = pneg %p179
        $region70: #{tpu_custom_call.1} parent=39 // pred_check_branch
          %4711 = sbr.rel (%p4709) target = $region72
        $region71: #{tpu_custom_call.1} parent=39 // pred_region
          %s4712 = smul.u32 32, %s28
          %s4714 = ssub.s32 12288, 12288
          %4715 = vsyncadd [#allocation5], %s4714
          %s4716 = smul.addr %s4712, 3
          %s4717 = smul.addr %s4716, 128
          %s4718 = scalar_lea.hbm %s5, %s4717
          %s4719 = sshll.u32 [#allocation12], 4
          %s4720 = int_to_ptr.vmem [resolvable:$true] %s4719
          %4725 = dma.vmem_to_hbm [thread:$0]  %s4720, 12288, %s4718, [#allocation5], 384, 384, 24
        $region72: #{tpu_custom_call.1} parent=39 // pred_fallthru
          _
        // Predicated region
        $region73: #{tpu_custom_call.1} parent=39 // pred_check
          %p4726 = pneg %p179
        $region74: #{tpu_custom_call.1} parent=39 // pred_check_branch
          %4728 = sbr.rel (%p4726) target = $region76
        $region75: #{tpu_custom_call.1} parent=39 // pred_region
          %4729 = dma.done [#allocation5], 12288
        $region76: #{tpu_custom_call.1} parent=39 // pred_fallthru
          _
      $region40: #{tpu_custom_call.1} parent=5 // pred_fallthru
        _
      %p4730 = scmp.le.s32.totalorder 2, %s19
      // Predicated region
      $region77: #{tpu_custom_call.1} parent=5 // pred_check
        %p4731 = pneg %p4730
      $region78: #{tpu_custom_call.1} parent=5 // pred_check_branch
        %4733 = sbr.rel (%p4731) target = $region80
      $region79: #{tpu_custom_call.1} parent=5 // pred_region
        %s4734 = ssub.s32 %s19, 2
      $region80: #{tpu_custom_call.1} parent=5 // pred_fallthru
        _
    $region6: #{tpu_custom_call.1} parent=1 // loop_footer
      %s23 = sadd.s32 1, %s19
    $region7: #{tpu_custom_call.1} parent=1 // loop_footer_branch
      %18 = sbr.rel target = $region3
    $region8: #{tpu_custom_call.1} parent=1 // loop_exit
      _
    %4735 = vsyncpa [#allocation4], 1
    %s4736 = scalar_lea.sflag [#allocation4], 1
    %4737 = vsyncpa %s4736, 1
    %4738 = vsyncpa [#allocation7], 1
    %s4739 = scalar_lea.sflag [#allocation7], 1
    %4740 = vsyncpa %s4739, 1
    %4741 = vsyncpa [#allocation10], 1
    %s4742 = scalar_lea.sflag [#allocation10], 1
    %4743 = vsyncpa %s4742, 1
    %4744 = vsyncpa [#allocation5], 1
    %s4745 = scalar_lea.sflag [#allocation5], 1
    %4746 = vsyncpa %s4745, 1

</llo_original>
